<compile_context>
chip_gen: v7x
topology: tpu7x:2x2x1
jax: 0.10.0
libtpu: 0.0.40
codegen_flags: <defaults>
</compile_context>

<pallas_src>
import functools

import jax
import jax.numpy as jnp
from jax import lax
from jax.experimental import pallas as pl
from jax.experimental.pallas import tpu as pltpu


def _round_up(x, m):
    return (x + m - 1) // m * m


def _critic_kernel(neighbor_act,
                   s_ref, a_ref, p2_ref, lnw_ref, lnb_ref,
                   w1_ref, b1_ref, w2_ref, b2_ref, w3_ref, b3_ref,
                   wqh_ref, wqa_ref, wqs_ref, bq_ref,
                   wh_ref, bh_ref, out_ref):
    s = s_ref[...]                                   # (T, flat_p) f32
    T, flat_p = s.shape

    # --- grouped LayerNorm statistics, fused into one 256-wide f32 matmul ---
    # [s | s*s] @ blockdiag(P, P) = [mu | E[x^2]]  (kept in f32: the
    # E[x^2] - mu^2 path is the precision-sensitive one).
    s_cat = jnp.concatenate([s, s * s], axis=-1)     # (T, 2*flat_p)
    stats = jnp.dot(s_cat, p2_ref[...], preferred_element_type=jnp.float32)
    mu = stats[:, :flat_p]
    ex2 = stats[:, flat_p:]
    var = jnp.maximum(ex2 - mu * mu, 0.0)            # biased var (torch LN)
    s_norm = (s - mu) * lax.rsqrt(var + 1e-5) * lnw_ref[...] + lnb_ref[...]
    s_bf = s_norm.astype(jnp.bfloat16)               # bf16 feed to the MXU

    def dense(x, w_ref, b_ref=None):
        y = jnp.dot(x, w_ref[...], preferred_element_type=jnp.float32)
        return y if b_ref is None else y + b_ref[...]

    # --- self.fc : 3x (Linear + ReLU); bf16 matmuls, f32 accumulate ---
    h = jnp.maximum(dense(s_bf, w1_ref, b1_ref), 0.0).astype(jnp.bfloat16)
    h = jnp.maximum(dense(h, w2_ref, b2_ref), 0.0).astype(jnp.bfloat16)
    h = jnp.maximum(dense(h, w3_ref, b3_ref), 0.0).astype(jnp.bfloat16)

    # --- F.one_hot(a.view(-1,4), output_dim+1) built lane-dense in (T, oh_p).
    # Wrapper pre-adds j*num_classes, so column j of a lights column a_off[:,j];
    # OR-accumulate hits, single cast (padded a lanes are -1 -> never match).
    # TODO(synk): torch cats a LongTensor one-hot with float tensors (would
    #             need .float()); we implement the intended f32 semantics.
    a_off = a_ref[...]                               # (T, 8) int32
    oh_p = wqa_ref.shape[0]
    col = lax.broadcasted_iota(jnp.int32, (T, oh_p), 1)
    hit = col == a_off[:, 0:1]
    for j in range(1, neighbor_act):
        hit = hit | (col == a_off[:, j:j + 1])
    oh = hit.astype(jnp.bfloat16)

    # --- cat((h, one_hot, s_norm)) @ wq == h@wq_h + oh@wq_a + s_norm@wq_s ---
    sp = dense(h, wqh_ref) + dense(oh, wqa_ref) + dense(s_bf, wqs_ref) + bq_ref[...]
    sp = jnp.maximum(sp, 0.0).astype(jnp.bfloat16)   # (T, hid_p)

    # --- fused value_layer | pred_layer head (lane-dense output slab) ---
    out_ref[...] = dense(sp, wh_ref, bh_ref).astype(out_ref.dtype)


def init_params(key, input_dim, output_dim, hidden_dim):
    n_agents, feat = input_dim
    flat = n_agents * feat
    cat_dim = hidden_dim + 4 * (output_dim + 1) + flat
    keys = jax.random.split(key, 6)

    def w(k, fan_in, fan_out):
        return 0.1 * jax.random.normal(k, (fan_in, fan_out), jnp.float32)

    return dict(
        ln_w=jnp.ones((1, feat), jnp.float32),
        ln_b=jnp.zeros((1, feat), jnp.float32),
        w1=w(keys[0], flat, hidden_dim), b1=jnp.zeros((1, hidden_dim), jnp.float32),
        w2=w(keys[1], hidden_dim, hidden_dim), b2=jnp.zeros((1, hidden_dim), jnp.float32),
        w3=w(keys[2], hidden_dim, hidden_dim), b3=jnp.zeros((1, hidden_dim), jnp.float32),
        wq=w(keys[3], cat_dim, hidden_dim), bq=0.01 * jnp.ones((1, hidden_dim), jnp.float32),
        wv=w(keys[4], hidden_dim, output_dim), bv=jnp.zeros((1, output_dim), jnp.float32),
        wp=w(keys[5], hidden_dim, 24), bp=jnp.zeros((1, 24), jnp.float32),
    )


def prepare_critic_params(params, *, input_dim, output_dim, hidden_dim):
    """One-time weight prep: pad to 128 lanes, split wq, fuse head, cast bf16."""
    n_agents, feat = input_dim
    neighbor_act = n_agents - 1
    # torch hardcodes a.view(-1, 4) and Linear(hidden + 4*(O+1) + flat, ...);
    # both only make sense when neighbor_action_dim == 4.
    assert neighbor_act == 4, "CriticNetwork assumes input_dim[0] - 1 == 4"
    flat = n_agents * feat
    num_classes = output_dim + 1
    oh_dim = neighbor_act * num_classes
    head_dim = output_dim + 24

    flat_p = _round_up(flat, 128)
    hid_p = _round_up(hidden_dim, 128)
    oh_p = _round_up(oh_dim, 128)
    head_p = _round_up(head_dim, 128)

    def padw(x, r, c, dtype=jnp.float32):
        x = jnp.asarray(x, jnp.float32)
        return jnp.pad(x, ((0, r - x.shape[0]), (0, c - x.shape[1]))).astype(dtype)

    bf = jnp.bfloat16

    # Block-averaging matrix P (P[k,c]=1/feat iff same neighbor block), laid
    # out block-diagonally so [s | s*s] @ P2 gives [mu | E[x^2]] in one matmul.
    gid = jnp.arange(flat) // feat
    P = (gid[:, None] == gid[None, :]).astype(jnp.float32) / float(feat)
    P = jnp.pad(P, ((0, flat_p - flat), (0, flat_p - flat)))
    Z = jnp.zeros_like(P)
    P2 = jnp.concatenate([jnp.concatenate([P, Z], axis=1),
                          jnp.concatenate([Z, P], axis=1)], axis=0)

    lnw = padw(jnp.tile(params['ln_w'], (1, n_agents)), 1, flat_p)
    lnb = padw(jnp.tile(params['ln_b'], (1, n_agents)), 1, flat_p)

    wq = params['wq']   # rows ordered [h ; one_hot(a) ; s_norm]
    weights = dict(
        p2=P2, lnw=lnw, lnb=lnb,
        w1=padw(params['w1'], flat_p, hid_p, bf), b1=padw(params['b1'], 1, hid_p),
        w2=padw(params['w2'], hid_p, hid_p, bf), b2=padw(params['b2'], 1, hid_p),
        w3=padw(params['w3'], hid_p, hid_p, bf), b3=padw(params['b3'], 1, hid_p),
        wq_h=padw(wq[:hidden_dim], hid_p, hid_p, bf),
        wq_a=padw(wq[hidden_dim:hidden_dim + oh_dim], oh_p, hid_p, bf),
        wq_s=padw(wq[hidden_dim + oh_dim:], flat_p, hid_p, bf),
        bq=padw(params['bq'], 1, hid_p),
        w_head=padw(jnp.concatenate([params['wv'], params['wp']], axis=1),
                    hid_p, head_p, bf),
        b_head=padw(jnp.concatenate([params['bv'], params['bp']], axis=1),
                    1, head_p),
    )
    dims = dict(flat=flat, neighbor_act=neighbor_act, num_classes=num_classes,
                head_dim=head_dim, output_dim=output_dim,
                flat_p=flat_p, hid_p=hid_p, oh_p=oh_p, head_p=head_p)
    return dict(weights=weights, dims=dims)


def critic_forward(prepped, s, a, h_n, num_meta, *, agent_dim, tile_rows=1024):
    d = prepped['dims']
    w = prepped['weights']
    flat, flat_p = d['flat'], d['flat_p']
    hid_p, oh_p, head_p = d['hid_p'], d['oh_p'], d['head_p']
    neighbor_act, num_classes = d['neighbor_act'], d['num_classes']
    output_dim, head_dim = d['output_dim'], d['head_dim']
    group = agent_dim * num_meta

    s2 = jnp.asarray(s, jnp.float32).reshape(-1, flat)        # (N, flat)
    a2 = jnp.asarray(a, jnp.int32).reshape(-1, neighbor_act)   # (N, 4)
    n_rows = s2.shape[0]
    batch = n_rows // group

    # Row tile: multiple of 16 (bf16 sublane packing), >=2 grid steps whenever
    # possible so ("parallel",) shards rows across v7x's two TensorCores, and
    # capped at tile_rows (default 1024, sized for v7x's 64 MiB VMEM).
    n16 = _round_up(max(n_rows, 1), 16)
    if n16 >= 32:
        tile_n = min(tile_rows, _round_up(-(-n16 // 2), 16))
    else:
        tile_n = n16
    n_pad = _round_up(n16, tile_n)
    grid = (n_pad // tile_n,)

    s2p = jnp.pad(s2, ((0, n_pad - n_rows), (0, flat_p - flat)))
    # Pre-add the per-column one-hot offset; pad action lanes 4 -> 8 with -1
    # (never matches a column, and padded rows are sliced off anyway).
    a_off = a2 + (jnp.arange(neighbor_act, dtype=jnp.int32) * num_classes)[None, :]
    a_pad_w = 8
    a2p = jnp.pad(a_off, ((0, n_pad - n_rows), (0, a_pad_w - neighbor_act)),
                  constant_values=-1)

    weight_list = (w['p2'], w['lnw'], w['lnb'],
                   w['w1'], w['b1'], w['w2'], w['b2'], w['w3'], w['b3'],
                   w['wq_h'], w['wq_a'], w['wq_s'], w['bq'],
                   w['w_head'], w['b_head'])

    def make_in_specs(single_buffer):
        def const(arr):
            r, c = arr.shape
            if single_buffer:
                # Weights never change block index; single-buffer them to
                # halve their VMEM footprint.
                return pl.BlockSpec((r, c), lambda i: (0, 0),
                                    pipeline_mode=pl.Buffered(1))
            return pl.BlockSpec((r, c), lambda i: (0, 0))
        return ([pl.BlockSpec((tile_n, flat_p), lambda i: (i, 0)),
                 pl.BlockSpec((tile_n, a_pad_w), lambda i: (i, 0))]
                + [const(arr) for arr in weight_list])

    out_spec = pl.BlockSpec((tile_n, head_p), lambda i: (i, 0))

    kernel = functools.partial(_critic_kernel, neighbor_act)

    flops_per_row = 2 * ((2 * flat_p) * (2 * flat_p)        # fused LN stats
                         + flat_p * hid_p                    # w1
                         + 2 * hid_p * hid_p                 # w2, w3
                         + (hid_p + oh_p + flat_p) * hid_p   # split wq
                         + hid_p * head_p)                   # fused head
    weight_bytes = sum(int(x.size) * x.dtype.itemsize for x in weight_list)
    bytes_accessed = (int(s2p.size) * 4 + int(a2p.size) * 4
                      + n_pad * head_p * 4 + weight_bytes)
    cost = pl.CostEstimate(flops=int(n_pad) * int(flops_per_row),
                           transcendentals=0,
                           bytes_accessed=int(bytes_accessed))

    # VMEM budget: double-buffered row tiles + resident weights + live
    # intermediates; clamp to [32 MiB, 64 MiB] (v7x physical ceiling).
    io_bytes = 2 * tile_n * (flat_p + a_pad_w + head_p) * 4
    interm_bytes = 16 * tile_n * max(2 * flat_p, hid_p, oh_p, head_p) * 4
    vmem_limit = int(min(max(2 * (weight_bytes + io_bytes + interm_bytes),
                             32 * 1024 * 1024), 64 * 1024 * 1024))
    cparams = pltpu.CompilerParams(dimension_semantics=("parallel",),
                                   vmem_limit_bytes=vmem_limit)

    def run(single_buffer):
        return pl.pallas_call(
            kernel,
            grid=grid,
            out_shape=jax.ShapeDtypeStruct((n_pad, head_p), jnp.float32),
            in_specs=make_in_specs(single_buffer),
            out_specs=out_spec,
            compiler_params=cparams,
            cost_estimate=cost,
        )(s2p, a2p, *weight_list)

    if hasattr(pl, "Buffered"):
        try:
            out = run(True)
        except Exception:          # pipeline_mode unsupported -> default buffering
            out = run(False)
    else:
        out = run(False)

    q = out[:n_rows, :output_dim].reshape(batch, group, output_dim)
    pred = out[:n_rows, output_dim:head_dim].reshape(batch, group, 24)
    return q, pred, h_n   # h_n is a passthrough, exactly like the torch module


if __name__ == "__main__":
    # input_dim = (neighbor_agent_dim, feat_dim); neighbor_action_dim must be 4
    INPUT_DIM = (5, 8)
    OUTPUT_DIM = 6
    AGENT_DIM = 2
    HIDDEN = 32
    NUM_META = 1
    BATCH = 2

    key = jax.random.PRNGKey(0)
    k_s, k_a, k_h, k_p = jax.random.split(key, 4)
    params = init_params(k_p, INPUT_DIM, OUTPUT_DIM, HIDDEN)

    # One-time weight preparation (padding / splitting / bf16 packing) — kept
    # out of the per-step forward, per the performance review.
    prepped = prepare_critic_params(params, input_dim=INPUT_DIM,
                                    output_dim=OUTPUT_DIM, hidden_dim=HIDDEN)

    s = jax.random.normal(
        k_s, (BATCH, AGENT_DIM * NUM_META, INPUT_DIM[0], INPUT_DIM[1]), jnp.float32)
    a = jax.random.randint(
        k_a, (BATCH, AGENT_DIM * NUM_META, INPUT_DIM[0] - 1), 0, OUTPUT_DIM + 1,
        dtype=jnp.int32)
    h_n = jax.random.normal(k_h, (BATCH, HIDDEN), jnp.float32)

    q, pred, h_out = critic_forward(prepped, s, a, h_n, NUM_META,
                                    agent_dim=AGENT_DIM)
    jax.block_until_ready((q, pred, h_out))

    assert q.shape == (BATCH, AGENT_DIM * NUM_META, OUTPUT_DIM)
    assert pred.shape == (BATCH, AGENT_DIM * NUM_META, 24)
    assert h_out.shape == h_n.shape
    assert bool(jnp.all(jnp.isfinite(q))) and bool(jnp.all(jnp.isfinite(pred)))
    print("KERNEL_OK")
</pallas_src>

<mosaic_0001>
module attributes {stable_mosaic.version = 11 : i64} {
  func.func @_critic_kernel(%arg0: i32, %arg1: memref<16x128xf32, #tpu.memory_space<vmem>>, %arg2: memref<16x8xi32, #tpu.memory_space<vmem>>, %arg3: memref<256x256xf32, #tpu.memory_space<vmem>>, %arg4: memref<1x128xf32, #tpu.memory_space<vmem>>, %arg5: memref<1x128xf32, #tpu.memory_space<vmem>>, %arg6: memref<128x128xbf16, #tpu.memory_space<vmem>>, %arg7: memref<1x128xf32, #tpu.memory_space<vmem>>, %arg8: memref<128x128xbf16, #tpu.memory_space<vmem>>, %arg9: memref<1x128xf32, #tpu.memory_space<vmem>>, %arg10: memref<128x128xbf16, #tpu.memory_space<vmem>>, %arg11: memref<1x128xf32, #tpu.memory_space<vmem>>, %arg12: memref<128x128xbf16, #tpu.memory_space<vmem>>, %arg13: memref<128x128xbf16, #tpu.memory_space<vmem>>, %arg14: memref<128x128xbf16, #tpu.memory_space<vmem>>, %arg15: memref<1x128xf32, #tpu.memory_space<vmem>>, %arg16: memref<128x128xbf16, #tpu.memory_space<vmem>>, %arg17: memref<1x128xf32, #tpu.memory_space<vmem>>, %arg18: memref<16x128xf32, #tpu.memory_space<vmem>>) attributes {dimension_semantics = [#tpu.dimension_semantics<parallel>], iteration_bounds = array<i64: 1>, scalar_prefetch = 0 : i64, scratch_operands = 0 : i64, tpu.core_type = #tpu.core_type<tc>, window_params = [{transform_indices = @transform_0, window_bounds = array<i64: 16, 128>}, {transform_indices = @transform_1, window_bounds = array<i64: 16, 8>}, {pipeline_mode = #tpu.pipeline_mode<synchronous>, transform_indices = @transform_2, window_bounds = array<i64: 256, 256>}, {pipeline_mode = #tpu.pipeline_mode<synchronous>, transform_indices = @transform_3, window_bounds = array<i64: 1, 128>}, {pipeline_mode = #tpu.pipeline_mode<synchronous>, transform_indices = @transform_4, window_bounds = array<i64: 1, 128>}, {pipeline_mode = #tpu.pipeline_mode<synchronous>, transform_indices = @transform_5, window_bounds = array<i64: 128, 128>}, {pipeline_mode = #tpu.pipeline_mode<synchronous>, transform_indices = @transform_6, window_bounds = array<i64: 1, 128>}, {pipeline_mode = #tpu.pipeline_mode<synchronous>, transform_indices = @transform_7, window_bounds = array<i64: 128, 128>}, {pipeline_mode = #tpu.pipeline_mode<synchronous>, transform_indices = @transform_8, window_bounds = array<i64: 1, 128>}, {pipeline_mode = #tpu.pipeline_mode<synchronous>, transform_indices = @transform_9, window_bounds = array<i64: 128, 128>}, {pipeline_mode = #tpu.pipeline_mode<synchronous>, transform_indices = @transform_10, window_bounds = array<i64: 1, 128>}, {pipeline_mode = #tpu.pipeline_mode<synchronous>, transform_indices = @transform_11, window_bounds = array<i64: 128, 128>}, {pipeline_mode = #tpu.pipeline_mode<synchronous>, transform_indices = @transform_12, window_bounds = array<i64: 128, 128>}, {pipeline_mode = #tpu.pipeline_mode<synchronous>, transform_indices = @transform_13, window_bounds = array<i64: 128, 128>}, {pipeline_mode = #tpu.pipeline_mode<synchronous>, transform_indices = @transform_14, window_bounds = array<i64: 1, 128>}, {pipeline_mode = #tpu.pipeline_mode<synchronous>, transform_indices = @transform_15, window_bounds = array<i64: 128, 128>}, {pipeline_mode = #tpu.pipeline_mode<synchronous>, transform_indices = @transform_16, window_bounds = array<i64: 1, 128>}, {transform_indices = @transform_17, window_bounds = array<i64: 16, 128>}]} {
    %c0 = arith.constant 0 : index
    %c0_0 = arith.constant 0 : index
    %0 = vector.load %arg1[%c0, %c0_0] : memref<16x128xf32, #tpu.memory_space<vmem>>, vector<16x128xf32>
    %1 = arith.mulf %0, %0 : vector<16x128xf32>
    %2 = tpu.concatenate %0, %1 in 1 : vector<16x128xf32>, vector<16x128xf32> -> vector<16x256xf32>
    %c0_1 = arith.constant 0 : index
    %c0_2 = arith.constant 0 : index
    %3 = vector.load %arg3[%c0_1, %c0_2] : memref<256x256xf32, #tpu.memory_space<vmem>>, vector<256x256xf32>
    %cst = arith.constant dense<0.000000e+00> : vector<16x256xf32>
    %4 = tpu.matmul %2, %3, %cst {dimension_numbers = #tpu.dot_dimension_numbers<[1], [0], [0], [1], [0, 0, 1, 1], [], []>} : vector<16x256xf32>, vector<256x256xf32>, vector<16x256xf32> -> vector<16x256xf32>
    %5 = vector.extract_strided_slice %4 {offsets = [0, 0], sizes = [16, 128], strides = [1, 1]} : vector<16x256xf32> to vector<16x128xf32>
    %6 = vector.extract_strided_slice %4 {offsets = [0, 128], sizes = [16, 128], strides = [1, 1]} : vector<16x256xf32> to vector<16x128xf32>
    %7 = arith.mulf %5, %5 : vector<16x128xf32>
    %8 = arith.subf %6, %7 : vector<16x128xf32>
    %cst_3 = arith.constant 0.000000e+00 : f32
    %9 = vector.broadcast %cst_3 : f32 to vector<16x128xf32>
    %10 = arith.maximumf %8, %9 : vector<16x128xf32>
    %11 = arith.subf %0, %5 : vector<16x128xf32>
    %cst_4 = arith.constant 9.99999974E-6 : f32
    %12 = vector.broadcast %cst_4 : f32 to vector<16x128xf32>
    %13 = arith.addf %10, %12 : vector<16x128xf32>
    %14 = math.rsqrt %13 : vector<16x128xf32>
    %15 = arith.mulf %11, %14 : vector<16x128xf32>
    %c0_5 = arith.constant 0 : index
    %c0_6 = arith.constant 0 : index
    %16 = vector.load %arg4[%c0_5, %c0_6] : memref<1x128xf32, #tpu.memory_space<vmem>>, vector<1x128xf32>
    %17 = vector.broadcast %16 : vector<1x128xf32> to vector<16x128xf32>
    %18 = arith.mulf %15, %17 : vector<16x128xf32>
    %c0_7 = arith.constant 0 : index
    %c0_8 = arith.constant 0 : index
    %19 = vector.load %arg5[%c0_7, %c0_8] : memref<1x128xf32, #tpu.memory_space<vmem>>, vector<1x128xf32>
    %20 = vector.broadcast %19 : vector<1x128xf32> to vector<16x128xf32>
    %21 = arith.addf %18, %20 : vector<16x128xf32>
    %22 = arith.truncf %21 : vector<16x128xf32> to vector<16x128xbf16>
    %c0_9 = arith.constant 0 : index
    %c0_10 = arith.constant 0 : index
    %23 = vector.load %arg6[%c0_9, %c0_10] : memref<128x128xbf16, #tpu.memory_space<vmem>>, vector<128x128xbf16>
    %cst_11 = arith.constant dense<0.000000e+00> : vector<16x128xf32>
    %24 = tpu.matmul %22, %23, %cst_11 {dimension_numbers = #tpu.dot_dimension_numbers<[1], [0], [0], [1], [0, 0, 1, 1], [], []>} : vector<16x128xbf16>, vector<128x128xbf16>, vector<16x128xf32> -> vector<16x128xf32>
    %c0_12 = arith.constant 0 : index
    %c0_13 = arith.constant 0 : index
    %25 = vector.load %arg7[%c0_12, %c0_13] : memref<1x128xf32, #tpu.memory_space<vmem>>, vector<1x128xf32>
    %26 = vector.broadcast %25 : vector<1x128xf32> to vector<16x128xf32>
    %27 = arith.addf %24, %26 : vector<16x128xf32>
    %cst_14 = arith.constant 0.000000e+00 : f32
    %28 = vector.broadcast %cst_14 : f32 to vector<16x128xf32>
    %29 = arith.maximumf %27, %28 : vector<16x128xf32>
    %30 = arith.truncf %29 : vector<16x128xf32> to vector<16x128xbf16>
    %c0_15 = arith.constant 0 : index
    %c0_16 = arith.constant 0 : index
    %31 = vector.load %arg8[%c0_15, %c0_16] : memref<128x128xbf16, #tpu.memory_space<vmem>>, vector<128x128xbf16>
    %cst_17 = arith.constant dense<0.000000e+00> : vector<16x128xf32>
    %32 = tpu.matmul %30, %31, %cst_17 {dimension_numbers = #tpu.dot_dimension_numbers<[1], [0], [0], [1], [0, 0, 1, 1], [], []>} : vector<16x128xbf16>, vector<128x128xbf16>, vector<16x128xf32> -> vector<16x128xf32>
    %c0_18 = arith.constant 0 : index
    %c0_19 = arith.constant 0 : index
    %33 = vector.load %arg9[%c0_18, %c0_19] : memref<1x128xf32, #tpu.memory_space<vmem>>, vector<1x128xf32>
    %34 = vector.broadcast %33 : vector<1x128xf32> to vector<16x128xf32>
    %35 = arith.addf %32, %34 : vector<16x128xf32>
    %cst_20 = arith.constant 0.000000e+00 : f32
    %36 = vector.broadcast %cst_20 : f32 to vector<16x128xf32>
    %37 = arith.maximumf %35, %36 : vector<16x128xf32>
    %38 = arith.truncf %37 : vector<16x128xf32> to vector<16x128xbf16>
    %c0_21 = arith.constant 0 : index
    %c0_22 = arith.constant 0 : index
    %39 = vector.load %arg10[%c0_21, %c0_22] : memref<128x128xbf16, #tpu.memory_space<vmem>>, vector<128x128xbf16>
    %cst_23 = arith.constant dense<0.000000e+00> : vector<16x128xf32>
    %40 = tpu.matmul %38, %39, %cst_23 {dimension_numbers = #tpu.dot_dimension_numbers<[1], [0], [0], [1], [0, 0, 1, 1], [], []>} : vector<16x128xbf16>, vector<128x128xbf16>, vector<16x128xf32> -> vector<16x128xf32>
    %c0_24 = arith.constant 0 : index
    %c0_25 = arith.constant 0 : index
    %41 = vector.load %arg11[%c0_24, %c0_25] : memref<1x128xf32, #tpu.memory_space<vmem>>, vector<1x128xf32>
    %42 = vector.broadcast %41 : vector<1x128xf32> to vector<16x128xf32>
    %43 = arith.addf %40, %42 : vector<16x128xf32>
    %cst_26 = arith.constant 0.000000e+00 : f32
    %44 = vector.broadcast %cst_26 : f32 to vector<16x128xf32>
    %45 = arith.maximumf %43, %44 : vector<16x128xf32>
    %46 = arith.truncf %45 : vector<16x128xf32> to vector<16x128xbf16>
    %c0_27 = arith.constant 0 : index
    %c0_28 = arith.constant 0 : index
    %47 = vector.load %arg2[%c0_27, %c0_28] : memref<16x8xi32, #tpu.memory_space<vmem>>, vector<16x8xi32>
    %48 = tpu.iota {dimensions = array<i32: 1>} : vector<16x128xi32>
    %49 = vector.extract_strided_slice %47 {offsets = [0, 0], sizes = [16, 1], strides = [1, 1]} : vector<16x8xi32> to vector<16x1xi32>
    %50 = vector.broadcast %49 : vector<16x1xi32> to vector<16x128xi32>
    %51 = arith.cmpi eq, %48, %50 : vector<16x128xi32>
    %52 = vector.extract_strided_slice %47 {offsets = [0, 1], sizes = [16, 1], strides = [1, 1]} : vector<16x8xi32> to vector<16x1xi32>
    %53 = vector.broadcast %52 : vector<16x1xi32> to vector<16x128xi32>
    %54 = arith.cmpi eq, %48, %53 : vector<16x128xi32>
    %55 = arith.ori %51, %54 : vector<16x128xi1>
    %56 = vector.extract_strided_slice %47 {offsets = [0, 2], sizes = [16, 1], strides = [1, 1]} : vector<16x8xi32> to vector<16x1xi32>
    %57 = vector.broadcast %56 : vector<16x1xi32> to vector<16x128xi32>
    %58 = arith.cmpi eq, %48, %57 : vector<16x128xi32>
    %59 = arith.ori %55, %58 : vector<16x128xi1>
    %60 = vector.extract_strided_slice %47 {offsets = [0, 3], sizes = [16, 1], strides = [1, 1]} : vector<16x8xi32> to vector<16x1xi32>
    %61 = vector.broadcast %60 : vector<16x1xi32> to vector<16x128xi32>
    %62 = arith.cmpi eq, %48, %61 : vector<16x128xi32>
    %63 = arith.ori %59, %62 : vector<16x128xi1>
    %64 = arith.extui %63 : vector<16x128xi1> to vector<16x128xi32>
    %65 = arith.sitofp %64 : vector<16x128xi32> to vector<16x128xf32>
    %66 = arith.truncf %65 : vector<16x128xf32> to vector<16x128xbf16>
    %c0_29 = arith.constant 0 : index
    %c0_30 = arith.constant 0 : index
    %67 = vector.load %arg12[%c0_29, %c0_30] : memref<128x128xbf16, #tpu.memory_space<vmem>>, vector<128x128xbf16>
    %cst_31 = arith.constant dense<0.000000e+00> : vector<16x128xf32>
    %68 = tpu.matmul %46, %67, %cst_31 {dimension_numbers = #tpu.dot_dimension_numbers<[1], [0], [0], [1], [0, 0, 1, 1], [], []>} : vector<16x128xbf16>, vector<128x128xbf16>, vector<16x128xf32> -> vector<16x128xf32>
    %c0_32 = arith.constant 0 : index
    %c0_33 = arith.constant 0 : index
    %69 = vector.load %arg13[%c0_32, %c0_33] : memref<128x128xbf16, #tpu.memory_space<vmem>>, vector<128x128xbf16>
    %cst_34 = arith.constant dense<0.000000e+00> : vector<16x128xf32>
    %70 = tpu.matmul %66, %69, %cst_34 {dimension_numbers = #tpu.dot_dimension_numbers<[1], [0], [0], [1], [0, 0, 1, 1], [], []>} : vector<16x128xbf16>, vector<128x128xbf16>, vector<16x128xf32> -> vector<16x128xf32>
    %71 = arith.addf %68, %70 : vector<16x128xf32>
    %c0_35 = arith.constant 0 : index
    %c0_36 = arith.constant 0 : index
    %72 = vector.load %arg14[%c0_35, %c0_36] : memref<128x128xbf16, #tpu.memory_space<vmem>>, vector<128x128xbf16>
    %cst_37 = arith.constant dense<0.000000e+00> : vector<16x128xf32>
    %73 = tpu.matmul %22, %72, %cst_37 {dimension_numbers = #tpu.dot_dimension_numbers<[1], [0], [0], [1], [0, 0, 1, 1], [], []>} : vector<16x128xbf16>, vector<128x128xbf16>, vector<16x128xf32> -> vector<16x128xf32>
    %74 = arith.addf %71, %73 : vector<16x128xf32>
    %c0_38 = arith.constant 0 : index
    %c0_39 = arith.constant 0 : index
    %75 = vector.load %arg15[%c0_38, %c0_39] : memref<1x128xf32, #tpu.memory_space<vmem>>, vector<1x128xf32>
    %76 = vector.broadcast %75 : vector<1x128xf32> to vector<16x128xf32>
    %77 = arith.addf %74, %76 : vector<16x128xf32>
    %cst_40 = arith.constant 0.000000e+00 : f32
    %78 = vector.broadcast %cst_40 : f32 to vector<16x128xf32>
    %79 = arith.maximumf %77, %78 : vector<16x128xf32>
    %80 = arith.truncf %79 : vector<16x128xf32> to vector<16x128xbf16>
    %c0_41 = arith.constant 0 : index
    %c0_42 = arith.constant 0 : index
    %81 = vector.load %arg16[%c0_41, %c0_42] : memref<128x128xbf16, #tpu.memory_space<vmem>>, vector<128x128xbf16>
    %cst_43 = arith.constant dense<0.000000e+00> : vector<16x128xf32>
    %82 = tpu.matmul %80, %81, %cst_43 {dimension_numbers = #tpu.dot_dimension_numbers<[1], [0], [0], [1], [0, 0, 1, 1], [], []>} : vector<16x128xbf16>, vector<128x128xbf16>, vector<16x128xf32> -> vector<16x128xf32>
    %c0_44 = arith.constant 0 : index
    %c0_45 = arith.constant 0 : index
    %83 = vector.load %arg17[%c0_44, %c0_45] : memref<1x128xf32, #tpu.memory_space<vmem>>, vector<1x128xf32>
    %84 = vector.broadcast %83 : vector<1x128xf32> to vector<16x128xf32>
    %85 = arith.addf %82, %84 : vector<16x128xf32>
    %c0_46 = arith.constant 0 : index
    %c0_47 = arith.constant 0 : index
    %86 = vector.load %arg18[%c0_46, %c0_47] : memref<16x128xf32, #tpu.memory_space<vmem>>, vector<16x128xf32>
    tpu.vector_store %arg18[%c0_46, %c0_47], %85 {strides = array<i32>} : memref<16x128xf32, #tpu.memory_space<vmem>>, vector<16x128xf32>,
    return
  }
  func.func @transform_0(%arg0: i32) -> (i32, i32) {
    %c0_i32 = arith.constant 0 : i32
    %c0_i32_0 = arith.constant 0 : i32
    return %arg0, %c0_i32 : i32, i32
  }
  func.func @transform_1(%arg0: i32) -> (i32, i32) {
    %c0_i32 = arith.constant 0 : i32
    %c0_i32_0 = arith.constant 0 : i32
    return %arg0, %c0_i32 : i32, i32
  }
  func.func @transform_2(%arg0: i32) -> (i32, i32) {
    %c0_i32 = arith.constant 0 : i32
    %c0_i32_0 = arith.constant 0 : i32
    %c0_i32_1 = arith.constant 0 : i32
    return %c0_i32, %c0_i32_0 : i32, i32
  }
  func.func @transform_3(%arg0: i32) -> (i32, i32) {
    %c0_i32 = arith.constant 0 : i32
    %c0_i32_0 = arith.constant 0 : i32
    %c0_i32_1 = arith.constant 0 : i32
    return %c0_i32, %c0_i32_0 : i32, i32
  }
  func.func @transform_4(%arg0: i32) -> (i32, i32) {
    %c0_i32 = arith.constant 0 : i32
    %c0_i32_0 = arith.constant 0 : i32
    %c0_i32_1 = arith.constant 0 : i32
    return %c0_i32, %c0_i32_0 : i32, i32
  }
  func.func @transform_5(%arg0: i32) -> (i32, i32) {
    %c0_i32 = arith.constant 0 : i32
    %c0_i32_0 = arith.constant 0 : i32
    %c0_i32_1 = arith.constant 0 : i32
    return %c0_i32, %c0_i32_0 : i32, i32
  }
  func.func @transform_6(%arg0: i32) -> (i32, i32) {
    %c0_i32 = arith.constant 0 : i32
    %c0_i32_0 = arith.constant 0 : i32
    %c0_i32_1 = arith.constant 0 : i32
    return %c0_i32, %c0_i32_0 : i32, i32
  }
  func.func @transform_7(%arg0: i32) -> (i32, i32) {
    %c0_i32 = arith.constant 0 : i32
    %c0_i32_0 = arith.constant 0 : i32
    %c0_i32_1 = arith.constant 0 : i32
    return %c0_i32, %c0_i32_0 : i32, i32
  }
  func.func @transform_8(%arg0: i32) -> (i32, i32) {
    %c0_i32 = arith.constant 0 : i32
    %c0_i32_0 = arith.constant 0 : i32
    %c0_i32_1 = arith.constant 0 : i32
    return %c0_i32, %c0_i32_0 : i32, i32
  }
  func.func @transform_9(%arg0: i32) -> (i32, i32) {
    %c0_i32 = arith.constant 0 : i32
    %c0_i32_0 = arith.constant 0 : i32
    %c0_i32_1 = arith.constant 0 : i32
    return %c0_i32, %c0_i32_0 : i32, i32
  }
  func.func @transform_10(%arg0: i32) -> (i32, i32) {
    %c0_i32 = arith.constant 0 : i32
    %c0_i32_0 = arith.constant 0 : i32
    %c0_i32_1 = arith.constant 0 : i32
    return %c0_i32, %c0_i32_0 : i32, i32
  }
  func.func @transform_11(%arg0: i32) -> (i32, i32) {
    %c0_i32 = arith.constant 0 : i32
    %c0_i32_0 = arith.constant 0 : i32
    %c0_i32_1 = arith.constant 0 : i32
    return %c0_i32, %c0_i32_0 : i32, i32
  }
  func.func @transform_12(%arg0: i32) -> (i32, i32) {
    %c0_i32 = arith.constant 0 : i32
    %c0_i32_0 = arith.constant 0 : i32
    %c0_i32_1 = arith.constant 0 : i32
    return %c0_i32, %c0_i32_0 : i32, i32
  }
  func.func @transform_13(%arg0: i32) -> (i32, i32) {
    %c0_i32 = arith.constant 0 : i32
    %c0_i32_0 = arith.constant 0 : i32
    %c0_i32_1 = arith.constant 0 : i32
    return %c0_i32, %c0_i32_0 : i32, i32
  }
  func.func @transform_14(%arg0: i32) -> (i32, i32) {
    %c0_i32 = arith.constant 0 : i32
    %c0_i32_0 = arith.constant 0 : i32
    %c0_i32_1 = arith.constant 0 : i32
    return %c0_i32, %c0_i32_0 : i32, i32
  }
  func.func @transform_15(%arg0: i32) -> (i32, i32) {
    %c0_i32 = arith.constant 0 : i32
    %c0_i32_0 = arith.constant 0 : i32
    %c0_i32_1 = arith.constant 0 : i32
    return %c0_i32, %c0_i32_0 : i32, i32
  }
  func.func @transform_16(%arg0: i32) -> (i32, i32) {
    %c0_i32 = arith.constant 0 : i32
    %c0_i32_0 = arith.constant 0 : i32
    %c0_i32_1 = arith.constant 0 : i32
    return %c0_i32, %c0_i32_0 : i32, i32
  }
  func.func @transform_17(%arg0: i32) -> (i32, i32) {
    %c0_i32 = arith.constant 0 : i32
    %c0_i32_0 = arith.constant 0 : i32
    return %arg0, %c0_i32 : i32, i32
  }
}

module attributes {stable_mosaic.version = 11 : i64} {
  func.func @_critic_kernel(%arg0: i32, %arg1: memref<16x128xf32, #tpu.memory_space<vmem>>, %arg2: memref<16x8xi32, #tpu.memory_space<vmem>>, %arg3: memref<256x256xf32, #tpu.memory_space<vmem>>, %arg4: memref<1x128xf32, #tpu.memory_space<vmem>>, %arg5: memref<1x128xf32, #tpu.memory_space<vmem>>, %arg6: memref<128x128xbf16, #tpu.memory_space<vmem>>, %arg7: memref<1x128xf32, #tpu.memory_space<vmem>>, %arg8: memref<128x128xbf16, #tpu.memory_space<vmem>>, %arg9: memref<1x128xf32, #tpu.memory_space<vmem>>, %arg10: memref<128x128xbf16, #tpu.memory_space<vmem>>, %arg11: memref<1x128xf32, #tpu.memory_space<vmem>>, %arg12: memref<128x128xbf16, #tpu.memory_space<vmem>>, %arg13: memref<128x128xbf16, #tpu.memory_space<vmem>>, %arg14: memref<128x128xbf16, #tpu.memory_space<vmem>>, %arg15: memref<1x128xf32, #tpu.memory_space<vmem>>, %arg16: memref<128x128xbf16, #tpu.memory_space<vmem>>, %arg17: memref<1x128xf32, #tpu.memory_space<vmem>>, %arg18: memref<16x128xf32, #tpu.memory_space<vmem>>) attributes {dimension_semantics = [#tpu.dimension_semantics<parallel>], iteration_bounds = array<i64: 1>, scalar_prefetch = 0 : i64, scratch_operands = 0 : i64, tpu.core_type = #tpu.core_type<tc>, window_params = [{transform_indices = @transform_0, window_bounds = array<i64: 16, 128>}, {transform_indices = @transform_1, window_bounds = array<i64: 16, 8>}, {pipeline_mode = #tpu.pipeline_mode<synchronous>, transform_indices = @transform_2, window_bounds = array<i64: 256, 256>}, {pipeline_mode = #tpu.pipeline_mode<synchronous>, transform_indices = @transform_3, window_bounds = array<i64: 1, 128>}, {pipeline_mode = #tpu.pipeline_mode<synchronous>, transform_indices = @transform_4, window_bounds = array<i64: 1, 128>}, {pipeline_mode = #tpu.pipeline_mode<synchronous>, transform_indices = @transform_5, window_bounds = array<i64: 128, 128>}, {pipeline_mode = #tpu.pipeline_mode<synchronous>, transform_indices = @transform_6, window_bounds = array<i64: 1, 128>}, {pipeline_mode = #tpu.pipeline_mode<synchronous>, transform_indices = @transform_7, window_bounds = array<i64: 128, 128>}, {pipeline_mode = #tpu.pipeline_mode<synchronous>, transform_indices = @transform_8, window_bounds = array<i64: 1, 128>}, {pipeline_mode = #tpu.pipeline_mode<synchronous>, transform_indices = @transform_9, window_bounds = array<i64: 128, 128>}, {pipeline_mode = #tpu.pipeline_mode<synchronous>, transform_indices = @transform_10, window_bounds = array<i64: 1, 128>}, {pipeline_mode = #tpu.pipeline_mode<synchronous>, transform_indices = @transform_11, window_bounds = array<i64: 128, 128>}, {pipeline_mode = #tpu.pipeline_mode<synchronous>, transform_indices = @transform_12, window_bounds = array<i64: 128, 128>}, {pipeline_mode = #tpu.pipeline_mode<synchronous>, transform_indices = @transform_13, window_bounds = array<i64: 128, 128>}, {pipeline_mode = #tpu.pipeline_mode<synchronous>, transform_indices = @transform_14, window_bounds = array<i64: 1, 128>}, {pipeline_mode = #tpu.pipeline_mode<synchronous>, transform_indices = @transform_15, window_bounds = array<i64: 128, 128>}, {pipeline_mode = #tpu.pipeline_mode<synchronous>, transform_indices = @transform_16, window_bounds = array<i64: 1, 128>}, {transform_indices = @transform_17, window_bounds = array<i64: 16, 128>}]} {
    %c0 = arith.constant 0 : index
    %c0_0 = arith.constant 0 : index
    %0 = vector.load %arg1[%c0, %c0_0] : memref<16x128xf32, #tpu.memory_space<vmem>>, vector<16x128xf32>
    %1 = arith.mulf %0, %0 : vector<16x128xf32>
    %2 = tpu.concatenate %0, %1 in 1 : vector<16x128xf32>, vector<16x128xf32> -> vector<16x256xf32>
    %c0_1 = arith.constant 0 : index
    %c0_2 = arith.constant 0 : index
    %3 = vector.load %arg3[%c0_1, %c0_2] : memref<256x256xf32, #tpu.memory_space<vmem>>, vector<256x256xf32>
    %cst = arith.constant dense<0.000000e+00> : vector<16x256xf32>
    %4 = tpu.matmul %2, %3, %cst {dimension_numbers = #tpu.dot_dimension_numbers<[1], [0], [0], [1], [0, 0, 1, 1], [], []>} : vector<16x256xf32>, vector<256x256xf32>, vector<16x256xf32> -> vector<16x256xf32>
    %5 = vector.extract_strided_slice %4 {offsets = [0, 0], sizes = [16, 128], strides = [1, 1]} : vector<16x256xf32> to vector<16x128xf32>
    %6 = vector.extract_strided_slice %4 {offsets = [0, 128], sizes = [16, 128], strides = [1, 1]} : vector<16x256xf32> to vector<16x128xf32>
    %7 = arith.mulf %5, %5 : vector<16x128xf32>
    %8 = arith.subf %6, %7 : vector<16x128xf32>
    %cst_3 = arith.constant 0.000000e+00 : f32
    %9 = vector.broadcast %cst_3 : f32 to vector<16x128xf32>
    %10 = arith.maximumf %8, %9 : vector<16x128xf32>
    %11 = arith.subf %0, %5 : vector<16x128xf32>
    %cst_4 = arith.constant 9.99999974E-6 : f32
    %12 = vector.broadcast %cst_4 : f32 to vector<16x128xf32>
    %13 = arith.addf %10, %12 : vector<16x128xf32>
    %14 = math.rsqrt %13 : vector<16x128xf32>
    %15 = arith.mulf %11, %14 : vector<16x128xf32>
    %c0_5 = arith.constant 0 : index
    %c0_6 = arith.constant 0 : index
    %16 = vector.load %arg4[%c0_5, %c0_6] : memref<1x128xf32, #tpu.memory_space<vmem>>, vector<1x128xf32>
    %17 = vector.broadcast %16 : vector<1x128xf32> to vector<16x128xf32>
    %18 = arith.mulf %15, %17 : vector<16x128xf32>
    %c0_7 = arith.constant 0 : index
    %c0_8 = arith.constant 0 : index
    %19 = vector.load %arg5[%c0_7, %c0_8] : memref<1x128xf32, #tpu.memory_space<vmem>>, vector<1x128xf32>
    %20 = vector.broadcast %19 : vector<1x128xf32> to vector<16x128xf32>
    %21 = arith.addf %18, %20 : vector<16x128xf32>
    %22 = arith.truncf %21 : vector<16x128xf32> to vector<16x128xbf16>
    %c0_9 = arith.constant 0 : index
    %c0_10 = arith.constant 0 : index
    %23 = vector.load %arg6[%c0_9, %c0_10] : memref<128x128xbf16, #tpu.memory_space<vmem>>, vector<128x128xbf16>
    %cst_11 = arith.constant dense<0.000000e+00> : vector<16x128xf32>
    %24 = tpu.matmul %22, %23, %cst_11 {dimension_numbers = #tpu.dot_dimension_numbers<[1], [0], [0], [1], [0, 0, 1, 1], [], []>} : vector<16x128xbf16>, vector<128x128xbf16>, vector<16x128xf32> -> vector<16x128xf32>
    %c0_12 = arith.constant 0 : index
    %c0_13 = arith.constant 0 : index
    %25 = vector.load %arg7[%c0_12, %c0_13] : memref<1x128xf32, #tpu.memory_space<vmem>>, vector<1x128xf32>
    %26 = vector.broadcast %25 : vector<1x128xf32> to vector<16x128xf32>
    %27 = arith.addf %24, %26 : vector<16x128xf32>
    %cst_14 = arith.constant 0.000000e+00 : f32
    %28 = vector.broadcast %cst_14 : f32 to vector<16x128xf32>
    %29 = arith.maximumf %27, %28 : vector<16x128xf32>
    %30 = arith.truncf %29 : vector<16x128xf32> to vector<16x128xbf16>
    %c0_15 = arith.constant 0 : index
    %c0_16 = arith.constant 0 : index
    %31 = vector.load %arg8[%c0_15, %c0_16] : memref<128x128xbf16, #tpu.memory_space<vmem>>, vector<128x128xbf16>
    %cst_17 = arith.constant dense<0.000000e+00> : vector<16x128xf32>
    %32 = tpu.matmul %30, %31, %cst_17 {dimension_numbers = #tpu.dot_dimension_numbers<[1], [0], [0], [1], [0, 0, 1, 1], [], []>} : vector<16x128xbf16>, vector<128x128xbf16>, vector<16x128xf32> -> vector<16x128xf32>
    %c0_18 = arith.constant 0 : index
    %c0_19 = arith.constant 0 : index
    %33 = vector.load %arg9[%c0_18, %c0_19] : memref<1x128xf32, #tpu.memory_space<vmem>>, vector<1x128xf32>
    %34 = vector.broadcast %33 : vector<1x128xf32> to vector<16x128xf32>
    %35 = arith.addf %32, %34 : vector<16x128xf32>
    %cst_20 = arith.constant 0.000000e+00 : f32
    %36 = vector.broadcast %cst_20 : f32 to vector<16x128xf32>
    %37 = arith.maximumf %35, %36 : vector<16x128xf32>
    %38 = arith.truncf %37 : vector<16x128xf32> to vector<16x128xbf16>
    %c0_21 = arith.constant 0 : index
    %c0_22 = arith.constant 0 : index
    %39 = vector.load %arg10[%c0_21, %c0_22] : memref<128x128xbf16, #tpu.memory_space<vmem>>, vector<128x128xbf16>
    %cst_23 = arith.constant dense<0.000000e+00> : vector<16x128xf32>
    %40 = tpu.matmul %38, %39, %cst_23 {dimension_numbers = #tpu.dot_dimension_numbers<[1], [0], [0], [1], [0, 0, 1, 1], [], []>} : vector<16x128xbf16>, vector<128x128xbf16>, vector<16x128xf32> -> vector<16x128xf32>
    %c0_24 = arith.constant 0 : index
    %c0_25 = arith.constant 0 : index
    %41 = vector.load %arg11[%c0_24, %c0_25] : memref<1x128xf32, #tpu.memory_space<vmem>>, vector<1x128xf32>
    %42 = vector.broadcast %41 : vector<1x128xf32> to vector<16x128xf32>
    %43 = arith.addf %40, %42 : vector<16x128xf32>
    %cst_26 = arith.constant 0.000000e+00 : f32
    %44 = vector.broadcast %cst_26 : f32 to vector<16x128xf32>
    %45 = arith.maximumf %43, %44 : vector<16x128xf32>
    %46 = arith.truncf %45 : vector<16x128xf32> to vector<16x128xbf16>
    %c0_27 = arith.constant 0 : index
    %c0_28 = arith.constant 0 : index
    %47 = vector.load %arg2[%c0_27, %c0_28] : memref<16x8xi32, #tpu.memory_space<vmem>>, vector<16x8xi32>
    %48 = tpu.iota {dimensions = array<i32: 1>} : vector<16x128xi32>
    %49 = vector.extract_strided_slice %47 {offsets = [0, 0], sizes = [16, 1], strides = [1, 1]} : vector<16x8xi32> to vector<16x1xi32>
    %50 = vector.broadcast %49 : vector<16x1xi32> to vector<16x128xi32>
    %51 = arith.cmpi eq, %48, %50 : vector<16x128xi32>
    %52 = vector.extract_strided_slice %47 {offsets = [0, 1], sizes = [16, 1], strides = [1, 1]} : vector<16x8xi32> to vector<16x1xi32>
    %53 = vector.broadcast %52 : vector<16x1xi32> to vector<16x128xi32>
    %54 = arith.cmpi eq, %48, %53 : vector<16x128xi32>
    %55 = arith.ori %51, %54 : vector<16x128xi1>
    %56 = vector.extract_strided_slice %47 {offsets = [0, 2], sizes = [16, 1], strides = [1, 1]} : vector<16x8xi32> to vector<16x1xi32>
    %57 = vector.broadcast %56 : vector<16x1xi32> to vector<16x128xi32>
    %58 = arith.cmpi eq, %48, %57 : vector<16x128xi32>
    %59 = arith.ori %55, %58 : vector<16x128xi1>
    %60 = vector.extract_strided_slice %47 {offsets = [0, 3], sizes = [16, 1], strides = [1, 1]} : vector<16x8xi32> to vector<16x1xi32>
    %61 = vector.broadcast %60 : vector<16x1xi32> to vector<16x128xi32>
    %62 = arith.cmpi eq, %48, %61 : vector<16x128xi32>
    %63 = arith.ori %59, %62 : vector<16x128xi1>
    %64 = arith.extui %63 : vector<16x128xi1> to vector<16x128xi32>
    %65 = arith.sitofp %64 : vector<16x128xi32> to vector<16x128xf32>
    %66 = arith.truncf %65 : vector<16x128xf32> to vector<16x128xbf16>
    %c0_29 = arith.constant 0 : index
    %c0_30 = arith.constant 0 : index
    %67 = vector.load %arg12[%c0_29, %c0_30] : memref<128x128xbf16, #tpu.memory_space<vmem>>, vector<128x128xbf16>
    %cst_31 = arith.constant dense<0.000000e+00> : vector<16x128xf32>
    %68 = tpu.matmul %46, %67, %cst_31 {dimension_numbers = #tpu.dot_dimension_numbers<[1], [0], [0], [1], [0, 0, 1, 1], [], []>} : vector<16x128xbf16>, vector<128x128xbf16>, vector<16x128xf32> -> vector<16x128xf32>
    %c0_32 = arith.constant 0 : index
    %c0_33 = arith.constant 0 : index
    %69 = vector.load %arg13[%c0_32, %c0_33] : memref<128x128xbf16, #tpu.memory_space<vmem>>, vector<128x128xbf16>
    %cst_34 = arith.constant dense<0.000000e+00> : vector<16x128xf32>
    %70 = tpu.matmul %66, %69, %cst_34 {dimension_numbers = #tpu.dot_dimension_numbers<[1], [0], [0], [1], [0, 0, 1, 1], [], []>} : vector<16x128xbf16>, vector<128x128xbf16>, vector<16x128xf32> -> vector<16x128xf32>
    %71 = arith.addf %68, %70 : vector<16x128xf32>
    %c0_35 = arith.constant 0 : index
    %c0_36 = arith.constant 0 : index
    %72 = vector.load %arg14[%c0_35, %c0_36] : memref<128x128xbf16, #tpu.memory_space<vmem>>, vector<128x128xbf16>
    %cst_37 = arith.constant dense<0.000000e+00> : vector<16x128xf32>
    %73 = tpu.matmul %22, %72, %cst_37 {dimension_numbers = #tpu.dot_dimension_numbers<[1], [0], [0], [1], [0, 0, 1, 1], [], []>} : vector<16x128xbf16>, vector<128x128xbf16>, vector<16x128xf32> -> vector<16x128xf32>
    %74 = arith.addf %71, %73 : vector<16x128xf32>
    %c0_38 = arith.constant 0 : index
    %c0_39 = arith.constant 0 : index
    %75 = vector.load %arg15[%c0_38, %c0_39] : memref<1x128xf32, #tpu.memory_space<vmem>>, vector<1x128xf32>
    %76 = vector.broadcast %75 : vector<1x128xf32> to vector<16x128xf32>
    %77 = arith.addf %74, %76 : vector<16x128xf32>
    %cst_40 = arith.constant 0.000000e+00 : f32
    %78 = vector.broadcast %cst_40 : f32 to vector<16x128xf32>
    %79 = arith.maximumf %77, %78 : vector<16x128xf32>
    %80 = arith.truncf %79 : vector<16x128xf32> to vector<16x128xbf16>
    %c0_41 = arith.constant 0 : index
    %c0_42 = arith.constant 0 : index
    %81 = vector.load %arg16[%c0_41, %c0_42] : memref<128x128xbf16, #tpu.memory_space<vmem>>, vector<128x128xbf16>
    %cst_43 = arith.constant dense<0.000000e+00> : vector<16x128xf32>
    %82 = tpu.matmul %80, %81, %cst_43 {dimension_numbers = #tpu.dot_dimension_numbers<[1], [0], [0], [1], [0, 0, 1, 1], [], []>} : vector<16x128xbf16>, vector<128x128xbf16>, vector<16x128xf32> -> vector<16x128xf32>
    %c0_44 = arith.constant 0 : index
    %c0_45 = arith.constant 0 : index
    %83 = vector.load %arg17[%c0_44, %c0_45] : memref<1x128xf32, #tpu.memory_space<vmem>>, vector<1x128xf32>
    %84 = vector.broadcast %83 : vector<1x128xf32> to vector<16x128xf32>
    %85 = arith.addf %82, %84 : vector<16x128xf32>
    %c0_46 = arith.constant 0 : index
    %c0_47 = arith.constant 0 : index
    %86 = vector.load %arg18[%c0_46, %c0_47] : memref<16x128xf32, #tpu.memory_space<vmem>>, vector<16x128xf32>
    tpu.vector_store %arg18[%c0_46, %c0_47], %85 {strides = array<i32>} : memref<16x128xf32, #tpu.memory_space<vmem>>, vector<16x128xf32>,
    return
  }
  func.func @transform_0(%arg0: i32) -> (i32, i32) {
    %c0_i32 = arith.constant 0 : i32
    %c0_i32_0 = arith.constant 0 : i32
    return %arg0, %c0_i32 : i32, i32
  }
  func.func @transform_1(%arg0: i32) -> (i32, i32) {
    %c0_i32 = arith.constant 0 : i32
    %c0_i32_0 = arith.constant 0 : i32
    return %arg0, %c0_i32 : i32, i32
  }
  func.func @transform_2(%arg0: i32) -> (i32, i32) {
    %c0_i32 = arith.constant 0 : i32
    %c0_i32_0 = arith.constant 0 : i32
    %c0_i32_1 = arith.constant 0 : i32
    return %c0_i32, %c0_i32_0 : i32, i32
  }
  func.func @transform_3(%arg0: i32) -> (i32, i32) {
    %c0_i32 = arith.constant 0 : i32
    %c0_i32_0 = arith.constant 0 : i32
    %c0_i32_1 = arith.constant 0 : i32
    return %c0_i32, %c0_i32_0 : i32, i32
  }
  func.func @transform_4(%arg0: i32) -> (i32, i32) {
    %c0_i32 = arith.constant 0 : i32
    %c0_i32_0 = arith.constant 0 : i32
    %c0_i32_1 = arith.constant 0 : i32
    return %c0_i32, %c0_i32_0 : i32, i32
  }
  func.func @transform_5(%arg0: i32) -> (i32, i32) {
    %c0_i32 = arith.constant 0 : i32
    %c0_i32_0 = arith.constant 0 : i32
    %c0_i32_1 = arith.constant 0 : i32
    return %c0_i32, %c0_i32_0 : i32, i32
  }
  func.func @transform_6(%arg0: i32) -> (i32, i32) {
    %c0_i32 = arith.constant 0 : i32
    %c0_i32_0 = arith.constant 0 : i32
    %c0_i32_1 = arith.constant 0 : i32
    return %c0_i32, %c0_i32_0 : i32, i32
  }
  func.func @transform_7(%arg0: i32) -> (i32, i32) {
    %c0_i32 = arith.constant 0 : i32
    %c0_i32_0 = arith.constant 0 : i32
    %c0_i32_1 = arith.constant 0 : i32
    return %c0_i32, %c0_i32_0 : i32, i32
  }
  func.func @transform_8(%arg0: i32) -> (i32, i32) {
    %c0_i32 = arith.constant 0 : i32
    %c0_i32_0 = arith.constant 0 : i32
    %c0_i32_1 = arith.constant 0 : i32
    return %c0_i32, %c0_i32_0 : i32, i32
  }
  func.func @transform_9(%arg0: i32) -> (i32, i32) {
    %c0_i32 = arith.constant 0 : i32
    %c0_i32_0 = arith.constant 0 : i32
    %c0_i32_1 = arith.constant 0 : i32
    return %c0_i32, %c0_i32_0 : i32, i32
  }
  func.func @transform_10(%arg0: i32) -> (i32, i32) {
    %c0_i32 = arith.constant 0 : i32
    %c0_i32_0 = arith.constant 0 : i32
    %c0_i32_1 = arith.constant 0 : i32
    return %c0_i32, %c0_i32_0 : i32, i32
  }
  func.func @transform_11(%arg0: i32) -> (i32, i32) {
    %c0_i32 = arith.constant 0 : i32
    %c0_i32_0 = arith.constant 0 : i32
    %c0_i32_1 = arith.constant 0 : i32
    return %c0_i32, %c0_i32_0 : i32, i32
  }
  func.func @transform_12(%arg0: i32) -> (i32, i32) {
    %c0_i32 = arith.constant 0 : i32
    %c0_i32_0 = arith.constant 0 : i32
    %c0_i32_1 = arith.constant 0 : i32
    return %c0_i32, %c0_i32_0 : i32, i32
  }
  func.func @transform_13(%arg0: i32) -> (i32, i32) {
    %c0_i32 = arith.constant 0 : i32
    %c0_i32_0 = arith.constant 0 : i32
    %c0_i32_1 = arith.constant 0 : i32
    return %c0_i32, %c0_i32_0 : i32, i32
  }
  func.func @transform_14(%arg0: i32) -> (i32, i32) {
    %c0_i32 = arith.constant 0 : i32
    %c0_i32_0 = arith.constant 0 : i32
    %c0_i32_1 = arith.constant 0 : i32
    return %c0_i32, %c0_i32_0 : i32, i32
  }
  func.func @transform_15(%arg0: i32) -> (i32, i32) {
    %c0_i32 = arith.constant 0 : i32
    %c0_i32_0 = arith.constant 0 : i32
    %c0_i32_1 = arith.constant 0 : i32
    return %c0_i32, %c0_i32_0 : i32, i32
  }
  func.func @transform_16(%arg0: i32) -> (i32, i32) {
    %c0_i32 = arith.constant 0 : i32
    %c0_i32_0 = arith.constant 0 : i32
    %c0_i32_1 = arith.constant 0 : i32
    return %c0_i32, %c0_i32_0 : i32, i32
  }
  func.func @transform_17(%arg0: i32) -> (i32, i32) {
    %c0_i32 = arith.constant 0 : i32
    %c0_i32_0 = arith.constant 0 : i32
    return %arg0, %c0_i32 : i32, i32
  }
}

</mosaic_0001>

<llo_original>
// kernel: tpu_custom_call.1
$region0: #{tpu_custom_call.1}
  #allocation0 [shape = 'u32[]', space=smem, size = 0x4, offset = 0x4, fixed_abs, tag = 'smem constant byte address 0x4 - core index']
  #allocation1 [shape = 'u32[144,128]{1,0:T(1,128)}', space=vmem, size = 0x12000, scoped, tag = 'internal scratch']
  %s0 = inlined_call_operand.hbm [shape: f32[16,128], index: 0, kind: input, shape index: {}]
  %s1 = inlined_call_operand.vmem [shape: s32[16,8], index: 1, kind: input, shape index: {}]
  %s2 = inlined_call_operand.hbm [shape: f32[256,256], index: 2, kind: input, shape index: {}]
  %s3 = inlined_call_operand.vmem [shape: f32[1,128], index: 3, kind: input, shape index: {}]
  %s4 = inlined_call_operand.hbm [shape: f32[1,128], index: 4, kind: input, shape index: {}]
  %s5 = inlined_call_operand.hbm [shape: bf16[128,128], index: 5, kind: input, shape index: {}]
  %s6 = inlined_call_operand.hbm [shape: f32[1,128], index: 6, kind: input, shape index: {}]
  %s7 = inlined_call_operand.hbm [shape: bf16[128,128], index: 7, kind: input, shape index: {}]
  %s8 = inlined_call_operand.hbm [shape: f32[1,128], index: 8, kind: input, shape index: {}]
  %s9 = inlined_call_operand.hbm [shape: bf16[128,128], index: 9, kind: input, shape index: {}]
  %s10 = inlined_call_operand.hbm [shape: f32[1,128], index: 10, kind: input, shape index: {}]
  %s11 = inlined_call_operand.vmem [shape: bf16[128,128], index: 11, kind: input, shape index: {}]
  %s12 = inlined_call_operand.hbm [shape: bf16[128,128], index: 12, kind: input, shape index: {}]
  %s13 = inlined_call_operand.hbm [shape: bf16[128,128], index: 13, kind: input, shape index: {}]
  %s14 = inlined_call_operand.vmem [shape: f32[1,128], index: 14, kind: input, shape index: {}]
  %s15 = inlined_call_operand.hbm [shape: bf16[128,128], index: 15, kind: input, shape index: {}]
  %s16 = inlined_call_operand.vmem [shape: f32[1,128], index: 16, kind: input, shape index: {}]
  %s17 = inlined_call_operand.hbm [shape: f32[16,128], index: 17, kind: output, shape index: {}]
  %s18 = sld [smem:[#allocation0]]
  $region126: #{tpu_custom_call.1} parent=0
    _
  %s20 = ssub.s32 1, %s18
  %s21 = scalar_select 0, %s20, %s18
  $region1: #{tpu_custom_call.1} parent=0
    #allocation2 [shape = 'u8[8192]{0}', space=vmem, size = 0x2000, scoped, tag = 'input window, operand 0, single buffered']
    #allocation3 [shape = 's32[1]{0}', space=sflag, size = 0x4, scoped, tag = 'scoped memory for tpu_custom_call.1']
    #allocation4 [shape = 's32[1]{0}', space=sflag, size = 0x4, scoped, tag = 'scoped memory for tpu_custom_call.1']
    #allocation5 [shape = 'u8[262144]{0}', space=vmem, size = 0x40000, scoped, tag = 'input window, operand 2, single buffered']
    #allocation6 [shape = 's32[1]{0}', space=sflag, size = 0x4, scoped, tag = 'scoped memory for tpu_custom_call.1']
    #allocation7 [shape = 'u8[512]{0}', space=vmem, size = 0x400, scoped, tag = 'input window, operand 4, single buffered']
    #allocation8 [shape = 'u8[32768]{0}', space=vmem, size = 0x8000, scoped, tag = 'input window, operand 5, single buffered']
    #allocation9 [shape = 's32[1]{0}', space=sflag, size = 0x4, scoped, tag = 'scoped memory for tpu_custom_call.1']
    #allocation10 [shape = 'u8[512]{0}', space=vmem, size = 0x400, scoped, tag = 'input window, operand 6, single buffered']
    #allocation11 [shape = 'u8[32768]{0}', space=vmem, size = 0x8000, scoped, tag = 'input window, operand 7, single buffered']
    #allocation12 [shape = 's32[1]{0}', space=sflag, size = 0x4, scoped, tag = 'scoped memory for tpu_custom_call.1']
    #allocation13 [shape = 'u8[512]{0}', space=vmem, size = 0x400, scoped, tag = 'input window, operand 8, single buffered']
    #allocation14 [shape = 'u8[32768]{0}', space=vmem, size = 0x8000, scoped, tag = 'input window, operand 9, single buffered']
    #allocation15 [shape = 's32[1]{0}', space=sflag, size = 0x4, scoped, tag = 'scoped memory for tpu_custom_call.1']
    #allocation16 [shape = 'u8[512]{0}', space=vmem, size = 0x400, scoped, tag = 'input window, operand 10, single buffered']
    #allocation17 [shape = 'u8[32768]{0}', space=vmem, size = 0x8000, scoped, tag = 'input window, operand 12, single buffered']
    #allocation18 [shape = 's32[1]{0}', space=sflag, size = 0x4, scoped, tag = 'scoped memory for tpu_custom_call.1']
    #allocation19 [shape = 'u8[32768]{0}', space=vmem, size = 0x8000, scoped, tag = 'input window, operand 13, single buffered']
    #allocation20 [shape = 'u8[32768]{0}', space=vmem, size = 0x8000, scoped, tag = 'input window, operand 15, single buffered']
    #allocation21 [shape = 's32[1]{0}', space=sflag, size = 0x4, scoped, tag = 'scoped memory for tpu_custom_call.1']
    #allocation22 [shape = 'u8[8192]{0}', space=vmem, size = 0x2000, scoped, tag = 'output window, operand 0, single buffered']
    %22 = vsyncpa [#allocation3], 0
    %23 = vsyncpa [#allocation6], 0
    %24 = vsyncpa [#allocation9], 0
    %25 = vsyncpa [#allocation12], 0
    %26 = vsyncpa [#allocation15], 0
    %27 = vsyncpa [#allocation18], 0
    %28 = vsyncpa [#allocation21], 0
    %29 = vsyncpa [#allocation4], 0
    // Predicated region
    $region2: #{tpu_custom_call.1} parent=1 // pred_check
      _
    $region3: #{tpu_custom_call.1} parent=1 // pred_check_branch
      %31 = sbr.rel (0) target = $region5
    $region4: #{tpu_custom_call.1} parent=1 // pred_region
      %s33 = ssub.s32 256, 256
      %34 = vsyncadd [#allocation3], %s33
      %s35 = sshll.u32 [#allocation2], 4
      %s36 = int_to_ptr.vmem [resolvable:$true] %s35
      %41 = dma.hbm_to_vmem [thread:$0]  %s0, 256, %s36, [#allocation3], 128, 128, 8
    $region5: #{tpu_custom_call.1} parent=1 // pred_fallthru
      _
    // Predicated region
    $region6: #{tpu_custom_call.1} parent=1 // pred_check
      _
    $region7: #{tpu_custom_call.1} parent=1 // pred_check_branch
      %43 = sbr.rel (0) target = $region9
    $region8: #{tpu_custom_call.1} parent=1 // pred_region
      _
    $region9: #{tpu_custom_call.1} parent=1 // pred_fallthru
      _
    // Predicated region
    $region10: #{tpu_custom_call.1} parent=1 // pred_check
      _
    $region11: #{tpu_custom_call.1} parent=1 // pred_check_branch
      %45 = sbr.rel (0) target = $region13
    $region12: #{tpu_custom_call.1} parent=1 // pred_region
      %s47 = ssub.s32 8192, 8192
      %48 = vsyncadd [#allocation6], %s47
      %s49 = sshll.u32 [#allocation5], 4
      %s50 = int_to_ptr.vmem [resolvable:$true] %s49
      %55 = dma.hbm_to_vmem [thread:$0]  %s2, 8192, %s50, [#allocation6], 256, 256, 16
    $region13: #{tpu_custom_call.1} parent=1 // pred_fallthru
      _
    // Predicated region
    $region14: #{tpu_custom_call.1} parent=1 // pred_check
      _
    $region15: #{tpu_custom_call.1} parent=1 // pred_check_branch
      %57 = sbr.rel (0) target = $region17
    $region16: #{tpu_custom_call.1} parent=1 // pred_region
      _
    $region17: #{tpu_custom_call.1} parent=1 // pred_fallthru
      _
    // Predicated region
    $region18: #{tpu_custom_call.1} parent=1 // pred_check
      _
    $region19: #{tpu_custom_call.1} parent=1 // pred_check_branch
      %59 = sbr.rel (0) target = $region21
    $region20: #{tpu_custom_call.1} parent=1 // pred_region
      %s61 = ssub.s32 16, 16
      %62 = vsyncadd [#allocation6], %s61
      %s64 = sshll.u32 [#allocation7], 4
      %s65 = int_to_ptr.vmem [resolvable:$true] %s64
      %67 = dma.hbm_to_vmem [thread:$0]  %s4, 16, %s65, [#allocation6]
    $region21: #{tpu_custom_call.1} parent=1 // pred_fallthru
      _
    // Predicated region
    $region22: #{tpu_custom_call.1} parent=1 // pred_check
      _
    $region23: #{tpu_custom_call.1} parent=1 // pred_check_branch
      %69 = sbr.rel (0) target = $region25
    $region24: #{tpu_custom_call.1} parent=1 // pred_region
      %s71 = ssub.s32 1024, 1024
      %72 = vsyncadd [#allocation9], %s71
      %s73 = sshll.u32 [#allocation8], 4
      %s74 = int_to_ptr.vmem [resolvable:$true] %s73
      %79 = dma.hbm_to_vmem [thread:$0]  %s5, 1024, %s74, [#allocation9], 64, 64, 4
    $region25: #{tpu_custom_call.1} parent=1 // pred_fallthru
      _
    // Predicated region
    $region26: #{tpu_custom_call.1} parent=1 // pred_check
      _
    $region27: #{tpu_custom_call.1} parent=1 // pred_check_branch
      %81 = sbr.rel (0) target = $region29
    $region28: #{tpu_custom_call.1} parent=1 // pred_region
      %s83 = ssub.s32 16, 16
      %84 = vsyncadd [#allocation9], %s83
      %s86 = sshll.u32 [#allocation10], 4
      %s87 = int_to_ptr.vmem [resolvable:$true] %s86
      %89 = dma.hbm_to_vmem [thread:$0]  %s6, 16, %s87, [#allocation9]
    $region29: #{tpu_custom_call.1} parent=1 // pred_fallthru
      _
    // Predicated region
    $region30: #{tpu_custom_call.1} parent=1 // pred_check
      _
    $region31: #{tpu_custom_call.1} parent=1 // pred_check_branch
      %91 = sbr.rel (0) target = $region33
    $region32: #{tpu_custom_call.1} parent=1 // pred_region
      %s93 = ssub.s32 1024, 1024
      %94 = vsyncadd [#allocation12], %s93
      %s95 = sshll.u32 [#allocation11], 4
      %s96 = int_to_ptr.vmem [resolvable:$true] %s95
      %101 = dma.hbm_to_vmem [thread:$0]  %s7, 1024, %s96, [#allocation12], 64, 64, 4
    $region33: #{tpu_custom_call.1} parent=1 // pred_fallthru
      _
    // Predicated region
    $region34: #{tpu_custom_call.1} parent=1 // pred_check
      _
    $region35: #{tpu_custom_call.1} parent=1 // pred_check_branch
      %103 = sbr.rel (0) target = $region37
    $region36: #{tpu_custom_call.1} parent=1 // pred_region
      %s105 = ssub.s32 16, 16
      %106 = vsyncadd [#allocation12], %s105
      %s108 = sshll.u32 [#allocation13], 4
      %s109 = int_to_ptr.vmem [resolvable:$true] %s108
      %111 = dma.hbm_to_vmem [thread:$0]  %s8, 16, %s109, [#allocation12]
    $region37: #{tpu_custom_call.1} parent=1 // pred_fallthru
      _
    // Predicated region
    $region38: #{tpu_custom_call.1} parent=1 // pred_check
      _
    $region39: #{tpu_custom_call.1} parent=1 // pred_check_branch
      %113 = sbr.rel (0) target = $region41
    $region40: #{tpu_custom_call.1} parent=1 // pred_region
      %s115 = ssub.s32 1024, 1024
      %116 = vsyncadd [#allocation15], %s115
      %s117 = sshll.u32 [#allocation14], 4
      %s118 = int_to_ptr.vmem [resolvable:$true] %s117
      %123 = dma.hbm_to_vmem [thread:$0]  %s9, 1024, %s118, [#allocation15], 64, 64, 4
    $region41: #{tpu_custom_call.1} parent=1 // pred_fallthru
      _
    // Predicated region
    $region42: #{tpu_custom_call.1} parent=1 // pred_check
      _
    $region43: #{tpu_custom_call.1} parent=1 // pred_check_branch
      %125 = sbr.rel (0) target = $region45
    $region44: #{tpu_custom_call.1} parent=1 // pred_region
      %s127 = ssub.s32 16, 16
      %128 = vsyncadd [#allocation15], %s127
      %s130 = sshll.u32 [#allocation16], 4
      %s131 = int_to_ptr.vmem [resolvable:$true] %s130
      %133 = dma.hbm_to_vmem [thread:$0]  %s10, 16, %s131, [#allocation15]
    $region45: #{tpu_custom_call.1} parent=1 // pred_fallthru
      _
    // Predicated region
    $region46: #{tpu_custom_call.1} parent=1 // pred_check
      _
    $region47: #{tpu_custom_call.1} parent=1 // pred_check_branch
      %135 = sbr.rel (0) target = $region49
    $region48: #{tpu_custom_call.1} parent=1 // pred_region
      _
    $region49: #{tpu_custom_call.1} parent=1 // pred_fallthru
      _
    // Predicated region
    $region50: #{tpu_custom_call.1} parent=1 // pred_check
      _
    $region51: #{tpu_custom_call.1} parent=1 // pred_check_branch
      %137 = sbr.rel (0) target = $region53
    $region52: #{tpu_custom_call.1} parent=1 // pred_region
      %s139 = ssub.s32 1024, 1024
      %140 = vsyncadd [#allocation18], %s139
      %s141 = sshll.u32 [#allocation17], 4
      %s142 = int_to_ptr.vmem [resolvable:$true] %s141
      %147 = dma.hbm_to_vmem [thread:$0]  %s12, 1024, %s142, [#allocation18], 64, 64, 4
    $region53: #{tpu_custom_call.1} parent=1 // pred_fallthru
      _
    // Predicated region
    $region54: #{tpu_custom_call.1} parent=1 // pred_check
      _
    $region55: #{tpu_custom_call.1} parent=1 // pred_check_branch
      %149 = sbr.rel (0) target = $region57
    $region56: #{tpu_custom_call.1} parent=1 // pred_region
      %s151 = ssub.s32 1024, 1024
      %152 = vsyncadd [#allocation18], %s151
      %s153 = sshll.u32 [#allocation19], 4
      %s154 = int_to_ptr.vmem [resolvable:$true] %s153
      %159 = dma.hbm_to_vmem [thread:$0]  %s13, 1024, %s154, [#allocation18], 64, 64, 4
    $region57: #{tpu_custom_call.1} parent=1 // pred_fallthru
      _
    // Predicated region
    $region58: #{tpu_custom_call.1} parent=1 // pred_check
      _
    $region59: #{tpu_custom_call.1} parent=1 // pred_check_branch
      %161 = sbr.rel (0) target = $region61
    $region60: #{tpu_custom_call.1} parent=1 // pred_region
      _
    $region61: #{tpu_custom_call.1} parent=1 // pred_fallthru
      _
    // Predicated region
    $region62: #{tpu_custom_call.1} parent=1 // pred_check
      _
    $region63: #{tpu_custom_call.1} parent=1 // pred_check_branch
      %163 = sbr.rel (0) target = $region65
    $region64: #{tpu_custom_call.1} parent=1 // pred_region
      %s165 = ssub.s32 1024, 1024
      %166 = vsyncadd [#allocation21], %s165
      %s167 = sshll.u32 [#allocation20], 4
      %s168 = int_to_ptr.vmem [resolvable:$true] %s167
      %173 = dma.hbm_to_vmem [thread:$0]  %s15, 1024, %s168, [#allocation21], 64, 64, 4
    $region65: #{tpu_custom_call.1} parent=1 // pred_fallthru
      _
    // Predicated region
    $region66: #{tpu_custom_call.1} parent=1 // pred_check
      _
    $region67: #{tpu_custom_call.1} parent=1 // pred_check_branch
      %175 = sbr.rel (0) target = $region69
    $region68: #{tpu_custom_call.1} parent=1 // pred_region
      _
    $region69: #{tpu_custom_call.1} parent=1 // pred_fallthru
      _
    // Predicated region
    $region70: #{tpu_custom_call.1} parent=1 // pred_check
      _
    $region71: #{tpu_custom_call.1} parent=1 // pred_check_branch
      %177 = sbr.rel (0) target = $region73
    $region72: #{tpu_custom_call.1} parent=1 // pred_region
      %178 = dma.done [#allocation3], 256
    $region73: #{tpu_custom_call.1} parent=1 // pred_fallthru
      _
    // Predicated region
    $region74: #{tpu_custom_call.1} parent=1 // pred_check
      _
    $region75: #{tpu_custom_call.1} parent=1 // pred_check_branch
      %180 = sbr.rel (0) target = $region77
    $region76: #{tpu_custom_call.1} parent=1 // pred_region
      %181 = dma.done [#allocation6], 8192
    $region77: #{tpu_custom_call.1} parent=1 // pred_fallthru
      _
    // Predicated region
    $region78: #{tpu_custom_call.1} parent=1 // pred_check
      _
    $region79: #{tpu_custom_call.1} parent=1 // pred_check_branch
      %183 = sbr.rel (0) target = $region81
    $region80: #{tpu_custom_call.1} parent=1 // pred_region
      %184 = dma.done [#allocation6], 16
    $region81: #{tpu_custom_call.1} parent=1 // pred_fallthru
      _
    // Predicated region
    $region82: #{tpu_custom_call.1} parent=1 // pred_check
      _
    $region83: #{tpu_custom_call.1} parent=1 // pred_check_branch
      %186 = sbr.rel (0) target = $region85
    $region84: #{tpu_custom_call.1} parent=1 // pred_region
      %187 = dma.done [#allocation9], 1024
    $region85: #{tpu_custom_call.1} parent=1 // pred_fallthru
      _
    // Predicated region
    $region86: #{tpu_custom_call.1} parent=1 // pred_check
      _
    $region87: #{tpu_custom_call.1} parent=1 // pred_check_branch
      %189 = sbr.rel (0) target = $region89
    $region88: #{tpu_custom_call.1} parent=1 // pred_region
      %190 = dma.done [#allocation9], 16
    $region89: #{tpu_custom_call.1} parent=1 // pred_fallthru
      _
    // Predicated region
    $region90: #{tpu_custom_call.1} parent=1 // pred_check
      _
    $region91: #{tpu_custom_call.1} parent=1 // pred_check_branch
      %192 = sbr.rel (0) target = $region93
    $region92: #{tpu_custom_call.1} parent=1 // pred_region
      %193 = dma.done [#allocation12], 1024
    $region93: #{tpu_custom_call.1} parent=1 // pred_fallthru
      _
    // Predicated region
    $region94: #{tpu_custom_call.1} parent=1 // pred_check
      _
    $region95: #{tpu_custom_call.1} parent=1 // pred_check_branch
      %195 = sbr.rel (0) target = $region97
    $region96: #{tpu_custom_call.1} parent=1 // pred_region
      %196 = dma.done [#allocation12], 16
    $region97: #{tpu_custom_call.1} parent=1 // pred_fallthru
      _
    // Predicated region
    $region98: #{tpu_custom_call.1} parent=1 // pred_check
      _
    $region99: #{tpu_custom_call.1} parent=1 // pred_check_branch
      %198 = sbr.rel (0) target = $region101
    $region100: #{tpu_custom_call.1} parent=1 // pred_region
      %199 = dma.done [#allocation15], 1024
    $region101: #{tpu_custom_call.1} parent=1 // pred_fallthru
      _
    // Predicated region
    $region102: #{tpu_custom_call.1} parent=1 // pred_check
      _
    $region103: #{tpu_custom_call.1} parent=1 // pred_check_branch
      %201 = sbr.rel (0) target = $region105
    $region104: #{tpu_custom_call.1} parent=1 // pred_region
      %202 = dma.done [#allocation15], 16
    $region105: #{tpu_custom_call.1} parent=1 // pred_fallthru
      _
    // Predicated region
    $region106: #{tpu_custom_call.1} parent=1 // pred_check
      _
    $region107: #{tpu_custom_call.1} parent=1 // pred_check_branch
      %204 = sbr.rel (0) target = $region109
    $region108: #{tpu_custom_call.1} parent=1 // pred_region
      %205 = dma.done [#allocation18], 1024
    $region109: #{tpu_custom_call.1} parent=1 // pred_fallthru
      _
    // Predicated region
    $region110: #{tpu_custom_call.1} parent=1 // pred_check
      _
    $region111: #{tpu_custom_call.1} parent=1 // pred_check_branch
      %207 = sbr.rel (0) target = $region113
    $region112: #{tpu_custom_call.1} parent=1 // pred_region
      %208 = dma.done [#allocation18], 1024
    $region113: #{tpu_custom_call.1} parent=1 // pred_fallthru
      _
    // Predicated region
    $region114: #{tpu_custom_call.1} parent=1 // pred_check
      _
    $region115: #{tpu_custom_call.1} parent=1 // pred_check_branch
      %210 = sbr.rel (0) target = $region117
    $region116: #{tpu_custom_call.1} parent=1 // pred_region
      %211 = dma.done [#allocation21], 1024
    $region117: #{tpu_custom_call.1} parent=1 // pred_fallthru
      _
    %v213 = vld [vmem:[#allocation2] sm:$0xff]
    %v214 = vld [vmem:[#allocation2 + $0x8] sm:$0xff]
    %v215 = vmul.f32 %v213, %v213
    %v216 = vmul.f32 %v214, %v214
    %v217 = vld [vmem:[#allocation5] sm:$0xff]
    %v218 = vld [vmem:[#allocation5 + $0x8] sm:$0xff]
    %v219 = vld [vmem:[#allocation5 + $0x10] sm:$0xff]
    %v220 = vld [vmem:[#allocation5 + $0x18] sm:$0xff]
    %v221 = vld [vmem:[#allocation5 + $0x20] sm:$0xff]
    %v222 = vld [vmem:[#allocation5 + $0x28] sm:$0xff]
    %v223 = vld [vmem:[#allocation5 + $0x30] sm:$0xff]
    %v224 = vld [vmem:[#allocation5 + $0x38] sm:$0xff]
    %v225 = vld [vmem:[#allocation5 + $0x40] sm:$0xff]
    %v226 = vld [vmem:[#allocation5 + $0x48] sm:$0xff]
    %v227 = vld [vmem:[#allocation5 + $0x50] sm:$0xff]
    %v228 = vld [vmem:[#allocation5 + $0x58] sm:$0xff]
    %v229 = vld [vmem:[#allocation5 + $0x60] sm:$0xff]
    %v230 = vld [vmem:[#allocation5 + $0x68] sm:$0xff]
    %v231 = vld [vmem:[#allocation5 + $0x70] sm:$0xff]
    %v232 = vld [vmem:[#allocation5 + $0x78] sm:$0xff]
    %v233 = vld [vmem:[#allocation5 + $0x80] sm:$0xff]
    %v234 = vld [vmem:[#allocation5 + $0x88] sm:$0xff]
    %v235 = vld [vmem:[#allocation5 + $0x90] sm:$0xff]
    %v236 = vld [vmem:[#allocation5 + $0x98] sm:$0xff]
    %v237 = vld [vmem:[#allocation5 + $0xa0] sm:$0xff]
    %v238 = vld [vmem:[#allocation5 + $0xa8] sm:$0xff]
    %v239 = vld [vmem:[#allocation5 + $0xb0] sm:$0xff]
    %v240 = vld [vmem:[#allocation5 + $0xb8] sm:$0xff]
    %v241 = vld [vmem:[#allocation5 + $0xc0] sm:$0xff]
    %v242 = vld [vmem:[#allocation5 + $0xc8] sm:$0xff]
    %v243 = vld [vmem:[#allocation5 + $0xd0] sm:$0xff]
    %v244 = vld [vmem:[#allocation5 + $0xd8] sm:$0xff]
    %v245 = vld [vmem:[#allocation5 + $0xe0] sm:$0xff]
    %v246 = vld [vmem:[#allocation5 + $0xe8] sm:$0xff]
    %v247 = vld [vmem:[#allocation5 + $0xf0] sm:$0xff]
    %v248 = vld [vmem:[#allocation5 + $0xf8] sm:$0xff]
    %v249 = vld [vmem:[#allocation5 + $0x100] sm:$0xff]
    %v250 = vld [vmem:[#allocation5 + $0x108] sm:$0xff]
    %v251 = vld [vmem:[#allocation5 + $0x110] sm:$0xff]
    %v252 = vld [vmem:[#allocation5 + $0x118] sm:$0xff]
    %v253 = vld [vmem:[#allocation5 + $0x120] sm:$0xff]
    %v254 = vld [vmem:[#allocation5 + $0x128] sm:$0xff]
    %v255 = vld [vmem:[#allocation5 + $0x130] sm:$0xff]
    %v256 = vld [vmem:[#allocation5 + $0x138] sm:$0xff]
    %v257 = vld [vmem:[#allocation5 + $0x140] sm:$0xff]
    %v258 = vld [vmem:[#allocation5 + $0x148] sm:$0xff]
    %v259 = vld [vmem:[#allocation5 + $0x150] sm:$0xff]
    %v260 = vld [vmem:[#allocation5 + $0x158] sm:$0xff]
    %v261 = vld [vmem:[#allocation5 + $0x160] sm:$0xff]
    %v262 = vld [vmem:[#allocation5 + $0x168] sm:$0xff]
    %v263 = vld [vmem:[#allocation5 + $0x170] sm:$0xff]
    %v264 = vld [vmem:[#allocation5 + $0x178] sm:$0xff]
    %v265 = vld [vmem:[#allocation5 + $0x180] sm:$0xff]
    %v266 = vld [vmem:[#allocation5 + $0x188] sm:$0xff]
    %v267 = vld [vmem:[#allocation5 + $0x190] sm:$0xff]
    %v268 = vld [vmem:[#allocation5 + $0x198] sm:$0xff]
    %v269 = vld [vmem:[#allocation5 + $0x1a0] sm:$0xff]
    %v270 = vld [vmem:[#allocation5 + $0x1a8] sm:$0xff]
    %v271 = vld [vmem:[#allocation5 + $0x1b0] sm:$0xff]
    %v272 = vld [vmem:[#allocation5 + $0x1b8] sm:$0xff]
    %v273 = vld [vmem:[#allocation5 + $0x1c0] sm:$0xff]
    %v274 = vld [vmem:[#allocation5 + $0x1c8] sm:$0xff]
    %v275 = vld [vmem:[#allocation5 + $0x1d0] sm:$0xff]
    %v276 = vld [vmem:[#allocation5 + $0x1d8] sm:$0xff]
    %v277 = vld [vmem:[#allocation5 + $0x1e0] sm:$0xff]
    %v278 = vld [vmem:[#allocation5 + $0x1e8] sm:$0xff]
    %v279 = vld [vmem:[#allocation5 + $0x1f0] sm:$0xff]
    %v280 = vld [vmem:[#allocation5 + $0x1f8] sm:$0xff]
    %281 = vmatprep.subr.mxu0 %v218
    %282 = vmatpush1.msra.mxu0 %v217
    %283 = vmatprep.subr.mxu0 %v220
    %284 = vmatpush1.msra.mxu0 %v219
    %285 = vmatprep.subr.mxu0 %v222
    %286 = vmatpush1.msra.mxu0 %v221
    %287 = vmatprep.subr.mxu0 %v224
    %288 = vmatpush1.msra.mxu0 %v223
    %289 = vmatprep.subr.mxu0 %v226
    %290 = vmatpush1.msra.mxu0 %v225
    %291 = vmatprep.subr.mxu0 %v228
    %292 = vmatpush1.msra.mxu0 %v227
    %293 = vmatprep.subr.mxu0 %v230
    %294 = vmatpush1.msra.mxu0 %v229
    %295 = vmatprep.subr.mxu0 %v232
    %296 = vmatpush1.msra.mxu0 %v231
    %297 = vmatprep.subr.mxu0 %v234
    %298 = vmatpush1.msra.mxu0 %v233
    %299 = vmatprep.subr.mxu0 %v236
    %300 = vmatpush1.msra.mxu0 %v235
    %301 = vmatprep.subr.mxu0 %v238
    %302 = vmatpush1.msra.mxu0 %v237
    %303 = vmatprep.subr.mxu0 %v240
    %304 = vmatpush1.msra.mxu0 %v239
    %305 = vmatprep.subr.mxu0 %v242
    %306 = vmatpush1.msra.mxu0 %v241
    %307 = vmatprep.subr.mxu0 %v244
    %308 = vmatpush1.msra.mxu0 %v243
    %309 = vmatprep.subr.mxu0 %v246
    %310 = vmatpush1.msra.mxu0 %v245
    %311 = vmatprep.subr.mxu0 %v248
    %312 = vmatpush1.msra.mxu0 %v247
    %313 = vmatprep.subr.mxu0 %v250
    %314 = vmatpush1.msra.mxu0 %v249
    %315 = vmatprep.subr.mxu0 %v252
    %316 = vmatpush1.msra.mxu0 %v251
    %317 = vmatprep.subr.mxu0 %v254
    %318 = vmatpush1.msra.mxu0 %v253
    %319 = vmatprep.subr.mxu0 %v256
    %320 = vmatpush1.msra.mxu0 %v255
    %321 = vmatprep.subr.mxu0 %v258
    %322 = vmatpush1.msra.mxu0 %v257
    %323 = vmatprep.subr.mxu0 %v260
    %324 = vmatpush1.msra.mxu0 %v259
    %325 = vmatprep.subr.mxu0 %v262
    %326 = vmatpush1.msra.mxu0 %v261
    %327 = vmatprep.subr.mxu0 %v264
    %328 = vmatpush1.msra.mxu0 %v263
    %329 = vmatprep.subr.mxu0 %v266
    %330 = vmatpush1.msra.mxu0 %v265
    %331 = vmatprep.subr.mxu0 %v268
    %332 = vmatpush1.msra.mxu0 %v267
    %333 = vmatprep.subr.mxu0 %v270
    %334 = vmatpush1.msra.mxu0 %v269
    %335 = vmatprep.subr.mxu0 %v272
    %336 = vmatpush1.msra.mxu0 %v271
    %337 = vmatprep.subr.mxu0 %v274
    %338 = vmatpush1.msra.mxu0 %v273
    %339 = vmatprep.subr.mxu0 %v276
    %340 = vmatpush1.msra.mxu0 %v275
    %341 = vmatprep.subr.mxu0 %v278
    %342 = vmatpush1.msra.mxu0 %v277
    %343 = vmatprep.subr.mxu0 %v280
    %344 = vmatpush1.msra.mxu0 %v279
    %345 = vmatprep.mubr.f32.mxu0 %v215
    %346 = vmatmul.mubr.f32.gmra.mrb[0].mxu0 %v213
    %v347 = vpop.f32.mrb[0].mxu0
    %v348 = vadd.f32 0.0, %v347
    %v349 = vpop.f32.mrb[0].mxu0
    %v350 = vadd.f32 0.0, %v349
    %351 = vmatprep.mubr.f32.mxu0 %v216
    %352 = vmatmul.mubr.f32.gmra.mrb[0].mxu0 %v214
    %v353 = vpop.f32.mrb[0].mxu0
    %v354 = vadd.f32 0.0, %v353
    %v355 = vpop.f32.mrb[0].mxu0
    %v356 = vadd.f32 0.0, %v355
    %357 = vdwg.mxu0
    %v358 = vmul.f32 %v348, %v348
    %v359 = vmul.f32 %v354, %v354
    %v360 = vsub.f32 %v350, %v358
    %v361 = vsub.f32 %v356, %v359
    %v362 = vmax.f32 %v360, 0.0
    %v363 = vmax.f32 %v361, 0.0
    %v364 = vsub.f32 %v213, %v348
    %v365 = vsub.f32 %v214, %v354
    %v366 = vadd.f32 %v362, 1e-05
    %v367 = vadd.f32 %v363, 1e-05
    %v368 = vrsqrt.pop %v366
    %v369 = vrsqrt.pop %v367
    %v370 = vmul.f32 %v364, %v368
    %v371 = vmul.f32 %v365, %v369
    %v372 = vld [vmem:[%s3] sm:$0x1]
    %v374 = vlaneseq
    %v375 = vshrl.u32 %v374, 7
    %v376 = vsub.s32 0, %v375
    %v377 = vrot.slane %v372, %v376
    %v379 = vmul.f32 %v370, %v377
    %v380 = vmul.f32 %v371, %v377
    %v381 = vld [vmem:[#allocation7] sm:$0x1]
    %v383 = vlaneseq
    %v384 = vshrl.u32 %v383, 7
    %v385 = vsub.s32 0, %v384
    %v386 = vrot.slane %v381, %v385
    %v388 = vadd.f32 %v379, %v386
    %v389 = vadd.f32 %v380, %v386
    %v390 = vpack.c.bf16 %v389, %v388
    %v391 = vld [vmem:[#allocation8] sm:$0xf]
    %v392 = vld [vmem:[#allocation8 + $0x4] sm:$0xf]
    %v393 = vld [vmem:[#allocation8 + $0x8] sm:$0xf]
    %v394 = vld [vmem:[#allocation8 + $0xc] sm:$0xf]
    %v395 = vld [vmem:[#allocation8 + $0x10] sm:$0xf]
    %v396 = vld [vmem:[#allocation8 + $0x14] sm:$0xf]
    %v397 = vld [vmem:[#allocation8 + $0x18] sm:$0xf]
    %v398 = vld [vmem:[#allocation8 + $0x1c] sm:$0xf]
    %v399 = vld [vmem:[#allocation8 + $0x20] sm:$0xf]
    %v400 = vld [vmem:[#allocation8 + $0x24] sm:$0xf]
    %v401 = vld [vmem:[#allocation8 + $0x28] sm:$0xf]
    %v402 = vld [vmem:[#allocation8 + $0x2c] sm:$0xf]
    %v403 = vld [vmem:[#allocation8 + $0x30] sm:$0xf]
    %v404 = vld [vmem:[#allocation8 + $0x34] sm:$0xf]
    %v405 = vld [vmem:[#allocation8 + $0x38] sm:$0xf]
    %v406 = vld [vmem:[#allocation8 + $0x3c] sm:$0xf]
    %v407 = vld [vmem:[#allocation10] sm:$0x1]
    %v409 = vlaneseq
    %v410 = vshrl.u32 %v409, 7
    %v411 = vsub.s32 0, %v410
    %v412 = vrot.slane %v407, %v411
    %v430 = vunpack.c.l.b16 %v391
    %v431 = vunpack.c.l.b16 %v392
    %v432 = vunpack.c.l.b16 %v393
    %v433 = vunpack.c.l.b16 %v394
    %v434 = vunpack.c.l.b16 %v395
    %v435 = vunpack.c.l.b16 %v396
    %v436 = vunpack.c.l.b16 %v397
    %v437 = vunpack.c.l.b16 %v398
    %v438 = vunpack.c.l.b16 %v399
    %v439 = vunpack.c.l.b16 %v400
    %v440 = vunpack.c.l.b16 %v401
    %v441 = vunpack.c.l.b16 %v402
    %v442 = vunpack.c.l.b16 %v403
    %v443 = vunpack.c.l.b16 %v404
    %v444 = vunpack.c.l.b16 %v405
    %v445 = vunpack.c.l.b16 %v406
    %v446 = vpack.c.b16 %v431, %v430
    %v447 = vpack.c.b16 %v433, %v432
    %v448 = vpack.c.b16 %v435, %v434
    %v449 = vpack.c.b16 %v437, %v436
    %v450 = vpack.c.b16 %v439, %v438
    %v451 = vpack.c.b16 %v441, %v440
    %v452 = vpack.c.b16 %v443, %v442
    %v453 = vpack.c.b16 %v445, %v444
    %462 = vmatprep.subr.bf16.mxu0 0
    %463 = vmatpush1.bf16.msra.mxu0 %v446
    %464 = vmatprep.subr.bf16.mxu0 0
    %465 = vmatpush1.bf16.msra.mxu0 %v447
    %466 = vmatprep.subr.bf16.mxu0 0
    %467 = vmatpush1.bf16.msra.mxu0 %v448
    %468 = vmatprep.subr.bf16.mxu0 0
    %469 = vmatpush1.bf16.msra.mxu0 %v449
    %470 = vmatprep.subr.bf16.mxu0 0
    %471 = vmatpush1.bf16.msra.mxu0 %v450
    %472 = vmatprep.subr.bf16.mxu0 0
    %473 = vmatpush1.bf16.msra.mxu0 %v451
    %474 = vmatprep.subr.bf16.mxu0 0
    %475 = vmatpush1.bf16.msra.mxu0 %v452
    %476 = vmatprep.subr.bf16.mxu0 0
    %477 = vmatpush1.bf16.msra.mxu0 %v453
    %478 = vmatprep.subr.bf16.mxu0 0
    %479 = vmatpush1.bf16.msra.mxu0 0
    %480 = vmatprep.subr.bf16.mxu0 0
    %481 = vmatpush1.bf16.msra.mxu0 0
    %482 = vmatprep.subr.bf16.mxu0 0
    %483 = vmatpush1.bf16.msra.mxu0 0
    %484 = vmatprep.subr.bf16.mxu0 0
    %485 = vmatpush1.bf16.msra.mxu0 0
    %486 = vmatprep.subr.bf16.mxu0 0
    %487 = vmatpush1.bf16.msra.mxu0 0
    %488 = vmatprep.subr.bf16.mxu0 0
    %489 = vmatpush1.bf16.msra.mxu0 0
    %490 = vmatprep.subr.bf16.mxu0 0
    %491 = vmatpush1.bf16.msra.mxu0 0
    %492 = vmatprep.subr.bf16.mxu0 0
    %493 = vmatpush1.bf16.msra.mxu0 0
    %494 = vmatprep.mubr.bf16.mxu0 0
    %495 = vmatmul.mubr.bf16.gmra.mrb[0].mxu0 %v390
    %v496 = vpop.f32.mrb[0].mxu0
    %v497 = vadd.f32 %v412, %v496
    %v498 = vpop.f32.mrb[0].mxu0
    %v499 = vpop.f32.mrb[0].mxu0
    %v500 = vadd.f32 %v412, %v499
    %v501 = vpop.f32.mrb[0].mxu0
    %502 = vdwg.mxu0
    %v503 = vmax.f32 %v497, 0.0
    %v504 = vmax.f32 %v500, 0.0
    %v505 = vpack.c.bf16 %v504, %v503
    %v506 = vld [vmem:[#allocation11] sm:$0xf]
    %v507 = vld [vmem:[#allocation11 + $0x4] sm:$0xf]
    %v508 = vld [vmem:[#allocation11 + $0x8] sm:$0xf]
    %v509 = vld [vmem:[#allocation11 + $0xc] sm:$0xf]
    %v510 = vld [vmem:[#allocation11 + $0x10] sm:$0xf]
    %v511 = vld [vmem:[#allocation11 + $0x14] sm:$0xf]
    %v512 = vld [vmem:[#allocation11 + $0x18] sm:$0xf]
    %v513 = vld [vmem:[#allocation11 + $0x1c] sm:$0xf]
    %v514 = vld [vmem:[#allocation11 + $0x20] sm:$0xf]
    %v515 = vld [vmem:[#allocation11 + $0x24] sm:$0xf]
    %v516 = vld [vmem:[#allocation11 + $0x28] sm:$0xf]
    %v517 = vld [vmem:[#allocation11 + $0x2c] sm:$0xf]
    %v518 = vld [vmem:[#allocation11 + $0x30] sm:$0xf]
    %v519 = vld [vmem:[#allocation11 + $0x34] sm:$0xf]
    %v520 = vld [vmem:[#allocation11 + $0x38] sm:$0xf]
    %v521 = vld [vmem:[#allocation11 + $0x3c] sm:$0xf]
    %v522 = vld [vmem:[#allocation13] sm:$0x1]
    %v524 = vlaneseq
    %v525 = vshrl.u32 %v524, 7
    %v526 = vsub.s32 0, %v525
    %v527 = vrot.slane %v522, %v526
    %v545 = vunpack.c.l.b16 %v506
    %v546 = vunpack.c.l.b16 %v507
    %v547 = vunpack.c.l.b16 %v508
    %v548 = vunpack.c.l.b16 %v509
    %v549 = vunpack.c.l.b16 %v510
    %v550 = vunpack.c.l.b16 %v511
    %v551 = vunpack.c.l.b16 %v512
    %v552 = vunpack.c.l.b16 %v513
    %v553 = vunpack.c.l.b16 %v514
    %v554 = vunpack.c.l.b16 %v515
    %v555 = vunpack.c.l.b16 %v516
    %v556 = vunpack.c.l.b16 %v517
    %v557 = vunpack.c.l.b16 %v518
    %v558 = vunpack.c.l.b16 %v519
    %v559 = vunpack.c.l.b16 %v520
    %v560 = vunpack.c.l.b16 %v521
    %v561 = vpack.c.b16 %v546, %v545
    %v562 = vpack.c.b16 %v548, %v547
    %v563 = vpack.c.b16 %v550, %v549
    %v564 = vpack.c.b16 %v552, %v551
    %v565 = vpack.c.b16 %v554, %v553
    %v566 = vpack.c.b16 %v556, %v555
    %v567 = vpack.c.b16 %v558, %v557
    %v568 = vpack.c.b16 %v560, %v559
    %577 = vmatprep.subr.bf16.mxu0 0
    %578 = vmatpush1.bf16.msra.mxu0 %v561
    %579 = vmatprep.subr.bf16.mxu0 0
    %580 = vmatpush1.bf16.msra.mxu0 %v562
    %581 = vmatprep.subr.bf16.mxu0 0
    %582 = vmatpush1.bf16.msra.mxu0 %v563
    %583 = vmatprep.subr.bf16.mxu0 0
    %584 = vmatpush1.bf16.msra.mxu0 %v564
    %585 = vmatprep.subr.bf16.mxu0 0
    %586 = vmatpush1.bf16.msra.mxu0 %v565
    %587 = vmatprep.subr.bf16.mxu0 0
    %588 = vmatpush1.bf16.msra.mxu0 %v566
    %589 = vmatprep.subr.bf16.mxu0 0
    %590 = vmatpush1.bf16.msra.mxu0 %v567
    %591 = vmatprep.subr.bf16.mxu0 0
    %592 = vmatpush1.bf16.msra.mxu0 %v568
    %593 = vmatprep.subr.bf16.mxu0 0
    %594 = vmatpush1.bf16.msra.mxu0 0
    %595 = vmatprep.subr.bf16.mxu0 0
    %596 = vmatpush1.bf16.msra.mxu0 0
    %597 = vmatprep.subr.bf16.mxu0 0
    %598 = vmatpush1.bf16.msra.mxu0 0
    %599 = vmatprep.subr.bf16.mxu0 0
    %600 = vmatpush1.bf16.msra.mxu0 0
    %601 = vmatprep.subr.bf16.mxu0 0
    %602 = vmatpush1.bf16.msra.mxu0 0
    %603 = vmatprep.subr.bf16.mxu0 0
    %604 = vmatpush1.bf16.msra.mxu0 0
    %605 = vmatprep.subr.bf16.mxu0 0
    %606 = vmatpush1.bf16.msra.mxu0 0
    %607 = vmatprep.subr.bf16.mxu0 0
    %608 = vmatpush1.bf16.msra.mxu0 0
    %609 = vmatprep.mubr.bf16.mxu0 0
    %610 = vmatmul.mubr.bf16.gmra.mrb[0].mxu0 %v505
    %v611 = vpop.f32.mrb[0].mxu0
    %v612 = vadd.f32 %v527, %v611
    %v613 = vpop.f32.mrb[0].mxu0
    %v614 = vpop.f32.mrb[0].mxu0
    %v615 = vadd.f32 %v527, %v614
    %v616 = vpop.f32.mrb[0].mxu0
    %617 = vdwg.mxu0
    %v618 = vmax.f32 %v612, 0.0
    %v619 = vmax.f32 %v615, 0.0
    %v620 = vpack.c.bf16 %v619, %v618
    %v621 = vld [vmem:[#allocation14] sm:$0xf]
    %v622 = vld [vmem:[#allocation14 + $0x4] sm:$0xf]
    %v623 = vld [vmem:[#allocation14 + $0x8] sm:$0xf]
    %v624 = vld [vmem:[#allocation14 + $0xc] sm:$0xf]
    %v625 = vld [vmem:[#allocation14 + $0x10] sm:$0xf]
    %v626 = vld [vmem:[#allocation14 + $0x14] sm:$0xf]
    %v627 = vld [vmem:[#allocation14 + $0x18] sm:$0xf]
    %v628 = vld [vmem:[#allocation14 + $0x1c] sm:$0xf]
    %v629 = vld [vmem:[#allocation14 + $0x20] sm:$0xf]
    %v630 = vld [vmem:[#allocation14 + $0x24] sm:$0xf]
    %v631 = vld [vmem:[#allocation14 + $0x28] sm:$0xf]
    %v632 = vld [vmem:[#allocation14 + $0x2c] sm:$0xf]
    %v633 = vld [vmem:[#allocation14 + $0x30] sm:$0xf]
    %v634 = vld [vmem:[#allocation14 + $0x34] sm:$0xf]
    %v635 = vld [vmem:[#allocation14 + $0x38] sm:$0xf]
    %v636 = vld [vmem:[#allocation14 + $0x3c] sm:$0xf]
    %v637 = vld [vmem:[#allocation16] sm:$0x1]
    %v639 = vlaneseq
    %v640 = vshrl.u32 %v639, 7
    %v641 = vsub.s32 0, %v640
    %v642 = vrot.slane %v637, %v641
    %v660 = vunpack.c.l.b16 %v621
    %v661 = vunpack.c.l.b16 %v622
    %v662 = vunpack.c.l.b16 %v623
    %v663 = vunpack.c.l.b16 %v624
    %v664 = vunpack.c.l.b16 %v625
    %v665 = vunpack.c.l.b16 %v626
    %v666 = vunpack.c.l.b16 %v627
    %v667 = vunpack.c.l.b16 %v628
    %v668 = vunpack.c.l.b16 %v629
    %v669 = vunpack.c.l.b16 %v630
    %v670 = vunpack.c.l.b16 %v631
    %v671 = vunpack.c.l.b16 %v632
    %v672 = vunpack.c.l.b16 %v633
    %v673 = vunpack.c.l.b16 %v634
    %v674 = vunpack.c.l.b16 %v635
    %v675 = vunpack.c.l.b16 %v636
    %v676 = vpack.c.b16 %v661, %v660
    %v677 = vpack.c.b16 %v663, %v662
    %v678 = vpack.c.b16 %v665, %v664
    %v679 = vpack.c.b16 %v667, %v666
    %v680 = vpack.c.b16 %v669, %v668
    %v681 = vpack.c.b16 %v671, %v670
    %v682 = vpack.c.b16 %v673, %v672
    %v683 = vpack.c.b16 %v675, %v674
    %692 = vmatprep.subr.bf16.mxu0 0
    %693 = vmatpush1.bf16.msra.mxu0 %v676
    %694 = vmatprep.subr.bf16.mxu0 0
    %695 = vmatpush1.bf16.msra.mxu0 %v677
    %696 = vmatprep.subr.bf16.mxu0 0
    %697 = vmatpush1.bf16.msra.mxu0 %v678
    %698 = vmatprep.subr.bf16.mxu0 0
    %699 = vmatpush1.bf16.msra.mxu0 %v679
    %700 = vmatprep.subr.bf16.mxu0 0
    %701 = vmatpush1.bf16.msra.mxu0 %v680
    %702 = vmatprep.subr.bf16.mxu0 0
    %703 = vmatpush1.bf16.msra.mxu0 %v681
    %704 = vmatprep.subr.bf16.mxu0 0
    %705 = vmatpush1.bf16.msra.mxu0 %v682
    %706 = vmatprep.subr.bf16.mxu0 0
    %707 = vmatpush1.bf16.msra.mxu0 %v683
    %708 = vmatprep.subr.bf16.mxu0 0
    %709 = vmatpush1.bf16.msra.mxu0 0
    %710 = vmatprep.subr.bf16.mxu0 0
    %711 = vmatpush1.bf16.msra.mxu0 0
    %712 = vmatprep.subr.bf16.mxu0 0
    %713 = vmatpush1.bf16.msra.mxu0 0
    %714 = vmatprep.subr.bf16.mxu0 0
    %715 = vmatpush1.bf16.msra.mxu0 0
    %716 = vmatprep.subr.bf16.mxu0 0
    %717 = vmatpush1.bf16.msra.mxu0 0
    %718 = vmatprep.subr.bf16.mxu0 0
    %719 = vmatpush1.bf16.msra.mxu0 0
    %720 = vmatprep.subr.bf16.mxu0 0
    %721 = vmatpush1.bf16.msra.mxu0 0
    %722 = vmatprep.subr.bf16.mxu0 0
    %723 = vmatpush1.bf16.msra.mxu0 0
    %724 = vmatprep.mubr.bf16.mxu0 0
    %725 = vmatmul.mubr.bf16.gmra.mrb[0].mxu0 %v620
    %v726 = vpop.f32.mrb[0].mxu0
    %v727 = vadd.f32 %v642, %v726
    %v728 = vpop.f32.mrb[0].mxu0
    %v729 = vpop.f32.mrb[0].mxu0
    %v730 = vadd.f32 %v642, %v729
    %v731 = vpop.f32.mrb[0].mxu0
    %732 = vdwg.mxu0
    %v733 = vmax.f32 %v727, 0.0
    %v734 = vmax.f32 %v730, 0.0
    %v735 = vpack.c.bf16 %v734, %v733
    %v736 = vld [vmem:[%s1] sm:$0xff]
    %v737 = vld [vmem:[%s1 + $0x8] sm:$0xff]
    %v738 = vlaneseq
    %v739 = vand.u32 %v738, 127
    %740 = vset.pattern.permute.xlu0 0
    %741 = vperm.xlu0 %740, %v736
    %v742 = vpop.permute.xlu0 %741
    %743 = vset.pattern.permute.xlu0 0
    %744 = vperm.xlu0 %743, %v737
    %v745 = vpop.permute.xlu0 %744
    %vm746 = vcmp.eq.s32.totalorder %v739, %v742
    %vm747 = vcmp.eq.s32.totalorder %v739, %v745
    %748 = vset.pattern.permute.xlu0 1
    %749 = vperm.xlu0 %748, %v736
    %v750 = vpop.permute.xlu0 %749
    %751 = vset.pattern.permute.xlu0 1
    %752 = vperm.xlu0 %751, %v737
    %v753 = vpop.permute.xlu0 %752
    %vm754 = vcmp.eq.s32.totalorder %v739, %v750
    %vm755 = vcmp.eq.s32.totalorder %v739, %v753
    %vm756 = vmor %vm746, %vm754
    %vm757 = vmor %vm747, %vm755
    %758 = vset.pattern.permute.xlu0 2
    %759 = vperm.xlu0 %758, %v736
    %v760 = vpop.permute.xlu0 %759
    %761 = vset.pattern.permute.xlu0 2
    %762 = vperm.xlu0 %761, %v737
    %v763 = vpop.permute.xlu0 %762
    %vm764 = vcmp.eq.s32.totalorder %v739, %v760
    %vm765 = vcmp.eq.s32.totalorder %v739, %v763
    %vm766 = vmor %vm756, %vm764
    %vm767 = vmor %vm757, %vm765
    %768 = vset.pattern.permute.xlu0 3
    %769 = vperm.xlu0 %768, %v736
    %v770 = vpop.permute.xlu0 %769
    %771 = vset.pattern.permute.xlu0 3
    %772 = vperm.xlu0 %771, %v737
    %v773 = vpop.permute.xlu0 %772
    %vm774 = vcmp.eq.s32.totalorder %v739, %v770
    %vm775 = vcmp.eq.s32.totalorder %v739, %v773
    %vm776 = vmor %vm766, %vm774
    %vm777 = vmor %vm767, %vm775
    %v778 = vsel %vm776, 1, 0
    %v779 = vsel %vm777, 1, 0
    %v780 = vcvt.s32.f32 %v778
    %v781 = vcvt.s32.f32 %v779
    %v782 = vpack.c.bf16 %v781, %v780
    %v783 = vld [vmem:[%s11] sm:$0xf]
    %v784 = vld [vmem:[%s11 + $0x4] sm:$0xf]
    %v785 = vld [vmem:[%s11 + $0x8] sm:$0xf]
    %v786 = vld [vmem:[%s11 + $0xc] sm:$0xf]
    %v787 = vld [vmem:[%s11 + $0x10] sm:$0xf]
    %v788 = vld [vmem:[%s11 + $0x14] sm:$0xf]
    %v789 = vld [vmem:[%s11 + $0x18] sm:$0xf]
    %v790 = vld [vmem:[%s11 + $0x1c] sm:$0xf]
    %v791 = vld [vmem:[%s11 + $0x20] sm:$0xf]
    %v792 = vld [vmem:[%s11 + $0x24] sm:$0xf]
    %v793 = vld [vmem:[%s11 + $0x28] sm:$0xf]
    %v794 = vld [vmem:[%s11 + $0x2c] sm:$0xf]
    %v795 = vld [vmem:[%s11 + $0x30] sm:$0xf]
    %v796 = vld [vmem:[%s11 + $0x34] sm:$0xf]
    %v797 = vld [vmem:[%s11 + $0x38] sm:$0xf]
    %v798 = vld [vmem:[%s11 + $0x3c] sm:$0xf]
    %v799 = vld [vmem:[#allocation17] sm:$0xf]
    %v800 = vld [vmem:[#allocation17 + $0x4] sm:$0xf]
    %v801 = vld [vmem:[#allocation17 + $0x8] sm:$0xf]
    %v802 = vld [vmem:[#allocation17 + $0xc] sm:$0xf]
    %v803 = vld [vmem:[#allocation17 + $0x10] sm:$0xf]
    %v804 = vld [vmem:[#allocation17 + $0x14] sm:$0xf]
    %v805 = vld [vmem:[#allocation17 + $0x18] sm:$0xf]
    %v806 = vld [vmem:[#allocation17 + $0x1c] sm:$0xf]
    %v807 = vld [vmem:[#allocation17 + $0x20] sm:$0xf]
    %v808 = vld [vmem:[#allocation17 + $0x24] sm:$0xf]
    %v809 = vld [vmem:[#allocation17 + $0x28] sm:$0xf]
    %v810 = vld [vmem:[#allocation17 + $0x2c] sm:$0xf]
    %v811 = vld [vmem:[#allocation17 + $0x30] sm:$0xf]
    %v812 = vld [vmem:[#allocation17 + $0x34] sm:$0xf]
    %v813 = vld [vmem:[#allocation17 + $0x38] sm:$0xf]
    %v814 = vld [vmem:[#allocation17 + $0x3c] sm:$0xf]
    %v831 = vunpack.c.l.b16 %v799
    %v832 = vunpack.c.l.b16 %v800
    %v833 = vunpack.c.l.b16 %v801
    %v834 = vunpack.c.l.b16 %v802
    %v835 = vunpack.c.l.b16 %v803
    %v836 = vunpack.c.l.b16 %v804
    %v837 = vunpack.c.l.b16 %v805
    %v838 = vunpack.c.l.b16 %v806
    %v839 = vunpack.c.l.b16 %v807
    %v840 = vunpack.c.l.b16 %v808
    %v841 = vunpack.c.l.b16 %v809
    %v842 = vunpack.c.l.b16 %v810
    %v843 = vunpack.c.l.b16 %v811
    %v844 = vunpack.c.l.b16 %v812
    %v845 = vunpack.c.l.b16 %v813
    %v846 = vunpack.c.l.b16 %v814
    %v847 = vpack.c.b16 %v832, %v831
    %v848 = vpack.c.b16 %v834, %v833
    %v849 = vpack.c.b16 %v836, %v835
    %v850 = vpack.c.b16 %v838, %v837
    %v851 = vpack.c.b16 %v840, %v839
    %v852 = vpack.c.b16 %v842, %v841
    %v853 = vpack.c.b16 %v844, %v843
    %v854 = vpack.c.b16 %v846, %v845
    %863 = vmatprep.subr.bf16.mxu0 0
    %864 = vmatpush1.bf16.msra.mxu0 %v847
    %865 = vmatprep.subr.bf16.mxu0 0
    %866 = vmatpush1.bf16.msra.mxu0 %v848
    %867 = vmatprep.subr.bf16.mxu0 0
    %868 = vmatpush1.bf16.msra.mxu0 %v849
    %869 = vmatprep.subr.bf16.mxu0 0
    %870 = vmatpush1.bf16.msra.mxu0 %v850
    %871 = vmatprep.subr.bf16.mxu0 0
    %872 = vmatpush1.bf16.msra.mxu0 %v851
    %873 = vmatprep.subr.bf16.mxu0 0
    %874 = vmatpush1.bf16.msra.mxu0 %v852
    %875 = vmatprep.subr.bf16.mxu0 0
    %876 = vmatpush1.bf16.msra.mxu0 %v853
    %877 = vmatprep.subr.bf16.mxu0 0
    %878 = vmatpush1.bf16.msra.mxu0 %v854
    %879 = vmatprep.subr.bf16.mxu0 0
    %880 = vmatpush1.bf16.msra.mxu0 0
    %881 = vmatprep.subr.bf16.mxu0 0
    %882 = vmatpush1.bf16.msra.mxu0 0
    %883 = vmatprep.subr.bf16.mxu0 0
    %884 = vmatpush1.bf16.msra.mxu0 0
    %885 = vmatprep.subr.bf16.mxu0 0
    %886 = vmatpush1.bf16.msra.mxu0 0
    %887 = vmatprep.subr.bf16.mxu0 0
    %888 = vmatpush1.bf16.msra.mxu0 0
    %889 = vmatprep.subr.bf16.mxu0 0
    %890 = vmatpush1.bf16.msra.mxu0 0
    %891 = vmatprep.subr.bf16.mxu0 0
    %892 = vmatpush1.bf16.msra.mxu0 0
    %893 = vmatprep.subr.bf16.mxu0 0
    %894 = vmatpush1.bf16.msra.mxu0 0
    %895 = vmatprep.mubr.bf16.mxu0 0
    %896 = vmatmul.mubr.bf16.gmra.mrb[0].mxu0 %v782
    %v897 = vpop.f32.mrb[0].mxu0
    %v898 = vadd.f32 0.0, %v897
    %v899 = vpop.f32.mrb[0].mxu0
    %v900 = vpop.f32.mrb[0].mxu0
    %v901 = vadd.f32 0.0, %v900
    %v902 = vpop.f32.mrb[0].mxu0
    %903 = vdwg.mxu0
    %v920 = vunpack.c.l.b16 %v783
    %v921 = vunpack.c.l.b16 %v784
    %v922 = vunpack.c.l.b16 %v785
    %v923 = vunpack.c.l.b16 %v786
    %v924 = vunpack.c.l.b16 %v787
    %v925 = vunpack.c.l.b16 %v788
    %v926 = vunpack.c.l.b16 %v789
    %v927 = vunpack.c.l.b16 %v790
    %v928 = vunpack.c.l.b16 %v791
    %v929 = vunpack.c.l.b16 %v792
    %v930 = vunpack.c.l.b16 %v793
    %v931 = vunpack.c.l.b16 %v794
    %v932 = vunpack.c.l.b16 %v795
    %v933 = vunpack.c.l.b16 %v796
    %v934 = vunpack.c.l.b16 %v797
    %v935 = vunpack.c.l.b16 %v798
    %v936 = vpack.c.b16 %v921, %v920
    %v937 = vpack.c.b16 %v923, %v922
    %v938 = vpack.c.b16 %v925, %v924
    %v939 = vpack.c.b16 %v927, %v926
    %v940 = vpack.c.b16 %v929, %v928
    %v941 = vpack.c.b16 %v931, %v930
    %v942 = vpack.c.b16 %v933, %v932
    %v943 = vpack.c.b16 %v935, %v934
    %952 = vmatprep.subr.bf16.mxu0 0
    %953 = vmatpush1.bf16.msra.mxu0 %v936
    %954 = vmatprep.subr.bf16.mxu0 0
    %955 = vmatpush1.bf16.msra.mxu0 %v937
    %956 = vmatprep.subr.bf16.mxu0 0
    %957 = vmatpush1.bf16.msra.mxu0 %v938
    %958 = vmatprep.subr.bf16.mxu0 0
    %959 = vmatpush1.bf16.msra.mxu0 %v939
    %960 = vmatprep.subr.bf16.mxu0 0
    %961 = vmatpush1.bf16.msra.mxu0 %v940
    %962 = vmatprep.subr.bf16.mxu0 0
    %963 = vmatpush1.bf16.msra.mxu0 %v941
    %964 = vmatprep.subr.bf16.mxu0 0
    %965 = vmatpush1.bf16.msra.mxu0 %v942
    %966 = vmatprep.subr.bf16.mxu0 0
    %967 = vmatpush1.bf16.msra.mxu0 %v943
    %968 = vmatprep.subr.bf16.mxu0 0
    %969 = vmatpush1.bf16.msra.mxu0 0
    %970 = vmatprep.subr.bf16.mxu0 0
    %971 = vmatpush1.bf16.msra.mxu0 0
    %972 = vmatprep.subr.bf16.mxu0 0
    %973 = vmatpush1.bf16.msra.mxu0 0
    %974 = vmatprep.subr.bf16.mxu0 0
    %975 = vmatpush1.bf16.msra.mxu0 0
    %976 = vmatprep.subr.bf16.mxu0 0
    %977 = vmatpush1.bf16.msra.mxu0 0
    %978 = vmatprep.subr.bf16.mxu0 0
    %979 = vmatpush1.bf16.msra.mxu0 0
    %980 = vmatprep.subr.bf16.mxu0 0
    %981 = vmatpush1.bf16.msra.mxu0 0
    %982 = vmatprep.subr.bf16.mxu0 0
    %983 = vmatpush1.bf16.msra.mxu0 0
    %984 = vmatprep.mubr.bf16.mxu0 0
    %985 = vmatmul.mubr.bf16.gmra.mrb[0].mxu0 %v735
    %v986 = vpop.f32.mrb[0].mxu0
    %v987 = vadd.f32 %v898, %v986
    %v988 = vpop.f32.mrb[0].mxu0
    %v989 = vpop.f32.mrb[0].mxu0
    %v990 = vadd.f32 %v901, %v989
    %v991 = vpop.f32.mrb[0].mxu0
    %992 = vdwg.mxu0
    %v993 = vld [vmem:[#allocation19] sm:$0xf]
    %v994 = vld [vmem:[#allocation19 + $0x4] sm:$0xf]
    %v995 = vld [vmem:[#allocation19 + $0x8] sm:$0xf]
    %v996 = vld [vmem:[#allocation19 + $0xc] sm:$0xf]
    %v997 = vld [vmem:[#allocation19 + $0x10] sm:$0xf]
    %v998 = vld [vmem:[#allocation19 + $0x14] sm:$0xf]
    %v999 = vld [vmem:[#allocation19 + $0x18] sm:$0xf]
    %v1000 = vld [vmem:[#allocation19 + $0x1c] sm:$0xf]
    %v1001 = vld [vmem:[#allocation19 + $0x20] sm:$0xf]
    %v1002 = vld [vmem:[#allocation19 + $0x24] sm:$0xf]
    %v1003 = vld [vmem:[#allocation19 + $0x28] sm:$0xf]
    %v1004 = vld [vmem:[#allocation19 + $0x2c] sm:$0xf]
    %v1005 = vld [vmem:[#allocation19 + $0x30] sm:$0xf]
    %v1006 = vld [vmem:[#allocation19 + $0x34] sm:$0xf]
    %v1007 = vld [vmem:[#allocation19 + $0x38] sm:$0xf]
    %v1008 = vld [vmem:[#allocation19 + $0x3c] sm:$0xf]
    %v1025 = vunpack.c.l.b16 %v993
    %v1026 = vunpack.c.l.b16 %v994
    %v1027 = vunpack.c.l.b16 %v995
    %v1028 = vunpack.c.l.b16 %v996
    %v1029 = vunpack.c.l.b16 %v997
    %v1030 = vunpack.c.l.b16 %v998
    %v1031 = vunpack.c.l.b16 %v999
    %v1032 = vunpack.c.l.b16 %v1000
    %v1033 = vunpack.c.l.b16 %v1001
    %v1034 = vunpack.c.l.b16 %v1002
    %v1035 = vunpack.c.l.b16 %v1003
    %v1036 = vunpack.c.l.b16 %v1004
    %v1037 = vunpack.c.l.b16 %v1005
    %v1038 = vunpack.c.l.b16 %v1006
    %v1039 = vunpack.c.l.b16 %v1007
    %v1040 = vunpack.c.l.b16 %v1008
    %v1041 = vpack.c.b16 %v1026, %v1025
    %v1042 = vpack.c.b16 %v1028, %v1027
    %v1043 = vpack.c.b16 %v1030, %v1029
    %v1044 = vpack.c.b16 %v1032, %v1031
    %v1045 = vpack.c.b16 %v1034, %v1033
    %v1046 = vpack.c.b16 %v1036, %v1035
    %v1047 = vpack.c.b16 %v1038, %v1037
    %v1048 = vpack.c.b16 %v1040, %v1039
    %1057 = vmatprep.subr.bf16.mxu0 0
    %1058 = vmatpush1.bf16.msra.mxu0 %v1041
    %1059 = vmatprep.subr.bf16.mxu0 0
    %1060 = vmatpush1.bf16.msra.mxu0 %v1042
    %1061 = vmatprep.subr.bf16.mxu0 0
    %1062 = vmatpush1.bf16.msra.mxu0 %v1043
    %1063 = vmatprep.subr.bf16.mxu0 0
    %1064 = vmatpush1.bf16.msra.mxu0 %v1044
    %1065 = vmatprep.subr.bf16.mxu0 0
    %1066 = vmatpush1.bf16.msra.mxu0 %v1045
    %1067 = vmatprep.subr.bf16.mxu0 0
    %1068 = vmatpush1.bf16.msra.mxu0 %v1046
    %1069 = vmatprep.subr.bf16.mxu0 0
    %1070 = vmatpush1.bf16.msra.mxu0 %v1047
    %1071 = vmatprep.subr.bf16.mxu0 0
    %1072 = vmatpush1.bf16.msra.mxu0 %v1048
    %1073 = vmatprep.subr.bf16.mxu0 0
    %1074 = vmatpush1.bf16.msra.mxu0 0
    %1075 = vmatprep.subr.bf16.mxu0 0
    %1076 = vmatpush1.bf16.msra.mxu0 0
    %1077 = vmatprep.subr.bf16.mxu0 0
    %1078 = vmatpush1.bf16.msra.mxu0 0
    %1079 = vmatprep.subr.bf16.mxu0 0
    %1080 = vmatpush1.bf16.msra.mxu0 0
    %1081 = vmatprep.subr.bf16.mxu0 0
    %1082 = vmatpush1.bf16.msra.mxu0 0
    %1083 = vmatprep.subr.bf16.mxu0 0
    %1084 = vmatpush1.bf16.msra.mxu0 0
    %1085 = vmatprep.subr.bf16.mxu0 0
    %1086 = vmatpush1.bf16.msra.mxu0 0
    %1087 = vmatprep.subr.bf16.mxu0 0
    %1088 = vmatpush1.bf16.msra.mxu0 0
    %1089 = vmatprep.mubr.bf16.mxu0 0
    %1090 = vmatmul.mubr.bf16.gmra.mrb[0].mxu0 %v390
    %v1091 = vpop.f32.mrb[0].mxu0
    %v1092 = vadd.f32 0.0, %v1091
    %v1093 = vpop.f32.mrb[0].mxu0
    %v1094 = vpop.f32.mrb[0].mxu0
    %v1095 = vadd.f32 0.0, %v1094
    %v1096 = vpop.f32.mrb[0].mxu0
    %1097 = vdwg.mxu0
    %v1098 = vadd.f32 %v987, %v1092
    %v1099 = vadd.f32 %v990, %v1095
    %v1100 = vld [vmem:[%s14] sm:$0x1]
    %v1102 = vlaneseq
    %v1103 = vshrl.u32 %v1102, 7
    %v1104 = vsub.s32 0, %v1103
    %v1105 = vrot.slane %v1100, %v1104
    %v1107 = vadd.f32 %v1098, %v1105
    %v1108 = vadd.f32 %v1099, %v1105
    %v1109 = vmax.f32 %v1107, 0.0
    %v1110 = vmax.f32 %v1108, 0.0
    %v1111 = vpack.c.bf16 %v1110, %v1109
    %v1112 = vld [vmem:[#allocation20] sm:$0xf]
    %v1113 = vld [vmem:[#allocation20 + $0x4] sm:$0xf]
    %v1114 = vld [vmem:[#allocation20 + $0x8] sm:$0xf]
    %v1115 = vld [vmem:[#allocation20 + $0xc] sm:$0xf]
    %v1116 = vld [vmem:[#allocation20 + $0x10] sm:$0xf]
    %v1117 = vld [vmem:[#allocation20 + $0x14] sm:$0xf]
    %v1118 = vld [vmem:[#allocation20 + $0x18] sm:$0xf]
    %v1119 = vld [vmem:[#allocation20 + $0x1c] sm:$0xf]
    %v1120 = vld [vmem:[#allocation20 + $0x20] sm:$0xf]
    %v1121 = vld [vmem:[#allocation20 + $0x24] sm:$0xf]
    %v1122 = vld [vmem:[#allocation20 + $0x28] sm:$0xf]
    %v1123 = vld [vmem:[#allocation20 + $0x2c] sm:$0xf]
    %v1124 = vld [vmem:[#allocation20 + $0x30] sm:$0xf]
    %v1125 = vld [vmem:[#allocation20 + $0x34] sm:$0xf]
    %v1126 = vld [vmem:[#allocation20 + $0x38] sm:$0xf]
    %v1127 = vld [vmem:[#allocation20 + $0x3c] sm:$0xf]
    %v1128 = vld [vmem:[%s16] sm:$0x1]
    %v1130 = vlaneseq
    %v1131 = vshrl.u32 %v1130, 7
    %v1132 = vsub.s32 0, %v1131
    %v1133 = vrot.slane %v1128, %v1132
    %v1151 = vunpack.c.l.b16 %v1112
    %v1152 = vunpack.c.l.b16 %v1113
    %v1153 = vunpack.c.l.b16 %v1114
    %v1154 = vunpack.c.l.b16 %v1115
    %v1155 = vunpack.c.l.b16 %v1116
    %v1156 = vunpack.c.l.b16 %v1117
    %v1157 = vunpack.c.l.b16 %v1118
    %v1158 = vunpack.c.l.b16 %v1119
    %v1159 = vunpack.c.l.b16 %v1120
    %v1160 = vunpack.c.l.b16 %v1121
    %v1161 = vunpack.c.l.b16 %v1122
    %v1162 = vunpack.c.l.b16 %v1123
    %v1163 = vunpack.c.l.b16 %v1124
    %v1164 = vunpack.c.l.b16 %v1125
    %v1165 = vunpack.c.l.b16 %v1126
    %v1166 = vunpack.c.l.b16 %v1127
    %v1167 = vpack.c.b16 %v1152, %v1151
    %v1168 = vpack.c.b16 %v1154, %v1153
    %v1169 = vpack.c.b16 %v1156, %v1155
    %v1170 = vpack.c.b16 %v1158, %v1157
    %v1171 = vpack.c.b16 %v1160, %v1159
    %v1172 = vpack.c.b16 %v1162, %v1161
    %v1173 = vpack.c.b16 %v1164, %v1163
    %v1174 = vpack.c.b16 %v1166, %v1165
    %1183 = vmatprep.subr.bf16.mxu0 0
    %1184 = vmatpush1.bf16.msra.mxu0 %v1167
    %1185 = vmatprep.subr.bf16.mxu0 0
    %1186 = vmatpush1.bf16.msra.mxu0 %v1168
    %1187 = vmatprep.subr.bf16.mxu0 0
    %1188 = vmatpush1.bf16.msra.mxu0 %v1169
    %1189 = vmatprep.subr.bf16.mxu0 0
    %1190 = vmatpush1.bf16.msra.mxu0 %v1170
    %1191 = vmatprep.subr.bf16.mxu0 0
    %1192 = vmatpush1.bf16.msra.mxu0 %v1171
    %1193 = vmatprep.subr.bf16.mxu0 0
    %1194 = vmatpush1.bf16.msra.mxu0 %v1172
    %1195 = vmatprep.subr.bf16.mxu0 0
    %1196 = vmatpush1.bf16.msra.mxu0 %v1173
    %1197 = vmatprep.subr.bf16.mxu0 0
    %1198 = vmatpush1.bf16.msra.mxu0 %v1174
    %1199 = vmatprep.subr.bf16.mxu0 0
    %1200 = vmatpush1.bf16.msra.mxu0 0
    %1201 = vmatprep.subr.bf16.mxu0 0
    %1202 = vmatpush1.bf16.msra.mxu0 0
    %1203 = vmatprep.subr.bf16.mxu0 0
    %1204 = vmatpush1.bf16.msra.mxu0 0
    %1205 = vmatprep.subr.bf16.mxu0 0
    %1206 = vmatpush1.bf16.msra.mxu0 0
    %1207 = vmatprep.subr.bf16.mxu0 0
    %1208 = vmatpush1.bf16.msra.mxu0 0
    %1209 = vmatprep.subr.bf16.mxu0 0
    %1210 = vmatpush1.bf16.msra.mxu0 0
    %1211 = vmatprep.subr.bf16.mxu0 0
    %1212 = vmatpush1.bf16.msra.mxu0 0
    %1213 = vmatprep.subr.bf16.mxu0 0
    %1214 = vmatpush1.bf16.msra.mxu0 0
    %1215 = vmatprep.mubr.bf16.mxu0 0
    %1216 = vmatmul.mubr.bf16.gmra.mrb[0].mxu0 %v1111
    %v1217 = vpop.f32.mrb[0].mxu0
    %v1218 = vadd.f32 %v1133, %v1217
    %v1219 = vpop.f32.mrb[0].mxu0
    %v1220 = vpop.f32.mrb[0].mxu0
    %v1221 = vadd.f32 %v1133, %v1220
    %v1222 = vpop.f32.mrb[0].mxu0
    %1223 = vdwg.mxu0
    %1224 = vst [vmem:[#allocation22] sm:$0xff] %v1218
    %1225 = vst [vmem:[#allocation22 + $0x8] sm:$0xff] %v1221
    // Predicated region
    $region118: #{tpu_custom_call.1} parent=1 // pred_check
      _
    $region119: #{tpu_custom_call.1} parent=1 // pred_check_branch
      %1227 = sbr.rel (0) target = $region121
    $region120: #{tpu_custom_call.1} parent=1 // pred_region
      %s1229 = ssub.s32 256, 256
      %1230 = vsyncadd [#allocation4], %s1229
      %s1231 = sshll.u32 [#allocation22], 4
      %s1232 = int_to_ptr.vmem [resolvable:$true] %s1231
      %1237 = dma.vmem_to_hbm [thread:$0]  %s1232, 256, %s17, [#allocation4], 128, 128, 8
    $region121: #{tpu_custom_call.1} parent=1 // pred_fallthru
      _
    // Predicated region
    $region122: #{tpu_custom_call.1} parent=1 // pred_check
      _
    $region123: #{tpu_custom_call.1} parent=1 // pred_check_branch
      %1239 = sbr.rel (0) target = $region125
    $region124: #{tpu_custom_call.1} parent=1 // pred_region
      %1240 = dma.done [#allocation4], 256
    $region125: #{tpu_custom_call.1} parent=1 // pred_fallthru
      _
    %1241 = vsyncpa [#allocation3], 1
    %1242 = vsyncpa [#allocation6], 1
    %1243 = vsyncpa [#allocation9], 1
    %1244 = vsyncpa [#allocation12], 1
    %1245 = vsyncpa [#allocation15], 1
    %1246 = vsyncpa [#allocation18], 1
    %1247 = vsyncpa [#allocation21], 1
    %1248 = vsyncpa [#allocation4], 1

// kernel: tpu_custom_call.1
$region0: #{tpu_custom_call.1}
  #allocation0 [shape = 'u32[]', space=smem, size = 0x4, offset = 0x4, fixed_abs, tag = 'smem constant byte address 0x4 - core index']
  #allocation1 [shape = 'u32[144,128]{1,0:T(1,128)}', space=vmem, size = 0x12000, scoped, tag = 'internal scratch']
  %s0 = inlined_call_operand.hbm [shape: f32[16,128], index: 0, kind: input, shape index: {}]
  %s1 = inlined_call_operand.vmem [shape: s32[16,8], index: 1, kind: input, shape index: {}]
  %s2 = inlined_call_operand.hbm [shape: f32[256,256], index: 2, kind: input, shape index: {}]
  %s3 = inlined_call_operand.vmem [shape: f32[1,128], index: 3, kind: input, shape index: {}]
  %s4 = inlined_call_operand.hbm [shape: f32[1,128], index: 4, kind: input, shape index: {}]
  %s5 = inlined_call_operand.hbm [shape: bf16[128,128], index: 5, kind: input, shape index: {}]
  %s6 = inlined_call_operand.hbm [shape: f32[1,128], index: 6, kind: input, shape index: {}]
  %s7 = inlined_call_operand.hbm [shape: bf16[128,128], index: 7, kind: input, shape index: {}]
  %s8 = inlined_call_operand.hbm [shape: f32[1,128], index: 8, kind: input, shape index: {}]
  %s9 = inlined_call_operand.hbm [shape: bf16[128,128], index: 9, kind: input, shape index: {}]
  %s10 = inlined_call_operand.hbm [shape: f32[1,128], index: 10, kind: input, shape index: {}]
  %s11 = inlined_call_operand.vmem [shape: bf16[128,128], index: 11, kind: input, shape index: {}]
  %s12 = inlined_call_operand.hbm [shape: bf16[128,128], index: 12, kind: input, shape index: {}]
  %s13 = inlined_call_operand.hbm [shape: bf16[128,128], index: 13, kind: input, shape index: {}]
  %s14 = inlined_call_operand.vmem [shape: f32[1,128], index: 14, kind: input, shape index: {}]
  %s15 = inlined_call_operand.hbm [shape: bf16[128,128], index: 15, kind: input, shape index: {}]
  %s16 = inlined_call_operand.vmem [shape: f32[1,128], index: 16, kind: input, shape index: {}]
  %s17 = inlined_call_operand.hbm [shape: f32[16,128], index: 17, kind: output, shape index: {}]
  %s18 = sld [smem:[#allocation0]]
  $region126: #{tpu_custom_call.1} parent=0
    _
  %s20 = ssub.s32 1, %s18
  %s21 = scalar_select 0, %s20, %s18
  $region1: #{tpu_custom_call.1} parent=0
    #allocation2 [shape = 'u8[8192]{0}', space=vmem, size = 0x2000, scoped, tag = 'input window, operand 0, single buffered']
    #allocation3 [shape = 's32[1]{0}', space=sflag, size = 0x4, scoped, tag = 'scoped memory for tpu_custom_call.1']
    #allocation4 [shape = 's32[1]{0}', space=sflag, size = 0x4, scoped, tag = 'scoped memory for tpu_custom_call.1']
    #allocation5 [shape = 'u8[262144]{0}', space=vmem, size = 0x40000, scoped, tag = 'input window, operand 2, single buffered']
    #allocation6 [shape = 's32[1]{0}', space=sflag, size = 0x4, scoped, tag = 'scoped memory for tpu_custom_call.1']
    #allocation7 [shape = 'u8[512]{0}', space=vmem, size = 0x400, scoped, tag = 'input window, operand 4, single buffered']
    #allocation8 [shape = 'u8[32768]{0}', space=vmem, size = 0x8000, scoped, tag = 'input window, operand 5, single buffered']
    #allocation9 [shape = 's32[1]{0}', space=sflag, size = 0x4, scoped, tag = 'scoped memory for tpu_custom_call.1']
    #allocation10 [shape = 'u8[512]{0}', space=vmem, size = 0x400, scoped, tag = 'input window, operand 6, single buffered']
    #allocation11 [shape = 'u8[32768]{0}', space=vmem, size = 0x8000, scoped, tag = 'input window, operand 7, single buffered']
    #allocation12 [shape = 's32[1]{0}', space=sflag, size = 0x4, scoped, tag = 'scoped memory for tpu_custom_call.1']
    #allocation13 [shape = 'u8[512]{0}', space=vmem, size = 0x400, scoped, tag = 'input window, operand 8, single buffered']
    #allocation14 [shape = 'u8[32768]{0}', space=vmem, size = 0x8000, scoped, tag = 'input window, operand 9, single buffered']
    #allocation15 [shape = 's32[1]{0}', space=sflag, size = 0x4, scoped, tag = 'scoped memory for tpu_custom_call.1']
    #allocation16 [shape = 'u8[512]{0}', space=vmem, size = 0x400, scoped, tag = 'input window, operand 10, single buffered']
    #allocation17 [shape = 'u8[32768]{0}', space=vmem, size = 0x8000, scoped, tag = 'input window, operand 12, single buffered']
    #allocation18 [shape = 's32[1]{0}', space=sflag, size = 0x4, scoped, tag = 'scoped memory for tpu_custom_call.1']
    #allocation19 [shape = 'u8[32768]{0}', space=vmem, size = 0x8000, scoped, tag = 'input window, operand 13, single buffered']
    #allocation20 [shape = 'u8[32768]{0}', space=vmem, size = 0x8000, scoped, tag = 'input window, operand 15, single buffered']
    #allocation21 [shape = 's32[1]{0}', space=sflag, size = 0x4, scoped, tag = 'scoped memory for tpu_custom_call.1']
    #allocation22 [shape = 'u8[8192]{0}', space=vmem, size = 0x2000, scoped, tag = 'output window, operand 0, single buffered']
    %22 = vsyncpa [#allocation3], 0
    %23 = vsyncpa [#allocation6], 0
    %24 = vsyncpa [#allocation9], 0
    %25 = vsyncpa [#allocation12], 0
    %26 = vsyncpa [#allocation15], 0
    %27 = vsyncpa [#allocation18], 0
    %28 = vsyncpa [#allocation21], 0
    %29 = vsyncpa [#allocation4], 0
    // Predicated region
    $region2: #{tpu_custom_call.1} parent=1 // pred_check
      _
    $region3: #{tpu_custom_call.1} parent=1 // pred_check_branch
      %31 = sbr.rel (0) target = $region5
    $region4: #{tpu_custom_call.1} parent=1 // pred_region
      %s33 = ssub.s32 256, 256
      %34 = vsyncadd [#allocation3], %s33
      %s35 = sshll.u32 [#allocation2], 4
      %s36 = int_to_ptr.vmem [resolvable:$true] %s35
      %41 = dma.hbm_to_vmem [thread:$0]  %s0, 256, %s36, [#allocation3], 128, 128, 8
    $region5: #{tpu_custom_call.1} parent=1 // pred_fallthru
      _
    // Predicated region
    $region6: #{tpu_custom_call.1} parent=1 // pred_check
      _
    $region7: #{tpu_custom_call.1} parent=1 // pred_check_branch
      %43 = sbr.rel (0) target = $region9
    $region8: #{tpu_custom_call.1} parent=1 // pred_region
      _
    $region9: #{tpu_custom_call.1} parent=1 // pred_fallthru
      _
    // Predicated region
    $region10: #{tpu_custom_call.1} parent=1 // pred_check
      _
    $region11: #{tpu_custom_call.1} parent=1 // pred_check_branch
      %45 = sbr.rel (0) target = $region13
    $region12: #{tpu_custom_call.1} parent=1 // pred_region
      %s47 = ssub.s32 8192, 8192
      %48 = vsyncadd [#allocation6], %s47
      %s49 = sshll.u32 [#allocation5], 4
      %s50 = int_to_ptr.vmem [resolvable:$true] %s49
      %55 = dma.hbm_to_vmem [thread:$0]  %s2, 8192, %s50, [#allocation6], 256, 256, 16
    $region13: #{tpu_custom_call.1} parent=1 // pred_fallthru
      _
    // Predicated region
    $region14: #{tpu_custom_call.1} parent=1 // pred_check
      _
    $region15: #{tpu_custom_call.1} parent=1 // pred_check_branch
      %57 = sbr.rel (0) target = $region17
    $region16: #{tpu_custom_call.1} parent=1 // pred_region
      _
    $region17: #{tpu_custom_call.1} parent=1 // pred_fallthru
      _
    // Predicated region
    $region18: #{tpu_custom_call.1} parent=1 // pred_check
      _
    $region19: #{tpu_custom_call.1} parent=1 // pred_check_branch
      %59 = sbr.rel (0) target = $region21
    $region20: #{tpu_custom_call.1} parent=1 // pred_region
      %s61 = ssub.s32 16, 16
      %62 = vsyncadd [#allocation6], %s61
      %s64 = sshll.u32 [#allocation7], 4
      %s65 = int_to_ptr.vmem [resolvable:$true] %s64
      %67 = dma.hbm_to_vmem [thread:$0]  %s4, 16, %s65, [#allocation6]
    $region21: #{tpu_custom_call.1} parent=1 // pred_fallthru
      _
    // Predicated region
    $region22: #{tpu_custom_call.1} parent=1 // pred_check
      _
    $region23: #{tpu_custom_call.1} parent=1 // pred_check_branch
      %69 = sbr.rel (0) target = $region25
    $region24: #{tpu_custom_call.1} parent=1 // pred_region
      %s71 = ssub.s32 1024, 1024
      %72 = vsyncadd [#allocation9], %s71
      %s73 = sshll.u32 [#allocation8], 4
      %s74 = int_to_ptr.vmem [resolvable:$true] %s73
      %79 = dma.hbm_to_vmem [thread:$0]  %s5, 1024, %s74, [#allocation9], 64, 64, 4
    $region25: #{tpu_custom_call.1} parent=1 // pred_fallthru
      _
    // Predicated region
    $region26: #{tpu_custom_call.1} parent=1 // pred_check
      _
    $region27: #{tpu_custom_call.1} parent=1 // pred_check_branch
      %81 = sbr.rel (0) target = $region29
    $region28: #{tpu_custom_call.1} parent=1 // pred_region
      %s83 = ssub.s32 16, 16
      %84 = vsyncadd [#allocation9], %s83
      %s86 = sshll.u32 [#allocation10], 4
      %s87 = int_to_ptr.vmem [resolvable:$true] %s86
      %89 = dma.hbm_to_vmem [thread:$0]  %s6, 16, %s87, [#allocation9]
    $region29: #{tpu_custom_call.1} parent=1 // pred_fallthru
      _
    // Predicated region
    $region30: #{tpu_custom_call.1} parent=1 // pred_check
      _
    $region31: #{tpu_custom_call.1} parent=1 // pred_check_branch
      %91 = sbr.rel (0) target = $region33
    $region32: #{tpu_custom_call.1} parent=1 // pred_region
      %s93 = ssub.s32 1024, 1024
      %94 = vsyncadd [#allocation12], %s93
      %s95 = sshll.u32 [#allocation11], 4
      %s96 = int_to_ptr.vmem [resolvable:$true] %s95
      %101 = dma.hbm_to_vmem [thread:$0]  %s7, 1024, %s96, [#allocation12], 64, 64, 4
    $region33: #{tpu_custom_call.1} parent=1 // pred_fallthru
      _
    // Predicated region
    $region34: #{tpu_custom_call.1} parent=1 // pred_check
      _
    $region35: #{tpu_custom_call.1} parent=1 // pred_check_branch
      %103 = sbr.rel (0) target = $region37
    $region36: #{tpu_custom_call.1} parent=1 // pred_region
      %s105 = ssub.s32 16, 16
      %106 = vsyncadd [#allocation12], %s105
      %s108 = sshll.u32 [#allocation13], 4
      %s109 = int_to_ptr.vmem [resolvable:$true] %s108
      %111 = dma.hbm_to_vmem [thread:$0]  %s8, 16, %s109, [#allocation12]
    $region37: #{tpu_custom_call.1} parent=1 // pred_fallthru
      _
    // Predicated region
    $region38: #{tpu_custom_call.1} parent=1 // pred_check
      _
    $region39: #{tpu_custom_call.1} parent=1 // pred_check_branch
      %113 = sbr.rel (0) target = $region41
    $region40: #{tpu_custom_call.1} parent=1 // pred_region
      %s115 = ssub.s32 1024, 1024
      %116 = vsyncadd [#allocation15], %s115
      %s117 = sshll.u32 [#allocation14], 4
      %s118 = int_to_ptr.vmem [resolvable:$true] %s117
      %123 = dma.hbm_to_vmem [thread:$0]  %s9, 1024, %s118, [#allocation15], 64, 64, 4
    $region41: #{tpu_custom_call.1} parent=1 // pred_fallthru
      _
    // Predicated region
    $region42: #{tpu_custom_call.1} parent=1 // pred_check
      _
    $region43: #{tpu_custom_call.1} parent=1 // pred_check_branch
      %125 = sbr.rel (0) target = $region45
    $region44: #{tpu_custom_call.1} parent=1 // pred_region
      %s127 = ssub.s32 16, 16
      %128 = vsyncadd [#allocation15], %s127
      %s130 = sshll.u32 [#allocation16], 4
      %s131 = int_to_ptr.vmem [resolvable:$true] %s130
      %133 = dma.hbm_to_vmem [thread:$0]  %s10, 16, %s131, [#allocation15]
    $region45: #{tpu_custom_call.1} parent=1 // pred_fallthru
      _
    // Predicated region
    $region46: #{tpu_custom_call.1} parent=1 // pred_check
      _
    $region47: #{tpu_custom_call.1} parent=1 // pred_check_branch
      %135 = sbr.rel (0) target = $region49
    $region48: #{tpu_custom_call.1} parent=1 // pred_region
      _
    $region49: #{tpu_custom_call.1} parent=1 // pred_fallthru
      _
    // Predicated region
    $region50: #{tpu_custom_call.1} parent=1 // pred_check
      _
    $region51: #{tpu_custom_call.1} parent=1 // pred_check_branch
      %137 = sbr.rel (0) target = $region53
    $region52: #{tpu_custom_call.1} parent=1 // pred_region
      %s139 = ssub.s32 1024, 1024
      %140 = vsyncadd [#allocation18], %s139
      %s141 = sshll.u32 [#allocation17], 4
      %s142 = int_to_ptr.vmem [resolvable:$true] %s141
      %147 = dma.hbm_to_vmem [thread:$0]  %s12, 1024, %s142, [#allocation18], 64, 64, 4
    $region53: #{tpu_custom_call.1} parent=1 // pred_fallthru
      _
    // Predicated region
    $region54: #{tpu_custom_call.1} parent=1 // pred_check
      _
    $region55: #{tpu_custom_call.1} parent=1 // pred_check_branch
      %149 = sbr.rel (0) target = $region57
    $region56: #{tpu_custom_call.1} parent=1 // pred_region
      %s151 = ssub.s32 1024, 1024
      %152 = vsyncadd [#allocation18], %s151
      %s153 = sshll.u32 [#allocation19], 4
      %s154 = int_to_ptr.vmem [resolvable:$true] %s153
      %159 = dma.hbm_to_vmem [thread:$0]  %s13, 1024, %s154, [#allocation18], 64, 64, 4
    $region57: #{tpu_custom_call.1} parent=1 // pred_fallthru
      _
    // Predicated region
    $region58: #{tpu_custom_call.1} parent=1 // pred_check
      _
    $region59: #{tpu_custom_call.1} parent=1 // pred_check_branch
      %161 = sbr.rel (0) target = $region61
    $region60: #{tpu_custom_call.1} parent=1 // pred_region
      _
    $region61: #{tpu_custom_call.1} parent=1 // pred_fallthru
      _
    // Predicated region
    $region62: #{tpu_custom_call.1} parent=1 // pred_check
      _
    $region63: #{tpu_custom_call.1} parent=1 // pred_check_branch
      %163 = sbr.rel (0) target = $region65
    $region64: #{tpu_custom_call.1} parent=1 // pred_region
      %s165 = ssub.s32 1024, 1024
      %166 = vsyncadd [#allocation21], %s165
      %s167 = sshll.u32 [#allocation20], 4
      %s168 = int_to_ptr.vmem [resolvable:$true] %s167
      %173 = dma.hbm_to_vmem [thread:$0]  %s15, 1024, %s168, [#allocation21], 64, 64, 4
    $region65: #{tpu_custom_call.1} parent=1 // pred_fallthru
      _
    // Predicated region
    $region66: #{tpu_custom_call.1} parent=1 // pred_check
      _
    $region67: #{tpu_custom_call.1} parent=1 // pred_check_branch
      %175 = sbr.rel (0) target = $region69
    $region68: #{tpu_custom_call.1} parent=1 // pred_region
      _
    $region69: #{tpu_custom_call.1} parent=1 // pred_fallthru
      _
    // Predicated region
    $region70: #{tpu_custom_call.1} parent=1 // pred_check
      _
    $region71: #{tpu_custom_call.1} parent=1 // pred_check_branch
      %177 = sbr.rel (0) target = $region73
    $region72: #{tpu_custom_call.1} parent=1 // pred_region
      %178 = dma.done [#allocation3], 256
    $region73: #{tpu_custom_call.1} parent=1 // pred_fallthru
      _
    // Predicated region
    $region74: #{tpu_custom_call.1} parent=1 // pred_check
      _
    $region75: #{tpu_custom_call.1} parent=1 // pred_check_branch
      %180 = sbr.rel (0) target = $region77
    $region76: #{tpu_custom_call.1} parent=1 // pred_region
      %181 = dma.done [#allocation6], 8192
    $region77: #{tpu_custom_call.1} parent=1 // pred_fallthru
      _
    // Predicated region
    $region78: #{tpu_custom_call.1} parent=1 // pred_check
      _
    $region79: #{tpu_custom_call.1} parent=1 // pred_check_branch
      %183 = sbr.rel (0) target = $region81
    $region80: #{tpu_custom_call.1} parent=1 // pred_region
      %184 = dma.done [#allocation6], 16
    $region81: #{tpu_custom_call.1} parent=1 // pred_fallthru
      _
    // Predicated region
    $region82: #{tpu_custom_call.1} parent=1 // pred_check
      _
    $region83: #{tpu_custom_call.1} parent=1 // pred_check_branch
      %186 = sbr.rel (0) target = $region85
    $region84: #{tpu_custom_call.1} parent=1 // pred_region
      %187 = dma.done [#allocation9], 1024
    $region85: #{tpu_custom_call.1} parent=1 // pred_fallthru
      _
    // Predicated region
    $region86: #{tpu_custom_call.1} parent=1 // pred_check
      _
    $region87: #{tpu_custom_call.1} parent=1 // pred_check_branch
      %189 = sbr.rel (0) target = $region89
    $region88: #{tpu_custom_call.1} parent=1 // pred_region
      %190 = dma.done [#allocation9], 16
    $region89: #{tpu_custom_call.1} parent=1 // pred_fallthru
      _
    // Predicated region
    $region90: #{tpu_custom_call.1} parent=1 // pred_check
      _
    $region91: #{tpu_custom_call.1} parent=1 // pred_check_branch
      %192 = sbr.rel (0) target = $region93
    $region92: #{tpu_custom_call.1} parent=1 // pred_region
      %193 = dma.done [#allocation12], 1024
    $region93: #{tpu_custom_call.1} parent=1 // pred_fallthru
      _
    // Predicated region
    $region94: #{tpu_custom_call.1} parent=1 // pred_check
      _
    $region95: #{tpu_custom_call.1} parent=1 // pred_check_branch
      %195 = sbr.rel (0) target = $region97
    $region96: #{tpu_custom_call.1} parent=1 // pred_region
      %196 = dma.done [#allocation12], 16
    $region97: #{tpu_custom_call.1} parent=1 // pred_fallthru
      _
    // Predicated region
    $region98: #{tpu_custom_call.1} parent=1 // pred_check
      _
    $region99: #{tpu_custom_call.1} parent=1 // pred_check_branch
      %198 = sbr.rel (0) target = $region101
    $region100: #{tpu_custom_call.1} parent=1 // pred_region
      %199 = dma.done [#allocation15], 1024
    $region101: #{tpu_custom_call.1} parent=1 // pred_fallthru
      _
    // Predicated region
    $region102: #{tpu_custom_call.1} parent=1 // pred_check
      _
    $region103: #{tpu_custom_call.1} parent=1 // pred_check_branch
      %201 = sbr.rel (0) target = $region105
    $region104: #{tpu_custom_call.1} parent=1 // pred_region
      %202 = dma.done [#allocation15], 16
    $region105: #{tpu_custom_call.1} parent=1 // pred_fallthru
      _
    // Predicated region
    $region106: #{tpu_custom_call.1} parent=1 // pred_check
      _
    $region107: #{tpu_custom_call.1} parent=1 // pred_check_branch
      %204 = sbr.rel (0) target = $region109
    $region108: #{tpu_custom_call.1} parent=1 // pred_region
      %205 = dma.done [#allocation18], 1024
    $region109: #{tpu_custom_call.1} parent=1 // pred_fallthru
      _
    // Predicated region
    $region110: #{tpu_custom_call.1} parent=1 // pred_check
      _
    $region111: #{tpu_custom_call.1} parent=1 // pred_check_branch
      %207 = sbr.rel (0) target = $region113
    $region112: #{tpu_custom_call.1} parent=1 // pred_region
      %208 = dma.done [#allocation18], 1024
    $region113: #{tpu_custom_call.1} parent=1 // pred_fallthru
      _
    // Predicated region
    $region114: #{tpu_custom_call.1} parent=1 // pred_check
      _
    $region115: #{tpu_custom_call.1} parent=1 // pred_check_branch
      %210 = sbr.rel (0) target = $region117
    $region116: #{tpu_custom_call.1} parent=1 // pred_region
      %211 = dma.done [#allocation21], 1024
    $region117: #{tpu_custom_call.1} parent=1 // pred_fallthru
      _
    %v213 = vld [vmem:[#allocation2] sm:$0xff]
    %v214 = vld [vmem:[#allocation2 + $0x8] sm:$0xff]
    %v215 = vmul.f32 %v213, %v213
    %v216 = vmul.f32 %v214, %v214
    %v217 = vld [vmem:[#allocation5] sm:$0xff]
    %v218 = vld [vmem:[#allocation5 + $0x8] sm:$0xff]
    %v219 = vld [vmem:[#allocation5 + $0x10] sm:$0xff]
    %v220 = vld [vmem:[#allocation5 + $0x18] sm:$0xff]
    %v221 = vld [vmem:[#allocation5 + $0x20] sm:$0xff]
    %v222 = vld [vmem:[#allocation5 + $0x28] sm:$0xff]
    %v223 = vld [vmem:[#allocation5 + $0x30] sm:$0xff]
    %v224 = vld [vmem:[#allocation5 + $0x38] sm:$0xff]
    %v225 = vld [vmem:[#allocation5 + $0x40] sm:$0xff]
    %v226 = vld [vmem:[#allocation5 + $0x48] sm:$0xff]
    %v227 = vld [vmem:[#allocation5 + $0x50] sm:$0xff]
    %v228 = vld [vmem:[#allocation5 + $0x58] sm:$0xff]
    %v229 = vld [vmem:[#allocation5 + $0x60] sm:$0xff]
    %v230 = vld [vmem:[#allocation5 + $0x68] sm:$0xff]
    %v231 = vld [vmem:[#allocation5 + $0x70] sm:$0xff]
    %v232 = vld [vmem:[#allocation5 + $0x78] sm:$0xff]
    %v233 = vld [vmem:[#allocation5 + $0x80] sm:$0xff]
    %v234 = vld [vmem:[#allocation5 + $0x88] sm:$0xff]
    %v235 = vld [vmem:[#allocation5 + $0x90] sm:$0xff]
    %v236 = vld [vmem:[#allocation5 + $0x98] sm:$0xff]
    %v237 = vld [vmem:[#allocation5 + $0xa0] sm:$0xff]
    %v238 = vld [vmem:[#allocation5 + $0xa8] sm:$0xff]
    %v239 = vld [vmem:[#allocation5 + $0xb0] sm:$0xff]
    %v240 = vld [vmem:[#allocation5 + $0xb8] sm:$0xff]
    %v241 = vld [vmem:[#allocation5 + $0xc0] sm:$0xff]
    %v242 = vld [vmem:[#allocation5 + $0xc8] sm:$0xff]
    %v243 = vld [vmem:[#allocation5 + $0xd0] sm:$0xff]
    %v244 = vld [vmem:[#allocation5 + $0xd8] sm:$0xff]
    %v245 = vld [vmem:[#allocation5 + $0xe0] sm:$0xff]
    %v246 = vld [vmem:[#allocation5 + $0xe8] sm:$0xff]
    %v247 = vld [vmem:[#allocation5 + $0xf0] sm:$0xff]
    %v248 = vld [vmem:[#allocation5 + $0xf8] sm:$0xff]
    %v249 = vld [vmem:[#allocation5 + $0x100] sm:$0xff]
    %v250 = vld [vmem:[#allocation5 + $0x108] sm:$0xff]
    %v251 = vld [vmem:[#allocation5 + $0x110] sm:$0xff]
    %v252 = vld [vmem:[#allocation5 + $0x118] sm:$0xff]
    %v253 = vld [vmem:[#allocation5 + $0x120] sm:$0xff]
    %v254 = vld [vmem:[#allocation5 + $0x128] sm:$0xff]
    %v255 = vld [vmem:[#allocation5 + $0x130] sm:$0xff]
    %v256 = vld [vmem:[#allocation5 + $0x138] sm:$0xff]
    %v257 = vld [vmem:[#allocation5 + $0x140] sm:$0xff]
    %v258 = vld [vmem:[#allocation5 + $0x148] sm:$0xff]
    %v259 = vld [vmem:[#allocation5 + $0x150] sm:$0xff]
    %v260 = vld [vmem:[#allocation5 + $0x158] sm:$0xff]
    %v261 = vld [vmem:[#allocation5 + $0x160] sm:$0xff]
    %v262 = vld [vmem:[#allocation5 + $0x168] sm:$0xff]
    %v263 = vld [vmem:[#allocation5 + $0x170] sm:$0xff]
    %v264 = vld [vmem:[#allocation5 + $0x178] sm:$0xff]
    %v265 = vld [vmem:[#allocation5 + $0x180] sm:$0xff]
    %v266 = vld [vmem:[#allocation5 + $0x188] sm:$0xff]
    %v267 = vld [vmem:[#allocation5 + $0x190] sm:$0xff]
    %v268 = vld [vmem:[#allocation5 + $0x198] sm:$0xff]
    %v269 = vld [vmem:[#allocation5 + $0x1a0] sm:$0xff]
    %v270 = vld [vmem:[#allocation5 + $0x1a8] sm:$0xff]
    %v271 = vld [vmem:[#allocation5 + $0x1b0] sm:$0xff]
    %v272 = vld [vmem:[#allocation5 + $0x1b8] sm:$0xff]
    %v273 = vld [vmem:[#allocation5 + $0x1c0] sm:$0xff]
    %v274 = vld [vmem:[#allocation5 + $0x1c8] sm:$0xff]
    %v275 = vld [vmem:[#allocation5 + $0x1d0] sm:$0xff]
    %v276 = vld [vmem:[#allocation5 + $0x1d8] sm:$0xff]
    %v277 = vld [vmem:[#allocation5 + $0x1e0] sm:$0xff]
    %v278 = vld [vmem:[#allocation5 + $0x1e8] sm:$0xff]
    %v279 = vld [vmem:[#allocation5 + $0x1f0] sm:$0xff]
    %v280 = vld [vmem:[#allocation5 + $0x1f8] sm:$0xff]
    %281 = vmatprep.subr.mxu0 %v218
    %282 = vmatpush1.msra.mxu0 %v217
    %283 = vmatprep.subr.mxu0 %v220
    %284 = vmatpush1.msra.mxu0 %v219
    %285 = vmatprep.subr.mxu0 %v222
    %286 = vmatpush1.msra.mxu0 %v221
    %287 = vmatprep.subr.mxu0 %v224
    %288 = vmatpush1.msra.mxu0 %v223
    %289 = vmatprep.subr.mxu0 %v226
    %290 = vmatpush1.msra.mxu0 %v225
    %291 = vmatprep.subr.mxu0 %v228
    %292 = vmatpush1.msra.mxu0 %v227
    %293 = vmatprep.subr.mxu0 %v230
    %294 = vmatpush1.msra.mxu0 %v229
    %295 = vmatprep.subr.mxu0 %v232
    %296 = vmatpush1.msra.mxu0 %v231
    %297 = vmatprep.subr.mxu0 %v234
    %298 = vmatpush1.msra.mxu0 %v233
    %299 = vmatprep.subr.mxu0 %v236
    %300 = vmatpush1.msra.mxu0 %v235
    %301 = vmatprep.subr.mxu0 %v238
    %302 = vmatpush1.msra.mxu0 %v237
    %303 = vmatprep.subr.mxu0 %v240
    %304 = vmatpush1.msra.mxu0 %v239
    %305 = vmatprep.subr.mxu0 %v242
    %306 = vmatpush1.msra.mxu0 %v241
    %307 = vmatprep.subr.mxu0 %v244
    %308 = vmatpush1.msra.mxu0 %v243
    %309 = vmatprep.subr.mxu0 %v246
    %310 = vmatpush1.msra.mxu0 %v245
    %311 = vmatprep.subr.mxu0 %v248
    %312 = vmatpush1.msra.mxu0 %v247
    %313 = vmatprep.subr.mxu0 %v250
    %314 = vmatpush1.msra.mxu0 %v249
    %315 = vmatprep.subr.mxu0 %v252
    %316 = vmatpush1.msra.mxu0 %v251
    %317 = vmatprep.subr.mxu0 %v254
    %318 = vmatpush1.msra.mxu0 %v253
    %319 = vmatprep.subr.mxu0 %v256
    %320 = vmatpush1.msra.mxu0 %v255
    %321 = vmatprep.subr.mxu0 %v258
    %322 = vmatpush1.msra.mxu0 %v257
    %323 = vmatprep.subr.mxu0 %v260
    %324 = vmatpush1.msra.mxu0 %v259
    %325 = vmatprep.subr.mxu0 %v262
    %326 = vmatpush1.msra.mxu0 %v261
    %327 = vmatprep.subr.mxu0 %v264
    %328 = vmatpush1.msra.mxu0 %v263
    %329 = vmatprep.subr.mxu0 %v266
    %330 = vmatpush1.msra.mxu0 %v265
    %331 = vmatprep.subr.mxu0 %v268
    %332 = vmatpush1.msra.mxu0 %v267
    %333 = vmatprep.subr.mxu0 %v270
    %334 = vmatpush1.msra.mxu0 %v269
    %335 = vmatprep.subr.mxu0 %v272
    %336 = vmatpush1.msra.mxu0 %v271
    %337 = vmatprep.subr.mxu0 %v274
    %338 = vmatpush1.msra.mxu0 %v273
    %339 = vmatprep.subr.mxu0 %v276
    %340 = vmatpush1.msra.mxu0 %v275
    %341 = vmatprep.subr.mxu0 %v278
    %342 = vmatpush1.msra.mxu0 %v277
    %343 = vmatprep.subr.mxu0 %v280
    %344 = vmatpush1.msra.mxu0 %v279
    %345 = vmatprep.mubr.f32.mxu0 %v215
    %346 = vmatmul.mubr.f32.gmra.mrb[0].mxu0 %v213
    %v347 = vpop.f32.mrb[0].mxu0
    %v348 = vadd.f32 0.0, %v347
    %v349 = vpop.f32.mrb[0].mxu0
    %v350 = vadd.f32 0.0, %v349
    %351 = vmatprep.mubr.f32.mxu0 %v216
    %352 = vmatmul.mubr.f32.gmra.mrb[0].mxu0 %v214
    %v353 = vpop.f32.mrb[0].mxu0
    %v354 = vadd.f32 0.0, %v353
    %v355 = vpop.f32.mrb[0].mxu0
    %v356 = vadd.f32 0.0, %v355
    %357 = vdwg.mxu0
    %v358 = vmul.f32 %v348, %v348
    %v359 = vmul.f32 %v354, %v354
    %v360 = vsub.f32 %v350, %v358
    %v361 = vsub.f32 %v356, %v359
    %v362 = vmax.f32 %v360, 0.0
    %v363 = vmax.f32 %v361, 0.0
    %v364 = vsub.f32 %v213, %v348
    %v365 = vsub.f32 %v214, %v354
    %v366 = vadd.f32 %v362, 1e-05
    %v367 = vadd.f32 %v363, 1e-05
    %v368 = vrsqrt.pop %v366
    %v369 = vrsqrt.pop %v367
    %v370 = vmul.f32 %v364, %v368
    %v371 = vmul.f32 %v365, %v369
    %v372 = vld [vmem:[%s3] sm:$0x1]
    %v374 = vlaneseq
    %v375 = vshrl.u32 %v374, 7
    %v376 = vsub.s32 0, %v375
    %v377 = vrot.slane %v372, %v376
    %v379 = vmul.f32 %v370, %v377
    %v380 = vmul.f32 %v371, %v377
    %v381 = vld [vmem:[#allocation7] sm:$0x1]
    %v383 = vlaneseq
    %v384 = vshrl.u32 %v383, 7
    %v385 = vsub.s32 0, %v384
    %v386 = vrot.slane %v381, %v385
    %v388 = vadd.f32 %v379, %v386
    %v389 = vadd.f32 %v380, %v386
    %v390 = vpack.c.bf16 %v389, %v388
    %v391 = vld [vmem:[#allocation8] sm:$0xf]
    %v392 = vld [vmem:[#allocation8 + $0x4] sm:$0xf]
    %v393 = vld [vmem:[#allocation8 + $0x8] sm:$0xf]
    %v394 = vld [vmem:[#allocation8 + $0xc] sm:$0xf]
    %v395 = vld [vmem:[#allocation8 + $0x10] sm:$0xf]
    %v396 = vld [vmem:[#allocation8 + $0x14] sm:$0xf]
    %v397 = vld [vmem:[#allocation8 + $0x18] sm:$0xf]
    %v398 = vld [vmem:[#allocation8 + $0x1c] sm:$0xf]
    %v399 = vld [vmem:[#allocation8 + $0x20] sm:$0xf]
    %v400 = vld [vmem:[#allocation8 + $0x24] sm:$0xf]
    %v401 = vld [vmem:[#allocation8 + $0x28] sm:$0xf]
    %v402 = vld [vmem:[#allocation8 + $0x2c] sm:$0xf]
    %v403 = vld [vmem:[#allocation8 + $0x30] sm:$0xf]
    %v404 = vld [vmem:[#allocation8 + $0x34] sm:$0xf]
    %v405 = vld [vmem:[#allocation8 + $0x38] sm:$0xf]
    %v406 = vld [vmem:[#allocation8 + $0x3c] sm:$0xf]
    %v407 = vld [vmem:[#allocation10] sm:$0x1]
    %v409 = vlaneseq
    %v410 = vshrl.u32 %v409, 7
    %v411 = vsub.s32 0, %v410
    %v412 = vrot.slane %v407, %v411
    %v430 = vunpack.c.l.b16 %v391
    %v431 = vunpack.c.l.b16 %v392
    %v432 = vunpack.c.l.b16 %v393
    %v433 = vunpack.c.l.b16 %v394
    %v434 = vunpack.c.l.b16 %v395
    %v435 = vunpack.c.l.b16 %v396
    %v436 = vunpack.c.l.b16 %v397
    %v437 = vunpack.c.l.b16 %v398
    %v438 = vunpack.c.l.b16 %v399
    %v439 = vunpack.c.l.b16 %v400
    %v440 = vunpack.c.l.b16 %v401
    %v441 = vunpack.c.l.b16 %v402
    %v442 = vunpack.c.l.b16 %v403
    %v443 = vunpack.c.l.b16 %v404
    %v444 = vunpack.c.l.b16 %v405
    %v445 = vunpack.c.l.b16 %v406
    %v446 = vpack.c.b16 %v431, %v430
    %v447 = vpack.c.b16 %v433, %v432
    %v448 = vpack.c.b16 %v435, %v434
    %v449 = vpack.c.b16 %v437, %v436
    %v450 = vpack.c.b16 %v439, %v438
    %v451 = vpack.c.b16 %v441, %v440
    %v452 = vpack.c.b16 %v443, %v442
    %v453 = vpack.c.b16 %v445, %v444
    %462 = vmatprep.subr.bf16.mxu0 0
    %463 = vmatpush1.bf16.msra.mxu0 %v446
    %464 = vmatprep.subr.bf16.mxu0 0
    %465 = vmatpush1.bf16.msra.mxu0 %v447
    %466 = vmatprep.subr.bf16.mxu0 0
    %467 = vmatpush1.bf16.msra.mxu0 %v448
    %468 = vmatprep.subr.bf16.mxu0 0
    %469 = vmatpush1.bf16.msra.mxu0 %v449
    %470 = vmatprep.subr.bf16.mxu0 0
    %471 = vmatpush1.bf16.msra.mxu0 %v450
    %472 = vmatprep.subr.bf16.mxu0 0
    %473 = vmatpush1.bf16.msra.mxu0 %v451
    %474 = vmatprep.subr.bf16.mxu0 0
    %475 = vmatpush1.bf16.msra.mxu0 %v452
    %476 = vmatprep.subr.bf16.mxu0 0
    %477 = vmatpush1.bf16.msra.mxu0 %v453
    %478 = vmatprep.subr.bf16.mxu0 0
    %479 = vmatpush1.bf16.msra.mxu0 0
    %480 = vmatprep.subr.bf16.mxu0 0
    %481 = vmatpush1.bf16.msra.mxu0 0
    %482 = vmatprep.subr.bf16.mxu0 0
    %483 = vmatpush1.bf16.msra.mxu0 0
    %484 = vmatprep.subr.bf16.mxu0 0
    %485 = vmatpush1.bf16.msra.mxu0 0
    %486 = vmatprep.subr.bf16.mxu0 0
    %487 = vmatpush1.bf16.msra.mxu0 0
    %488 = vmatprep.subr.bf16.mxu0 0
    %489 = vmatpush1.bf16.msra.mxu0 0
    %490 = vmatprep.subr.bf16.mxu0 0
    %491 = vmatpush1.bf16.msra.mxu0 0
    %492 = vmatprep.subr.bf16.mxu0 0
    %493 = vmatpush1.bf16.msra.mxu0 0
    %494 = vmatprep.mubr.bf16.mxu0 0
    %495 = vmatmul.mubr.bf16.gmra.mrb[0].mxu0 %v390
    %v496 = vpop.f32.mrb[0].mxu0
    %v497 = vadd.f32 %v412, %v496
    %v498 = vpop.f32.mrb[0].mxu0
    %v499 = vpop.f32.mrb[0].mxu0
    %v500 = vadd.f32 %v412, %v499
    %v501 = vpop.f32.mrb[0].mxu0
    %502 = vdwg.mxu0
    %v503 = vmax.f32 %v497, 0.0
    %v504 = vmax.f32 %v500, 0.0
    %v505 = vpack.c.bf16 %v504, %v503
    %v506 = vld [vmem:[#allocation11] sm:$0xf]
    %v507 = vld [vmem:[#allocation11 + $0x4] sm:$0xf]
    %v508 = vld [vmem:[#allocation11 + $0x8] sm:$0xf]
    %v509 = vld [vmem:[#allocation11 + $0xc] sm:$0xf]
    %v510 = vld [vmem:[#allocation11 + $0x10] sm:$0xf]
    %v511 = vld [vmem:[#allocation11 + $0x14] sm:$0xf]
    %v512 = vld [vmem:[#allocation11 + $0x18] sm:$0xf]
    %v513 = vld [vmem:[#allocation11 + $0x1c] sm:$0xf]
    %v514 = vld [vmem:[#allocation11 + $0x20] sm:$0xf]
    %v515 = vld [vmem:[#allocation11 + $0x24] sm:$0xf]
    %v516 = vld [vmem:[#allocation11 + $0x28] sm:$0xf]
    %v517 = vld [vmem:[#allocation11 + $0x2c] sm:$0xf]
    %v518 = vld [vmem:[#allocation11 + $0x30] sm:$0xf]
    %v519 = vld [vmem:[#allocation11 + $0x34] sm:$0xf]
    %v520 = vld [vmem:[#allocation11 + $0x38] sm:$0xf]
    %v521 = vld [vmem:[#allocation11 + $0x3c] sm:$0xf]
    %v522 = vld [vmem:[#allocation13] sm:$0x1]
    %v524 = vlaneseq
    %v525 = vshrl.u32 %v524, 7
    %v526 = vsub.s32 0, %v525
    %v527 = vrot.slane %v522, %v526
    %v545 = vunpack.c.l.b16 %v506
    %v546 = vunpack.c.l.b16 %v507
    %v547 = vunpack.c.l.b16 %v508
    %v548 = vunpack.c.l.b16 %v509
    %v549 = vunpack.c.l.b16 %v510
    %v550 = vunpack.c.l.b16 %v511
    %v551 = vunpack.c.l.b16 %v512
    %v552 = vunpack.c.l.b16 %v513
    %v553 = vunpack.c.l.b16 %v514
    %v554 = vunpack.c.l.b16 %v515
    %v555 = vunpack.c.l.b16 %v516
    %v556 = vunpack.c.l.b16 %v517
    %v557 = vunpack.c.l.b16 %v518
    %v558 = vunpack.c.l.b16 %v519
    %v559 = vunpack.c.l.b16 %v520
    %v560 = vunpack.c.l.b16 %v521
    %v561 = vpack.c.b16 %v546, %v545
    %v562 = vpack.c.b16 %v548, %v547
    %v563 = vpack.c.b16 %v550, %v549
    %v564 = vpack.c.b16 %v552, %v551
    %v565 = vpack.c.b16 %v554, %v553
    %v566 = vpack.c.b16 %v556, %v555
    %v567 = vpack.c.b16 %v558, %v557
    %v568 = vpack.c.b16 %v560, %v559
    %577 = vmatprep.subr.bf16.mxu0 0
    %578 = vmatpush1.bf16.msra.mxu0 %v561
    %579 = vmatprep.subr.bf16.mxu0 0
    %580 = vmatpush1.bf16.msra.mxu0 %v562
    %581 = vmatprep.subr.bf16.mxu0 0
    %582 = vmatpush1.bf16.msra.mxu0 %v563
    %583 = vmatprep.subr.bf16.mxu0 0
    %584 = vmatpush1.bf16.msra.mxu0 %v564
    %585 = vmatprep.subr.bf16.mxu0 0
    %586 = vmatpush1.bf16.msra.mxu0 %v565
    %587 = vmatprep.subr.bf16.mxu0 0
    %588 = vmatpush1.bf16.msra.mxu0 %v566
    %589 = vmatprep.subr.bf16.mxu0 0
    %590 = vmatpush1.bf16.msra.mxu0 %v567
    %591 = vmatprep.subr.bf16.mxu0 0
    %592 = vmatpush1.bf16.msra.mxu0 %v568
    %593 = vmatprep.subr.bf16.mxu0 0
    %594 = vmatpush1.bf16.msra.mxu0 0
    %595 = vmatprep.subr.bf16.mxu0 0
    %596 = vmatpush1.bf16.msra.mxu0 0
    %597 = vmatprep.subr.bf16.mxu0 0
    %598 = vmatpush1.bf16.msra.mxu0 0
    %599 = vmatprep.subr.bf16.mxu0 0
    %600 = vmatpush1.bf16.msra.mxu0 0
    %601 = vmatprep.subr.bf16.mxu0 0
    %602 = vmatpush1.bf16.msra.mxu0 0
    %603 = vmatprep.subr.bf16.mxu0 0
    %604 = vmatpush1.bf16.msra.mxu0 0
    %605 = vmatprep.subr.bf16.mxu0 0
    %606 = vmatpush1.bf16.msra.mxu0 0
    %607 = vmatprep.subr.bf16.mxu0 0
    %608 = vmatpush1.bf16.msra.mxu0 0
    %609 = vmatprep.mubr.bf16.mxu0 0
    %610 = vmatmul.mubr.bf16.gmra.mrb[0].mxu0 %v505
    %v611 = vpop.f32.mrb[0].mxu0
    %v612 = vadd.f32 %v527, %v611
    %v613 = vpop.f32.mrb[0].mxu0
    %v614 = vpop.f32.mrb[0].mxu0
    %v615 = vadd.f32 %v527, %v614
    %v616 = vpop.f32.mrb[0].mxu0
    %617 = vdwg.mxu0
    %v618 = vmax.f32 %v612, 0.0
    %v619 = vmax.f32 %v615, 0.0
    %v620 = vpack.c.bf16 %v619, %v618
    %v621 = vld [vmem:[#allocation14] sm:$0xf]
    %v622 = vld [vmem:[#allocation14 + $0x4] sm:$0xf]
    %v623 = vld [vmem:[#allocation14 + $0x8] sm:$0xf]
    %v624 = vld [vmem:[#allocation14 + $0xc] sm:$0xf]
    %v625 = vld [vmem:[#allocation14 + $0x10] sm:$0xf]
    %v626 = vld [vmem:[#allocation14 + $0x14] sm:$0xf]
    %v627 = vld [vmem:[#allocation14 + $0x18] sm:$0xf]
    %v628 = vld [vmem:[#allocation14 + $0x1c] sm:$0xf]
    %v629 = vld [vmem:[#allocation14 + $0x20] sm:$0xf]
    %v630 = vld [vmem:[#allocation14 + $0x24] sm:$0xf]
    %v631 = vld [vmem:[#allocation14 + $0x28] sm:$0xf]
    %v632 = vld [vmem:[#allocation14 + $0x2c] sm:$0xf]
    %v633 = vld [vmem:[#allocation14 + $0x30] sm:$0xf]
    %v634 = vld [vmem:[#allocation14 + $0x34] sm:$0xf]
    %v635 = vld [vmem:[#allocation14 + $0x38] sm:$0xf]
    %v636 = vld [vmem:[#allocation14 + $0x3c] sm:$0xf]
    %v637 = vld [vmem:[#allocation16] sm:$0x1]
    %v639 = vlaneseq
    %v640 = vshrl.u32 %v639, 7
    %v641 = vsub.s32 0, %v640
    %v642 = vrot.slane %v637, %v641
    %v660 = vunpack.c.l.b16 %v621
    %v661 = vunpack.c.l.b16 %v622
    %v662 = vunpack.c.l.b16 %v623
    %v663 = vunpack.c.l.b16 %v624
    %v664 = vunpack.c.l.b16 %v625
    %v665 = vunpack.c.l.b16 %v626
    %v666 = vunpack.c.l.b16 %v627
    %v667 = vunpack.c.l.b16 %v628
    %v668 = vunpack.c.l.b16 %v629
    %v669 = vunpack.c.l.b16 %v630
    %v670 = vunpack.c.l.b16 %v631
    %v671 = vunpack.c.l.b16 %v632
    %v672 = vunpack.c.l.b16 %v633
    %v673 = vunpack.c.l.b16 %v634
    %v674 = vunpack.c.l.b16 %v635
    %v675 = vunpack.c.l.b16 %v636
    %v676 = vpack.c.b16 %v661, %v660
    %v677 = vpack.c.b16 %v663, %v662
    %v678 = vpack.c.b16 %v665, %v664
    %v679 = vpack.c.b16 %v667, %v666
    %v680 = vpack.c.b16 %v669, %v668
    %v681 = vpack.c.b16 %v671, %v670
    %v682 = vpack.c.b16 %v673, %v672
    %v683 = vpack.c.b16 %v675, %v674
    %692 = vmatprep.subr.bf16.mxu0 0
    %693 = vmatpush1.bf16.msra.mxu0 %v676
    %694 = vmatprep.subr.bf16.mxu0 0
    %695 = vmatpush1.bf16.msra.mxu0 %v677
    %696 = vmatprep.subr.bf16.mxu0 0
    %697 = vmatpush1.bf16.msra.mxu0 %v678
    %698 = vmatprep.subr.bf16.mxu0 0
    %699 = vmatpush1.bf16.msra.mxu0 %v679
    %700 = vmatprep.subr.bf16.mxu0 0
    %701 = vmatpush1.bf16.msra.mxu0 %v680
    %702 = vmatprep.subr.bf16.mxu0 0
    %703 = vmatpush1.bf16.msra.mxu0 %v681
    %704 = vmatprep.subr.bf16.mxu0 0
    %705 = vmatpush1.bf16.msra.mxu0 %v682
    %706 = vmatprep.subr.bf16.mxu0 0
    %707 = vmatpush1.bf16.msra.mxu0 %v683
    %708 = vmatprep.subr.bf16.mxu0 0
    %709 = vmatpush1.bf16.msra.mxu0 0
    %710 = vmatprep.subr.bf16.mxu0 0
    %711 = vmatpush1.bf16.msra.mxu0 0
    %712 = vmatprep.subr.bf16.mxu0 0
    %713 = vmatpush1.bf16.msra.mxu0 0
    %714 = vmatprep.subr.bf16.mxu0 0
    %715 = vmatpush1.bf16.msra.mxu0 0
    %716 = vmatprep.subr.bf16.mxu0 0
    %717 = vmatpush1.bf16.msra.mxu0 0
    %718 = vmatprep.subr.bf16.mxu0 0
    %719 = vmatpush1.bf16.msra.mxu0 0
    %720 = vmatprep.subr.bf16.mxu0 0
    %721 = vmatpush1.bf16.msra.mxu0 0
    %722 = vmatprep.subr.bf16.mxu0 0
    %723 = vmatpush1.bf16.msra.mxu0 0
    %724 = vmatprep.mubr.bf16.mxu0 0
    %725 = vmatmul.mubr.bf16.gmra.mrb[0].mxu0 %v620
    %v726 = vpop.f32.mrb[0].mxu0
    %v727 = vadd.f32 %v642, %v726
    %v728 = vpop.f32.mrb[0].mxu0
    %v729 = vpop.f32.mrb[0].mxu0
    %v730 = vadd.f32 %v642, %v729
    %v731 = vpop.f32.mrb[0].mxu0
    %732 = vdwg.mxu0
    %v733 = vmax.f32 %v727, 0.0
    %v734 = vmax.f32 %v730, 0.0
    %v735 = vpack.c.bf16 %v734, %v733
    %v736 = vld [vmem:[%s1] sm:$0xff]
    %v737 = vld [vmem:[%s1 + $0x8] sm:$0xff]
    %v738 = vlaneseq
    %v739 = vand.u32 %v738, 127
    %740 = vset.pattern.permute.xlu0 0
    %741 = vperm.xlu0 %740, %v736
    %v742 = vpop.permute.xlu0 %741
    %743 = vset.pattern.permute.xlu0 0
    %744 = vperm.xlu0 %743, %v737
    %v745 = vpop.permute.xlu0 %744
    %vm746 = vcmp.eq.s32.totalorder %v739, %v742
    %vm747 = vcmp.eq.s32.totalorder %v739, %v745
    %748 = vset.pattern.permute.xlu0 1
    %749 = vperm.xlu0 %748, %v736
    %v750 = vpop.permute.xlu0 %749
    %751 = vset.pattern.permute.xlu0 1
    %752 = vperm.xlu0 %751, %v737
    %v753 = vpop.permute.xlu0 %752
    %vm754 = vcmp.eq.s32.totalorder %v739, %v750
    %vm755 = vcmp.eq.s32.totalorder %v739, %v753
    %vm756 = vmor %vm746, %vm754
    %vm757 = vmor %vm747, %vm755
    %758 = vset.pattern.permute.xlu0 2
    %759 = vperm.xlu0 %758, %v736
    %v760 = vpop.permute.xlu0 %759
    %761 = vset.pattern.permute.xlu0 2
    %762 = vperm.xlu0 %761, %v737
    %v763 = vpop.permute.xlu0 %762
    %vm764 = vcmp.eq.s32.totalorder %v739, %v760
    %vm765 = vcmp.eq.s32.totalorder %v739, %v763
    %vm766 = vmor %vm756, %vm764
    %vm767 = vmor %vm757, %vm765
    %768 = vset.pattern.permute.xlu0 3
    %769 = vperm.xlu0 %768, %v736
    %v770 = vpop.permute.xlu0 %769
    %771 = vset.pattern.permute.xlu0 3
    %772 = vperm.xlu0 %771, %v737
    %v773 = vpop.permute.xlu0 %772
    %vm774 = vcmp.eq.s32.totalorder %v739, %v770
    %vm775 = vcmp.eq.s32.totalorder %v739, %v773
    %vm776 = vmor %vm766, %vm774
    %vm777 = vmor %vm767, %vm775
    %v778 = vsel %vm776, 1, 0
    %v779 = vsel %vm777, 1, 0
    %v780 = vcvt.s32.f32 %v778
    %v781 = vcvt.s32.f32 %v779
    %v782 = vpack.c.bf16 %v781, %v780
    %v783 = vld [vmem:[%s11] sm:$0xf]
    %v784 = vld [vmem:[%s11 + $0x4] sm:$0xf]
    %v785 = vld [vmem:[%s11 + $0x8] sm:$0xf]
    %v786 = vld [vmem:[%s11 + $0xc] sm:$0xf]
    %v787 = vld [vmem:[%s11 + $0x10] sm:$0xf]
    %v788 = vld [vmem:[%s11 + $0x14] sm:$0xf]
    %v789 = vld [vmem:[%s11 + $0x18] sm:$0xf]
    %v790 = vld [vmem:[%s11 + $0x1c] sm:$0xf]
    %v791 = vld [vmem:[%s11 + $0x20] sm:$0xf]
    %v792 = vld [vmem:[%s11 + $0x24] sm:$0xf]
    %v793 = vld [vmem:[%s11 + $0x28] sm:$0xf]
    %v794 = vld [vmem:[%s11 + $0x2c] sm:$0xf]
    %v795 = vld [vmem:[%s11 + $0x30] sm:$0xf]
    %v796 = vld [vmem:[%s11 + $0x34] sm:$0xf]
    %v797 = vld [vmem:[%s11 + $0x38] sm:$0xf]
    %v798 = vld [vmem:[%s11 + $0x3c] sm:$0xf]
    %v799 = vld [vmem:[#allocation17] sm:$0xf]
    %v800 = vld [vmem:[#allocation17 + $0x4] sm:$0xf]
    %v801 = vld [vmem:[#allocation17 + $0x8] sm:$0xf]
    %v802 = vld [vmem:[#allocation17 + $0xc] sm:$0xf]
    %v803 = vld [vmem:[#allocation17 + $0x10] sm:$0xf]
    %v804 = vld [vmem:[#allocation17 + $0x14] sm:$0xf]
    %v805 = vld [vmem:[#allocation17 + $0x18] sm:$0xf]
    %v806 = vld [vmem:[#allocation17 + $0x1c] sm:$0xf]
    %v807 = vld [vmem:[#allocation17 + $0x20] sm:$0xf]
    %v808 = vld [vmem:[#allocation17 + $0x24] sm:$0xf]
    %v809 = vld [vmem:[#allocation17 + $0x28] sm:$0xf]
    %v810 = vld [vmem:[#allocation17 + $0x2c] sm:$0xf]
    %v811 = vld [vmem:[#allocation17 + $0x30] sm:$0xf]
    %v812 = vld [vmem:[#allocation17 + $0x34] sm:$0xf]
    %v813 = vld [vmem:[#allocation17 + $0x38] sm:$0xf]
    %v814 = vld [vmem:[#allocation17 + $0x3c] sm:$0xf]
    %v831 = vunpack.c.l.b16 %v799
    %v832 = vunpack.c.l.b16 %v800
    %v833 = vunpack.c.l.b16 %v801
    %v834 = vunpack.c.l.b16 %v802
    %v835 = vunpack.c.l.b16 %v803
    %v836 = vunpack.c.l.b16 %v804
    %v837 = vunpack.c.l.b16 %v805
    %v838 = vunpack.c.l.b16 %v806
    %v839 = vunpack.c.l.b16 %v807
    %v840 = vunpack.c.l.b16 %v808
    %v841 = vunpack.c.l.b16 %v809
    %v842 = vunpack.c.l.b16 %v810
    %v843 = vunpack.c.l.b16 %v811
    %v844 = vunpack.c.l.b16 %v812
    %v845 = vunpack.c.l.b16 %v813
    %v846 = vunpack.c.l.b16 %v814
    %v847 = vpack.c.b16 %v832, %v831
    %v848 = vpack.c.b16 %v834, %v833
    %v849 = vpack.c.b16 %v836, %v835
    %v850 = vpack.c.b16 %v838, %v837
    %v851 = vpack.c.b16 %v840, %v839
    %v852 = vpack.c.b16 %v842, %v841
    %v853 = vpack.c.b16 %v844, %v843
    %v854 = vpack.c.b16 %v846, %v845
    %863 = vmatprep.subr.bf16.mxu0 0
    %864 = vmatpush1.bf16.msra.mxu0 %v847
    %865 = vmatprep.subr.bf16.mxu0 0
    %866 = vmatpush1.bf16.msra.mxu0 %v848
    %867 = vmatprep.subr.bf16.mxu0 0
    %868 = vmatpush1.bf16.msra.mxu0 %v849
    %869 = vmatprep.subr.bf16.mxu0 0
    %870 = vmatpush1.bf16.msra.mxu0 %v850
    %871 = vmatprep.subr.bf16.mxu0 0
    %872 = vmatpush1.bf16.msra.mxu0 %v851
    %873 = vmatprep.subr.bf16.mxu0 0
    %874 = vmatpush1.bf16.msra.mxu0 %v852
    %875 = vmatprep.subr.bf16.mxu0 0
    %876 = vmatpush1.bf16.msra.mxu0 %v853
    %877 = vmatprep.subr.bf16.mxu0 0
    %878 = vmatpush1.bf16.msra.mxu0 %v854
    %879 = vmatprep.subr.bf16.mxu0 0
    %880 = vmatpush1.bf16.msra.mxu0 0
    %881 = vmatprep.subr.bf16.mxu0 0
    %882 = vmatpush1.bf16.msra.mxu0 0
    %883 = vmatprep.subr.bf16.mxu0 0
    %884 = vmatpush1.bf16.msra.mxu0 0
    %885 = vmatprep.subr.bf16.mxu0 0
    %886 = vmatpush1.bf16.msra.mxu0 0
    %887 = vmatprep.subr.bf16.mxu0 0
    %888 = vmatpush1.bf16.msra.mxu0 0
    %889 = vmatprep.subr.bf16.mxu0 0
    %890 = vmatpush1.bf16.msra.mxu0 0
    %891 = vmatprep.subr.bf16.mxu0 0
    %892 = vmatpush1.bf16.msra.mxu0 0
    %893 = vmatprep.subr.bf16.mxu0 0
    %894 = vmatpush1.bf16.msra.mxu0 0
    %895 = vmatprep.mubr.bf16.mxu0 0
    %896 = vmatmul.mubr.bf16.gmra.mrb[0].mxu0 %v782
    %v897 = vpop.f32.mrb[0].mxu0
    %v898 = vadd.f32 0.0, %v897
    %v899 = vpop.f32.mrb[0].mxu0
    %v900 = vpop.f32.mrb[0].mxu0
    %v901 = vadd.f32 0.0, %v900
    %v902 = vpop.f32.mrb[0].mxu0
    %903 = vdwg.mxu0
    %v920 = vunpack.c.l.b16 %v783
    %v921 = vunpack.c.l.b16 %v784
    %v922 = vunpack.c.l.b16 %v785
    %v923 = vunpack.c.l.b16 %v786
    %v924 = vunpack.c.l.b16 %v787
    %v925 = vunpack.c.l.b16 %v788
    %v926 = vunpack.c.l.b16 %v789
    %v927 = vunpack.c.l.b16 %v790
    %v928 = vunpack.c.l.b16 %v791
    %v929 = vunpack.c.l.b16 %v792
    %v930 = vunpack.c.l.b16 %v793
    %v931 = vunpack.c.l.b16 %v794
    %v932 = vunpack.c.l.b16 %v795
    %v933 = vunpack.c.l.b16 %v796
    %v934 = vunpack.c.l.b16 %v797
    %v935 = vunpack.c.l.b16 %v798
    %v936 = vpack.c.b16 %v921, %v920
    %v937 = vpack.c.b16 %v923, %v922
    %v938 = vpack.c.b16 %v925, %v924
    %v939 = vpack.c.b16 %v927, %v926
    %v940 = vpack.c.b16 %v929, %v928
    %v941 = vpack.c.b16 %v931, %v930
    %v942 = vpack.c.b16 %v933, %v932
    %v943 = vpack.c.b16 %v935, %v934
    %952 = vmatprep.subr.bf16.mxu0 0
    %953 = vmatpush1.bf16.msra.mxu0 %v936
    %954 = vmatprep.subr.bf16.mxu0 0
    %955 = vmatpush1.bf16.msra.mxu0 %v937
    %956 = vmatprep.subr.bf16.mxu0 0
    %957 = vmatpush1.bf16.msra.mxu0 %v938
    %958 = vmatprep.subr.bf16.mxu0 0
    %959 = vmatpush1.bf16.msra.mxu0 %v939
    %960 = vmatprep.subr.bf16.mxu0 0
    %961 = vmatpush1.bf16.msra.mxu0 %v940
    %962 = vmatprep.subr.bf16.mxu0 0
    %963 = vmatpush1.bf16.msra.mxu0 %v941
    %964 = vmatprep.subr.bf16.mxu0 0
    %965 = vmatpush1.bf16.msra.mxu0 %v942
    %966 = vmatprep.subr.bf16.mxu0 0
    %967 = vmatpush1.bf16.msra.mxu0 %v943
    %968 = vmatprep.subr.bf16.mxu0 0
    %969 = vmatpush1.bf16.msra.mxu0 0
    %970 = vmatprep.subr.bf16.mxu0 0
    %971 = vmatpush1.bf16.msra.mxu0 0
    %972 = vmatprep.subr.bf16.mxu0 0
    %973 = vmatpush1.bf16.msra.mxu0 0
    %974 = vmatprep.subr.bf16.mxu0 0
    %975 = vmatpush1.bf16.msra.mxu0 0
    %976 = vmatprep.subr.bf16.mxu0 0
    %977 = vmatpush1.bf16.msra.mxu0 0
    %978 = vmatprep.subr.bf16.mxu0 0
    %979 = vmatpush1.bf16.msra.mxu0 0
    %980 = vmatprep.subr.bf16.mxu0 0
    %981 = vmatpush1.bf16.msra.mxu0 0
    %982 = vmatprep.subr.bf16.mxu0 0
    %983 = vmatpush1.bf16.msra.mxu0 0
    %984 = vmatprep.mubr.bf16.mxu0 0
    %985 = vmatmul.mubr.bf16.gmra.mrb[0].mxu0 %v735
    %v986 = vpop.f32.mrb[0].mxu0
    %v987 = vadd.f32 %v898, %v986
    %v988 = vpop.f32.mrb[0].mxu0
    %v989 = vpop.f32.mrb[0].mxu0
    %v990 = vadd.f32 %v901, %v989
    %v991 = vpop.f32.mrb[0].mxu0
    %992 = vdwg.mxu0
    %v993 = vld [vmem:[#allocation19] sm:$0xf]
    %v994 = vld [vmem:[#allocation19 + $0x4] sm:$0xf]
    %v995 = vld [vmem:[#allocation19 + $0x8] sm:$0xf]
    %v996 = vld [vmem:[#allocation19 + $0xc] sm:$0xf]
    %v997 = vld [vmem:[#allocation19 + $0x10] sm:$0xf]
    %v998 = vld [vmem:[#allocation19 + $0x14] sm:$0xf]
    %v999 = vld [vmem:[#allocation19 + $0x18] sm:$0xf]
    %v1000 = vld [vmem:[#allocation19 + $0x1c] sm:$0xf]
    %v1001 = vld [vmem:[#allocation19 + $0x20] sm:$0xf]
    %v1002 = vld [vmem:[#allocation19 + $0x24] sm:$0xf]
    %v1003 = vld [vmem:[#allocation19 + $0x28] sm:$0xf]
    %v1004 = vld [vmem:[#allocation19 + $0x2c] sm:$0xf]
    %v1005 = vld [vmem:[#allocation19 + $0x30] sm:$0xf]
    %v1006 = vld [vmem:[#allocation19 + $0x34] sm:$0xf]
    %v1007 = vld [vmem:[#allocation19 + $0x38] sm:$0xf]
    %v1008 = vld [vmem:[#allocation19 + $0x3c] sm:$0xf]
    %v1025 = vunpack.c.l.b16 %v993
    %v1026 = vunpack.c.l.b16 %v994
    %v1027 = vunpack.c.l.b16 %v995
    %v1028 = vunpack.c.l.b16 %v996
    %v1029 = vunpack.c.l.b16 %v997
    %v1030 = vunpack.c.l.b16 %v998
    %v1031 = vunpack.c.l.b16 %v999
    %v1032 = vunpack.c.l.b16 %v1000
    %v1033 = vunpack.c.l.b16 %v1001
    %v1034 = vunpack.c.l.b16 %v1002
    %v1035 = vunpack.c.l.b16 %v1003
    %v1036 = vunpack.c.l.b16 %v1004
    %v1037 = vunpack.c.l.b16 %v1005
    %v1038 = vunpack.c.l.b16 %v1006
    %v1039 = vunpack.c.l.b16 %v1007
    %v1040 = vunpack.c.l.b16 %v1008
    %v1041 = vpack.c.b16 %v1026, %v1025
    %v1042 = vpack.c.b16 %v1028, %v1027
    %v1043 = vpack.c.b16 %v1030, %v1029
    %v1044 = vpack.c.b16 %v1032, %v1031
    %v1045 = vpack.c.b16 %v1034, %v1033
    %v1046 = vpack.c.b16 %v1036, %v1035
    %v1047 = vpack.c.b16 %v1038, %v1037
    %v1048 = vpack.c.b16 %v1040, %v1039
    %1057 = vmatprep.subr.bf16.mxu0 0
    %1058 = vmatpush1.bf16.msra.mxu0 %v1041
    %1059 = vmatprep.subr.bf16.mxu0 0
    %1060 = vmatpush1.bf16.msra.mxu0 %v1042
    %1061 = vmatprep.subr.bf16.mxu0 0
    %1062 = vmatpush1.bf16.msra.mxu0 %v1043
    %1063 = vmatprep.subr.bf16.mxu0 0
    %1064 = vmatpush1.bf16.msra.mxu0 %v1044
    %1065 = vmatprep.subr.bf16.mxu0 0
    %1066 = vmatpush1.bf16.msra.mxu0 %v1045
    %1067 = vmatprep.subr.bf16.mxu0 0
    %1068 = vmatpush1.bf16.msra.mxu0 %v1046
    %1069 = vmatprep.subr.bf16.mxu0 0
    %1070 = vmatpush1.bf16.msra.mxu0 %v1047
    %1071 = vmatprep.subr.bf16.mxu0 0
    %1072 = vmatpush1.bf16.msra.mxu0 %v1048
    %1073 = vmatprep.subr.bf16.mxu0 0
    %1074 = vmatpush1.bf16.msra.mxu0 0
    %1075 = vmatprep.subr.bf16.mxu0 0
    %1076 = vmatpush1.bf16.msra.mxu0 0
    %1077 = vmatprep.subr.bf16.mxu0 0
    %1078 = vmatpush1.bf16.msra.mxu0 0
    %1079 = vmatprep.subr.bf16.mxu0 0
    %1080 = vmatpush1.bf16.msra.mxu0 0
    %1081 = vmatprep.subr.bf16.mxu0 0
    %1082 = vmatpush1.bf16.msra.mxu0 0
    %1083 = vmatprep.subr.bf16.mxu0 0
    %1084 = vmatpush1.bf16.msra.mxu0 0
    %1085 = vmatprep.subr.bf16.mxu0 0
    %1086 = vmatpush1.bf16.msra.mxu0 0
    %1087 = vmatprep.subr.bf16.mxu0 0
    %1088 = vmatpush1.bf16.msra.mxu0 0
    %1089 = vmatprep.mubr.bf16.mxu0 0
    %1090 = vmatmul.mubr.bf16.gmra.mrb[0].mxu0 %v390
    %v1091 = vpop.f32.mrb[0].mxu0
    %v1092 = vadd.f32 0.0, %v1091
    %v1093 = vpop.f32.mrb[0].mxu0
    %v1094 = vpop.f32.mrb[0].mxu0
    %v1095 = vadd.f32 0.0, %v1094
    %v1096 = vpop.f32.mrb[0].mxu0
    %1097 = vdwg.mxu0
    %v1098 = vadd.f32 %v987, %v1092
    %v1099 = vadd.f32 %v990, %v1095
    %v1100 = vld [vmem:[%s14] sm:$0x1]
    %v1102 = vlaneseq
    %v1103 = vshrl.u32 %v1102, 7
    %v1104 = vsub.s32 0, %v1103
    %v1105 = vrot.slane %v1100, %v1104
    %v1107 = vadd.f32 %v1098, %v1105
    %v1108 = vadd.f32 %v1099, %v1105
    %v1109 = vmax.f32 %v1107, 0.0
    %v1110 = vmax.f32 %v1108, 0.0
    %v1111 = vpack.c.bf16 %v1110, %v1109
    %v1112 = vld [vmem:[#allocation20] sm:$0xf]
    %v1113 = vld [vmem:[#allocation20 + $0x4] sm:$0xf]
    %v1114 = vld [vmem:[#allocation20 + $0x8] sm:$0xf]
    %v1115 = vld [vmem:[#allocation20 + $0xc] sm:$0xf]
    %v1116 = vld [vmem:[#allocation20 + $0x10] sm:$0xf]
    %v1117 = vld [vmem:[#allocation20 + $0x14] sm:$0xf]
    %v1118 = vld [vmem:[#allocation20 + $0x18] sm:$0xf]
    %v1119 = vld [vmem:[#allocation20 + $0x1c] sm:$0xf]
    %v1120 = vld [vmem:[#allocation20 + $0x20] sm:$0xf]
    %v1121 = vld [vmem:[#allocation20 + $0x24] sm:$0xf]
    %v1122 = vld [vmem:[#allocation20 + $0x28] sm:$0xf]
    %v1123 = vld [vmem:[#allocation20 + $0x2c] sm:$0xf]
    %v1124 = vld [vmem:[#allocation20 + $0x30] sm:$0xf]
    %v1125 = vld [vmem:[#allocation20 + $0x34] sm:$0xf]
    %v1126 = vld [vmem:[#allocation20 + $0x38] sm:$0xf]
    %v1127 = vld [vmem:[#allocation20 + $0x3c] sm:$0xf]
    %v1128 = vld [vmem:[%s16] sm:$0x1]
    %v1130 = vlaneseq
    %v1131 = vshrl.u32 %v1130, 7
    %v1132 = vsub.s32 0, %v1131
    %v1133 = vrot.slane %v1128, %v1132
    %v1151 = vunpack.c.l.b16 %v1112
    %v1152 = vunpack.c.l.b16 %v1113
    %v1153 = vunpack.c.l.b16 %v1114
    %v1154 = vunpack.c.l.b16 %v1115
    %v1155 = vunpack.c.l.b16 %v1116
    %v1156 = vunpack.c.l.b16 %v1117
    %v1157 = vunpack.c.l.b16 %v1118
    %v1158 = vunpack.c.l.b16 %v1119
    %v1159 = vunpack.c.l.b16 %v1120
    %v1160 = vunpack.c.l.b16 %v1121
    %v1161 = vunpack.c.l.b16 %v1122
    %v1162 = vunpack.c.l.b16 %v1123
    %v1163 = vunpack.c.l.b16 %v1124
    %v1164 = vunpack.c.l.b16 %v1125
    %v1165 = vunpack.c.l.b16 %v1126
    %v1166 = vunpack.c.l.b16 %v1127
    %v1167 = vpack.c.b16 %v1152, %v1151
    %v1168 = vpack.c.b16 %v1154, %v1153
    %v1169 = vpack.c.b16 %v1156, %v1155
    %v1170 = vpack.c.b16 %v1158, %v1157
    %v1171 = vpack.c.b16 %v1160, %v1159
    %v1172 = vpack.c.b16 %v1162, %v1161
    %v1173 = vpack.c.b16 %v1164, %v1163
    %v1174 = vpack.c.b16 %v1166, %v1165
    %1183 = vmatprep.subr.bf16.mxu0 0
    %1184 = vmatpush1.bf16.msra.mxu0 %v1167
    %1185 = vmatprep.subr.bf16.mxu0 0
    %1186 = vmatpush1.bf16.msra.mxu0 %v1168
    %1187 = vmatprep.subr.bf16.mxu0 0
    %1188 = vmatpush1.bf16.msra.mxu0 %v1169
    %1189 = vmatprep.subr.bf16.mxu0 0
    %1190 = vmatpush1.bf16.msra.mxu0 %v1170
    %1191 = vmatprep.subr.bf16.mxu0 0
    %1192 = vmatpush1.bf16.msra.mxu0 %v1171
    %1193 = vmatprep.subr.bf16.mxu0 0
    %1194 = vmatpush1.bf16.msra.mxu0 %v1172
    %1195 = vmatprep.subr.bf16.mxu0 0
    %1196 = vmatpush1.bf16.msra.mxu0 %v1173
    %1197 = vmatprep.subr.bf16.mxu0 0
    %1198 = vmatpush1.bf16.msra.mxu0 %v1174
    %1199 = vmatprep.subr.bf16.mxu0 0
    %1200 = vmatpush1.bf16.msra.mxu0 0
    %1201 = vmatprep.subr.bf16.mxu0 0
    %1202 = vmatpush1.bf16.msra.mxu0 0
    %1203 = vmatprep.subr.bf16.mxu0 0
    %1204 = vmatpush1.bf16.msra.mxu0 0
    %1205 = vmatprep.subr.bf16.mxu0 0
    %1206 = vmatpush1.bf16.msra.mxu0 0
    %1207 = vmatprep.subr.bf16.mxu0 0
    %1208 = vmatpush1.bf16.msra.mxu0 0
    %1209 = vmatprep.subr.bf16.mxu0 0
    %1210 = vmatpush1.bf16.msra.mxu0 0
    %1211 = vmatprep.subr.bf16.mxu0 0
    %1212 = vmatpush1.bf16.msra.mxu0 0
    %1213 = vmatprep.subr.bf16.mxu0 0
    %1214 = vmatpush1.bf16.msra.mxu0 0
    %1215 = vmatprep.mubr.bf16.mxu0 0
    %1216 = vmatmul.mubr.bf16.gmra.mrb[0].mxu0 %v1111
    %v1217 = vpop.f32.mrb[0].mxu0
    %v1218 = vadd.f32 %v1133, %v1217
    %v1219 = vpop.f32.mrb[0].mxu0
    %v1220 = vpop.f32.mrb[0].mxu0
    %v1221 = vadd.f32 %v1133, %v1220
    %v1222 = vpop.f32.mrb[0].mxu0
    %1223 = vdwg.mxu0
    %1224 = vst [vmem:[#allocation22] sm:$0xff] %v1218
    %1225 = vst [vmem:[#allocation22 + $0x8] sm:$0xff] %v1221
    // Predicated region
    $region118: #{tpu_custom_call.1} parent=1 // pred_check
      _
    $region119: #{tpu_custom_call.1} parent=1 // pred_check_branch
      %1227 = sbr.rel (0) target = $region121
    $region120: #{tpu_custom_call.1} parent=1 // pred_region
      %s1229 = ssub.s32 256, 256
      %1230 = vsyncadd [#allocation4], %s1229
      %s1231 = sshll.u32 [#allocation22], 4
      %s1232 = int_to_ptr.vmem [resolvable:$true] %s1231
      %1237 = dma.vmem_to_hbm [thread:$0]  %s1232, 256, %s17, [#allocation4], 128, 128, 8
    $region121: #{tpu_custom_call.1} parent=1 // pred_fallthru
      _
    // Predicated region
    $region122: #{tpu_custom_call.1} parent=1 // pred_check
      _
    $region123: #{tpu_custom_call.1} parent=1 // pred_check_branch
      %1239 = sbr.rel (0) target = $region125
    $region124: #{tpu_custom_call.1} parent=1 // pred_region
      %1240 = dma.done [#allocation4], 256
    $region125: #{tpu_custom_call.1} parent=1 // pred_fallthru
      _
    %1241 = vsyncpa [#allocation3], 1
    %1242 = vsyncpa [#allocation6], 1
    %1243 = vsyncpa [#allocation9], 1
    %1244 = vsyncpa [#allocation12], 1
    %1245 = vsyncpa [#allocation15], 1
    %1246 = vsyncpa [#allocation18], 1
    %1247 = vsyncpa [#allocation21], 1
    %1248 = vsyncpa [#allocation4], 1

</llo_original>
